<compile_context>
chip_gen: v7x
topology: tpu7x:2x2x1
jax: 0.10.0
libtpu: 0.0.40
codegen_flags: <defaults>
</compile_context>

<pallas_src>
import numpy as np
import jax
import jax.numpy as jnp
from jax.experimental import pallas as pl
from jax.experimental.pallas import tpu as pltpu


def get_frequency_modes(seq_len, modes=64, mode_select_method='random'):
    modes = min(modes, seq_len // 2)
    if mode_select_method == 'random':
        index = list(range(0, seq_len // 2))
        np.random.shuffle(index)
        index = index[:modes]
        index.sort()
    else:
        index = list(range(0, modes))
    return index


def _dft_rows(seq_len, index):
    """Forward DFT at the selected modes, packed along rows: (2M, L) = [cos ; -sin]."""
    t = np.arange(seq_len, dtype=np.float64)[None, :]
    f = np.asarray(index, np.float64)[:, None]
    ang = 2.0 * np.pi * f * t / float(seq_len)
    return np.concatenate([np.cos(ang), -np.sin(ang)], axis=0).astype(np.float32)


def _idft_cols(seq_len, index):
    """Inverse rFFT restricted to the selected modes, packed columns: (L, 2M).

    irfft(Y)[t] = sum_m alpha_m/L * (Re Y[f_m] cos(2*pi*f_m*t/L)
                                     - Im Y[f_m] sin(2*pi*f_m*t/L)),
    alpha = 1 for DC / Nyquist (their imaginary parts are dropped because the
    corresponding sin column is exactly zero), else 2.
    """
    f = np.asarray(index, np.float64)[None, :]
    t = np.arange(seq_len, dtype=np.float64)[:, None]
    ang = 2.0 * np.pi * f * t / float(seq_len)
    nyq = (seq_len % 2 == 0) & (f == seq_len // 2)
    alpha = np.where((f == 0) | nyq, 1.0, 2.0) / float(seq_len)
    c = alpha * np.cos(ang)     # (L, M)
    s = -alpha * np.sin(ang)    # (L, M)
    return np.concatenate([c, s], axis=1).astype(np.float32)


def _fca_kernel(q_ref, k_ref, v_ref, ftq_ref, ftk_ref, w_ref, idt_ref, out_ref):
    f32 = jnp.float32
    bb, Lq, D = q_ref.shape
    _, Lkv, _ = k_ref.shape
    Mq = ftq_ref.shape[1] // 2
    Mkv = ftk_ref.shape[1] // 2
    H = w_ref.shape[0]
    O = w_ref.shape[2] // 2
    E = w_ref.shape[3]

    def bmm(spec, a, b):  # canonical / trans_b batched matmuls only
        return jnp.einsum(spec, a, b, preferred_element_type=f32)

    # ---- Stage 1: rFFT at the selected modes, contraction over the L axis of
    # the natural layout.  One batched matmul per tensor; re rows then im rows
    # packed along the (sublane) mode axis, channels of all heads on lanes.
    Qs = bmm('bml,bld->bmd', ftq_ref[...], q_ref[...])    # (bb, 2*Mq,  D)
    Ks = bmm('bml,bld->bmd', ftk_ref[...], k_ref[...])    # (bb, 2*Mkv, D)
    Vs = bmm('bml,bld->bmd', ftk_ref[...], v_ref[...])    # (bb, 2*Mkv, D)

    # ---- Stages 2-4 per head (bb-batched matmuls inside).
    # TODO(synk): the per-head lane slices at h*E and the b->rows concatenate in
    # stage 4 are small VMEM relayouts; a fully head-batched formulation would
    # need leading-dim transposes that Mosaic may not lower.
    P_heads = []
    for h in range(H):
        sl = slice(h * E, (h + 1) * E)
        q_re, q_im = Qs[:, :Mq, sl], Qs[:, Mq:, sl]        # (bb, Mq,  E)
        k_re, k_im = Ks[:, :Mkv, sl], Ks[:, Mkv:, sl]      # (bb, Mkv, E)
        v_re, v_im = Vs[:, :Mkv, sl], Vs[:, Mkv:, sl]

        # Stage 2: QK[b,x,y] = sum_e Q[b,x,e]*K[b,y,e] (complex, Karatsuba),
        # tanh applied to real/imag independently ('tanh' activation).
        t1 = bmm('bxe,bye->bxy', q_re, k_re)
        t2 = bmm('bxe,bye->bxy', q_im, k_im)
        t3 = bmm('bxe,bye->bxy', q_re + q_im, k_re + k_im)
        qk_re = jnp.tanh(t1 - t2)                          # (bb, Mq, Mkv)
        qk_im = jnp.tanh(t3 - t1 - t2)

        # Stage 3: QKV[b,x,e] = sum_y QK[b,x,y]*V[b,y,e] (complex, Karatsuba).
        u1 = bmm('bxy,bye->bxe', qk_re, v_re)
        u2 = bmm('bxy,bye->bxe', qk_im, v_im)
        u3 = bmm('bxy,bye->bxe', qk_re + qk_im, v_re + v_im)
        a_re = u1 - u2                                     # (bb, Mq, E)
        a_im = u3 - u1 - u2

        # Stage 4: per-mode contraction over channels, batched over modes with
        # rows = 2*bb (real rows for every batch element, then imag rows).
        parts = ([a_re[b][:, None, :] for b in range(bb)] +
                 [a_im[b][:, None, :] for b in range(bb)])
        lrows = jnp.concatenate(parts, axis=1)             # (Mq, 2*bb, E)
        P_heads.append(bmm('mre,moe->mro', lrows, w_ref[h]))  # (Mq, 2*bb, 2*O)

    # ---- Stage 5: inverse rFFT folded in.  One (Lq, 2Mq) x (2Mq, H*O) matmul
    # per batch element; the store is a lane-dense (Lq, H*O) slab in the final
    # output layout.
    idt = idt_ref[...]                                     # (Lq, 2*Mq)
    for b in range(bb):
        cols = []
        for h in range(H):
            P = P_heads[h]
            rre = P[:, b, :O] - P[:, bb + b, O:]           # Re(QKV*W): (Mq, O)
            rim = P[:, b, O:] + P[:, bb + b, :O]           # Im(QKV*W): (Mq, O)
            cols.append(jnp.concatenate([rre, rim], axis=0))   # (2*Mq, O)
        rstack = jnp.concatenate(cols, axis=1)             # (2*Mq, H*O)
        y_b = jax.lax.dot_general(idt, rstack, (((1,), (0,)), ((), ())),
                                  preferred_element_type=f32)
        out_ref[b] = y_b.astype(out_ref.dtype)             # (Lq, H*O)


def fourier_cross_attention(q, k, v, w_re, w_im, index_q, index_kv,
                            batch_block=None, compute_dtype=jnp.float32):
    """q: (B, Lq, H, E); k, v: (B, Lkv, H, E); weights: (H, E, O, Mq).

    Returns ((B, Lq, H, O), None), matching FourierCrossAttention.forward.
    compute_dtype may be jnp.bfloat16 on v6e/v7x to halve stream traffic
    (accumulation stays f32).
    """
    B, Lq, H, E = q.shape
    _, Lkv, _, _ = k.shape
    O = w_re.shape[2]
    Mq, Mkv = len(index_q), len(index_kv)
    D = H * E

    if batch_block is None:
        batch_block = min(B, 8)
        if B >= 2 and B // batch_block < 2:   # keep >= 2 parallel steps (v7x 2 TCs)
            batch_block = max(1, B // 2)
    assert B % batch_block == 0, "batch size must be divisible by batch_block"
    bb = batch_block
    nb = B // bb

    # Natural layout kept: only free, contiguous reshapes (no HBM transposes).
    q3 = q.reshape(B, Lq, D).astype(compute_dtype)
    k3 = k.reshape(B, Lkv, D).astype(compute_dtype)
    v3 = v.reshape(B, Lkv, D).astype(compute_dtype)

    ftq = jnp.asarray(_dft_rows(Lq, index_q))      # (2*Mq, Lq)
    ftk = jnp.asarray(_dft_rows(Lkv, index_kv))    # (2*Mkv, Lkv)
    idt = jnp.asarray(_idft_cols(Lq, index_q))     # (Lq, 2*Mq)

    # Tiny batch-broadcast copies so stage 1 is a canonical batched matmul.
    ftq_b = jnp.broadcast_to(ftq[None], (bb, 2 * Mq, Lq)).astype(compute_dtype)
    ftk_b = jnp.broadcast_to(ftk[None], (bb, 2 * Mkv, Lkv)).astype(compute_dtype)

    # weights (H, E, O, Mq) x2 -> (H, Mq, 2*O, E): mode outermost (batch dim of
    # the in-kernel per-mode contraction), channels on lanes.
    wp = jnp.transpose(
        jnp.concatenate([w_re, w_im], axis=2).astype(jnp.float32), (0, 3, 2, 1))

    # Rough VMEM budget (double-buffered streams + resident constants +
    # intermediates), capped below v7x's 64 MiB physical VMEM.
    isz = np.dtype(compute_dtype).itemsize
    stream = bb * (Lq * D + 2 * Lkv * D) * isz + bb * Lq * H * O * 4
    consts = (bb * 2 * Mq * Lq + bb * 2 * Mkv * Lkv) * isz \
        + (H * Mq * 2 * O * E + Lq * 2 * Mq) * 4
    interm = bb * (2 * Mq + 4 * Mkv) * D * 4 + H * Mq * 2 * bb * 2 * O * 4
    vmem_limit = int(min(max(32 * 2**20, 2 * (stream + consts) + 2 * interm + (1 << 20)),
                         48 * 2**20))

    out = pl.pallas_call(
        _fca_kernel,
        out_shape=jax.ShapeDtypeStruct((B, Lq, H * O), jnp.float32),
        grid=(nb,),
        in_specs=[
            pl.BlockSpec((bb, Lq, D), lambda i: (i, 0, 0)),
            pl.BlockSpec((bb, Lkv, D), lambda i: (i, 0, 0)),
            pl.BlockSpec((bb, Lkv, D), lambda i: (i, 0, 0)),
            pl.BlockSpec((bb, 2 * Mq, Lq), lambda i: (0, 0, 0)),
            pl.BlockSpec((bb, 2 * Mkv, Lkv), lambda i: (0, 0, 0)),
            pl.BlockSpec((H, Mq, 2 * O, E), lambda i: (0, 0, 0, 0)),
            pl.BlockSpec((Lq, 2 * Mq), lambda i: (0, 0)),
        ],
        out_specs=pl.BlockSpec((bb, Lq, H * O), lambda i: (i, 0, 0)),
        compiler_params=pltpu.CompilerParams(
            dimension_semantics=("parallel",),
            vmem_limit_bytes=vmem_limit),
    )(q3, k3, v3, ftq_b, ftk_b, wp, idt)

    # Free reshape only -- the kernel already wrote the module's output layout.
    return out.reshape(B, Lq, H, O), None


def reference_forward(q, k, v, index_q, index_kv, w_re, w_im):
    """Pure-JAX mirror of the PyTorch forward (for verification)."""
    B, L, H, E = q.shape
    iq = jnp.asarray(index_q)
    ikv = jnp.asarray(index_kv)
    _q = jnp.transpose(q, (0, 2, 3, 1))
    _k = jnp.transpose(k, (0, 2, 3, 1))
    _v = jnp.transpose(v, (0, 2, 3, 1))
    Q = jnp.fft.rfft(_q, axis=-1)[..., iq]
    K = jnp.fft.rfft(_k, axis=-1)[..., ikv]
    V = jnp.fft.rfft(_v, axis=-1)[..., ikv]
    QK = jnp.einsum('bhex,bhey->bhxy', Q, K)
    QK = jnp.tanh(QK.real) + 1j * jnp.tanh(QK.imag)
    QKV = jnp.einsum('bhxy,bhey->bhex', QK, V)
    W = (w_re + 1j * w_im).astype(jnp.complex64)
    QKVW = jnp.einsum('bhex,heox->bhox', QKV, W)
    O = QKVW.shape[2]
    Y = jnp.zeros((B, H, O, L // 2 + 1), jnp.complex64).at[..., iq].set(QKVW)
    y = jnp.fft.irfft(Y, n=L, axis=-1)
    return jnp.transpose(y, (0, 3, 1, 2))


if __name__ == "__main__":
    # Module config (small, consistent with the forward pass)
    num_heads = 2
    in_channels = out_channels = 8          # -> E = O = 4 per head
    seq_len_q = seq_len_kv = 16
    modes = 4
    B = 4
    H = num_heads
    E = in_channels // num_heads
    O = out_channels // num_heads

    # deterministic mode selection ('else' branch = lowest modes)
    index_q = get_frequency_modes(seq_len_q, modes=modes,
                                  mode_select_method='lowest')
    index_kv = get_frequency_modes(seq_len_kv, modes=modes,
                                   mode_select_method='lowest')

    key = jax.random.PRNGKey(0)
    kq, kk, kv, kw1, kw2 = jax.random.split(key, 5)
    q = jax.random.normal(kq, (B, seq_len_q, H, E), jnp.float32)
    k = jax.random.normal(kk, (B, seq_len_kv, H, E), jnp.float32)
    v = jax.random.normal(kv, (B, seq_len_kv, H, E), jnp.float32)

    # weights: scale * torch.rand(H, in/H, out/H, Mq, dtype=cfloat)
    scale = 1.0 / (in_channels * out_channels)
    w_re = scale * jax.random.uniform(kw1, (H, E, O, len(index_q)), jnp.float32)
    w_im = scale * jax.random.uniform(kw2, (H, E, O, len(index_q)), jnp.float32)

    y, _ = fourier_cross_attention(q, k, v, w_re, w_im, index_q, index_kv)
    y = jax.block_until_ready(y)

    y_ref = reference_forward(q, k, v, index_q, index_kv, w_re, w_im)
    err = float(jnp.max(jnp.abs(y - y_ref)))
    assert err < 1e-3, f"max abs err {err}"
    print("KERNEL_OK")
</pallas_src>

<mosaic_0001>
module attributes {stable_mosaic.version = 11 : i64} {
  func.func @_fca_kernel(%arg0: i32, %arg1: memref<2x16x8xf32, #tpu.memory_space<vmem>>, %arg2: memref<2x16x8xf32, #tpu.memory_space<vmem>>, %arg3: memref<2x16x8xf32, #tpu.memory_space<vmem>>, %arg4: memref<2x8x16xf32, #tpu.memory_space<vmem>>, %arg5: memref<2x8x16xf32, #tpu.memory_space<vmem>>, %arg6: memref<2x4x8x4xf32, #tpu.memory_space<vmem>>, %arg7: memref<16x8xf32, #tpu.memory_space<vmem>>, %arg8: memref<2x16x8xf32, #tpu.memory_space<vmem>>) attributes {dimension_semantics = [#tpu.dimension_semantics<parallel>], iteration_bounds = array<i64: 2>, scalar_prefetch = 0 : i64, scratch_operands = 0 : i64, tpu.core_type = #tpu.core_type<tc>, window_params = [{transform_indices = @transform_0, window_bounds = array<i64: 2, 16, 8>}, {transform_indices = @transform_1, window_bounds = array<i64: 2, 16, 8>}, {transform_indices = @transform_2, window_bounds = array<i64: 2, 16, 8>}, {pipeline_mode = #tpu.pipeline_mode<synchronous>, transform_indices = @transform_3, window_bounds = array<i64: 2, 8, 16>}, {pipeline_mode = #tpu.pipeline_mode<synchronous>, transform_indices = @transform_4, window_bounds = array<i64: 2, 8, 16>}, {pipeline_mode = #tpu.pipeline_mode<synchronous>, transform_indices = @transform_5, window_bounds = array<i64: 2, 4, 8, 4>}, {pipeline_mode = #tpu.pipeline_mode<synchronous>, transform_indices = @transform_6, window_bounds = array<i64: 16, 8>}, {transform_indices = @transform_7, window_bounds = array<i64: 2, 16, 8>}]} {
    %c0 = arith.constant 0 : index
    %c0_0 = arith.constant 0 : index
    %c0_1 = arith.constant 0 : index
    %0 = vector.load %arg4[%c0, %c0_0, %c0_1] : memref<2x8x16xf32, #tpu.memory_space<vmem>>, vector<2x8x16xf32>
    %c0_2 = arith.constant 0 : index
    %c0_3 = arith.constant 0 : index
    %c0_4 = arith.constant 0 : index
    %1 = vector.load %arg1[%c0_2, %c0_3, %c0_4] : memref<2x16x8xf32, #tpu.memory_space<vmem>>, vector<2x16x8xf32>
    "tpu.trace_start"() <{level = 10 : i32, message = "bml,bld->bmd"}> : () -> ()
    %cst = arith.constant dense<0.000000e+00> : vector<2x8x8xf32>
    %2 = tpu.matmul %0, %1, %cst {dimension_numbers = #tpu.dot_dimension_numbers<[2], [1], [1], [2], [0, 0, 0, 1, 1, 2], [0], [0]>} : vector<2x8x16xf32>, vector<2x16x8xf32>, vector<2x8x8xf32> -> vector<2x8x8xf32>
    "tpu.trace_stop"() : () -> ()
    %c0_5 = arith.constant 0 : index
    %c0_6 = arith.constant 0 : index
    %c0_7 = arith.constant 0 : index
    %3 = vector.load %arg5[%c0_5, %c0_6, %c0_7] : memref<2x8x16xf32, #tpu.memory_space<vmem>>, vector<2x8x16xf32>
    %c0_8 = arith.constant 0 : index
    %c0_9 = arith.constant 0 : index
    %c0_10 = arith.constant 0 : index
    %4 = vector.load %arg2[%c0_8, %c0_9, %c0_10] : memref<2x16x8xf32, #tpu.memory_space<vmem>>, vector<2x16x8xf32>
    "tpu.trace_start"() <{level = 10 : i32, message = "bml,bld->bmd"}> : () -> ()
    %cst_11 = arith.constant dense<0.000000e+00> : vector<2x8x8xf32>
    %5 = tpu.matmul %3, %4, %cst_11 {dimension_numbers = #tpu.dot_dimension_numbers<[2], [1], [1], [2], [0, 0, 0, 1, 1, 2], [0], [0]>} : vector<2x8x16xf32>, vector<2x16x8xf32>, vector<2x8x8xf32> -> vector<2x8x8xf32>
    "tpu.trace_stop"() : () -> ()
    %c0_12 = arith.constant 0 : index
    %c0_13 = arith.constant 0 : index
    %c0_14 = arith.constant 0 : index
    %6 = vector.load %arg5[%c0_12, %c0_13, %c0_14] : memref<2x8x16xf32, #tpu.memory_space<vmem>>, vector<2x8x16xf32>
    %c0_15 = arith.constant 0 : index
    %c0_16 = arith.constant 0 : index
    %c0_17 = arith.constant 0 : index
    %7 = vector.load %arg3[%c0_15, %c0_16, %c0_17] : memref<2x16x8xf32, #tpu.memory_space<vmem>>, vector<2x16x8xf32>
    "tpu.trace_start"() <{level = 10 : i32, message = "bml,bld->bmd"}> : () -> ()
    %cst_18 = arith.constant dense<0.000000e+00> : vector<2x8x8xf32>
    %8 = tpu.matmul %6, %7, %cst_18 {dimension_numbers = #tpu.dot_dimension_numbers<[2], [1], [1], [2], [0, 0, 0, 1, 1, 2], [0], [0]>} : vector<2x8x16xf32>, vector<2x16x8xf32>, vector<2x8x8xf32> -> vector<2x8x8xf32>
    "tpu.trace_stop"() : () -> ()
    %9 = vector.extract_strided_slice %2 {offsets = [0, 0, 0], sizes = [2, 4, 4], strides = [1, 1, 1]} : vector<2x8x8xf32> to vector<2x4x4xf32>
    %10 = vector.extract_strided_slice %2 {offsets = [0, 4, 0], sizes = [2, 4, 4], strides = [1, 1, 1]} : vector<2x8x8xf32> to vector<2x4x4xf32>
    %11 = vector.extract_strided_slice %5 {offsets = [0, 0, 0], sizes = [2, 4, 4], strides = [1, 1, 1]} : vector<2x8x8xf32> to vector<2x4x4xf32>
    %12 = vector.extract_strided_slice %5 {offsets = [0, 4, 0], sizes = [2, 4, 4], strides = [1, 1, 1]} : vector<2x8x8xf32> to vector<2x4x4xf32>
    %13 = vector.extract_strided_slice %8 {offsets = [0, 0, 0], sizes = [2, 4, 4], strides = [1, 1, 1]} : vector<2x8x8xf32> to vector<2x4x4xf32>
    %14 = vector.extract_strided_slice %8 {offsets = [0, 4, 0], sizes = [2, 4, 4], strides = [1, 1, 1]} : vector<2x8x8xf32> to vector<2x4x4xf32>
    "tpu.trace_start"() <{level = 10 : i32, message = "bxe,bye->bxy"}> : () -> ()
    %cst_19 = arith.constant dense<0.000000e+00> : vector<2x4x4xf32>
    %15 = tpu.matmul %9, %11, %cst_19 {dimension_numbers = #tpu.dot_dimension_numbers<[2], [2], [1], [1], [0, 0, 0, 1, 1, 1], [0], [0]>} : vector<2x4x4xf32>, vector<2x4x4xf32>, vector<2x4x4xf32> -> vector<2x4x4xf32>
    %cst_20 = arith.constant dense<0.000000e+00> : vector<2x4x4xf32>
    %16 = tpu.matmul %10, %12, %cst_20 {dimension_numbers = #tpu.dot_dimension_numbers<[2], [2], [1], [1], [0, 0, 0, 1, 1, 1], [0], [0]>} : vector<2x4x4xf32>, vector<2x4x4xf32>, vector<2x4x4xf32> -> vector<2x4x4xf32>
    "tpu.trace_stop"() : () -> ()
    %17 = arith.addf %9, %10 : vector<2x4x4xf32>
    %18 = arith.addf %11, %12 : vector<2x4x4xf32>
    "tpu.trace_start"() <{level = 10 : i32, message = "bxe,bye->bxy"}> : () -> ()
    %cst_21 = arith.constant dense<0.000000e+00> : vector<2x4x4xf32>
    %19 = tpu.matmul %17, %18, %cst_21 {dimension_numbers = #tpu.dot_dimension_numbers<[2], [2], [1], [1], [0, 0, 0, 1, 1, 1], [0], [0]>} : vector<2x4x4xf32>, vector<2x4x4xf32>, vector<2x4x4xf32> -> vector<2x4x4xf32>
    "tpu.trace_stop"() : () -> ()
    %20 = arith.subf %15, %16 : vector<2x4x4xf32>
    %21 = math.tanh %20 : vector<2x4x4xf32>
    %22 = arith.subf %19, %15 : vector<2x4x4xf32>
    %23 = arith.subf %22, %16 : vector<2x4x4xf32>
    %24 = math.tanh %23 : vector<2x4x4xf32>
    "tpu.trace_start"() <{level = 10 : i32, message = "bxy,bye->bxe"}> : () -> ()
    %cst_22 = arith.constant dense<0.000000e+00> : vector<2x4x4xf32>
    %25 = tpu.matmul %21, %13, %cst_22 {dimension_numbers = #tpu.dot_dimension_numbers<[2], [1], [1], [2], [0, 0, 0, 1, 1, 2], [0], [0]>} : vector<2x4x4xf32>, vector<2x4x4xf32>, vector<2x4x4xf32> -> vector<2x4x4xf32>
    %cst_23 = arith.constant dense<0.000000e+00> : vector<2x4x4xf32>
    %26 = tpu.matmul %24, %14, %cst_23 {dimension_numbers = #tpu.dot_dimension_numbers<[2], [1], [1], [2], [0, 0, 0, 1, 1, 2], [0], [0]>} : vector<2x4x4xf32>, vector<2x4x4xf32>, vector<2x4x4xf32> -> vector<2x4x4xf32>
    "tpu.trace_stop"() : () -> ()
    %27 = arith.addf %21, %24 : vector<2x4x4xf32>
    %28 = arith.addf %13, %14 : vector<2x4x4xf32>
    "tpu.trace_start"() <{level = 10 : i32, message = "bxy,bye->bxe"}> : () -> ()
    %cst_24 = arith.constant dense<0.000000e+00> : vector<2x4x4xf32>
    %29 = tpu.matmul %27, %28, %cst_24 {dimension_numbers = #tpu.dot_dimension_numbers<[2], [1], [1], [2], [0, 0, 0, 1, 1, 2], [0], [0]>} : vector<2x4x4xf32>, vector<2x4x4xf32>, vector<2x4x4xf32> -> vector<2x4x4xf32>
    "tpu.trace_stop"() : () -> ()
    %30 = arith.subf %25, %26 : vector<2x4x4xf32>
    %31 = arith.subf %29, %25 : vector<2x4x4xf32>
    %32 = arith.subf %31, %26 : vector<2x4x4xf32>
    %33 = vector.extract_strided_slice %30 {offsets = [0, 0, 0], sizes = [1, 4, 4], strides = [1, 1, 1]} : vector<2x4x4xf32> to vector<1x4x4xf32>
    %34 = vector.shape_cast %33 : vector<1x4x4xf32> to vector<4x4xf32>
    %35 = vector.shape_cast %34 : vector<4x4xf32> to vector<4x1x4xf32>
    %36 = vector.extract_strided_slice %30 {offsets = [1, 0, 0], sizes = [1, 4, 4], strides = [1, 1, 1]} : vector<2x4x4xf32> to vector<1x4x4xf32>
    %37 = vector.shape_cast %36 : vector<1x4x4xf32> to vector<4x4xf32>
    %38 = vector.shape_cast %37 : vector<4x4xf32> to vector<4x1x4xf32>
    %39 = vector.extract_strided_slice %32 {offsets = [0, 0, 0], sizes = [1, 4, 4], strides = [1, 1, 1]} : vector<2x4x4xf32> to vector<1x4x4xf32>
    %40 = vector.shape_cast %39 : vector<1x4x4xf32> to vector<4x4xf32>
    %41 = vector.shape_cast %40 : vector<4x4xf32> to vector<4x1x4xf32>
    %42 = vector.extract_strided_slice %32 {offsets = [1, 0, 0], sizes = [1, 4, 4], strides = [1, 1, 1]} : vector<2x4x4xf32> to vector<1x4x4xf32>
    %43 = vector.shape_cast %42 : vector<1x4x4xf32> to vector<4x4xf32>
    %44 = vector.shape_cast %43 : vector<4x4xf32> to vector<4x1x4xf32>
    %45 = tpu.concatenate %35, %38, %41, %44 in 1 : vector<4x1x4xf32>, vector<4x1x4xf32>, vector<4x1x4xf32>, vector<4x1x4xf32> -> vector<4x4x4xf32>
    %c0_25 = arith.constant 0 : index
    %c0_26 = arith.constant 0 : index
    %c0_27 = arith.constant 0 : index
    %c0_28 = arith.constant 0 : index
    %46 = vector.load %arg6[%c0_25, %c0_26, %c0_27, %c0_28] : memref<2x4x8x4xf32, #tpu.memory_space<vmem>>, vector<1x4x8x4xf32>
    %47 = vector.shape_cast %46 : vector<1x4x8x4xf32> to vector<4x8x4xf32>
    "tpu.trace_start"() <{level = 10 : i32, message = "mre,moe->mro"}> : () -> ()
    %cst_29 = arith.constant dense<0.000000e+00> : vector<4x4x8xf32>
    %48 = tpu.matmul %45, %47, %cst_29 {dimension_numbers = #tpu.dot_dimension_numbers<[2], [2], [1], [1], [0, 0, 0, 1, 1, 1], [0], [0]>} : vector<4x4x4xf32>, vector<4x8x4xf32>, vector<4x4x8xf32> -> vector<4x4x8xf32>
    "tpu.trace_stop"() : () -> ()
    %49 = vector.extract_strided_slice %2 {offsets = [0, 0, 4], sizes = [2, 4, 4], strides = [1, 1, 1]} : vector<2x8x8xf32> to vector<2x4x4xf32>
    %50 = vector.extract_strided_slice %2 {offsets = [0, 4, 4], sizes = [2, 4, 4], strides = [1, 1, 1]} : vector<2x8x8xf32> to vector<2x4x4xf32>
    %51 = vector.extract_strided_slice %5 {offsets = [0, 0, 4], sizes = [2, 4, 4], strides = [1, 1, 1]} : vector<2x8x8xf32> to vector<2x4x4xf32>
    %52 = vector.extract_strided_slice %5 {offsets = [0, 4, 4], sizes = [2, 4, 4], strides = [1, 1, 1]} : vector<2x8x8xf32> to vector<2x4x4xf32>
    %53 = vector.extract_strided_slice %8 {offsets = [0, 0, 4], sizes = [2, 4, 4], strides = [1, 1, 1]} : vector<2x8x8xf32> to vector<2x4x4xf32>
    %54 = vector.extract_strided_slice %8 {offsets = [0, 4, 4], sizes = [2, 4, 4], strides = [1, 1, 1]} : vector<2x8x8xf32> to vector<2x4x4xf32>
    "tpu.trace_start"() <{level = 10 : i32, message = "bxe,bye->bxy"}> : () -> ()
    %cst_30 = arith.constant dense<0.000000e+00> : vector<2x4x4xf32>
    %55 = tpu.matmul %49, %51, %cst_30 {dimension_numbers = #tpu.dot_dimension_numbers<[2], [2], [1], [1], [0, 0, 0, 1, 1, 1], [0], [0]>} : vector<2x4x4xf32>, vector<2x4x4xf32>, vector<2x4x4xf32> -> vector<2x4x4xf32>
    %cst_31 = arith.constant dense<0.000000e+00> : vector<2x4x4xf32>
    %56 = tpu.matmul %50, %52, %cst_31 {dimension_numbers = #tpu.dot_dimension_numbers<[2], [2], [1], [1], [0, 0, 0, 1, 1, 1], [0], [0]>} : vector<2x4x4xf32>, vector<2x4x4xf32>, vector<2x4x4xf32> -> vector<2x4x4xf32>
    "tpu.trace_stop"() : () -> ()
    %57 = arith.addf %49, %50 : vector<2x4x4xf32>
    %58 = arith.addf %51, %52 : vector<2x4x4xf32>
    "tpu.trace_start"() <{level = 10 : i32, message = "bxe,bye->bxy"}> : () -> ()
    %cst_32 = arith.constant dense<0.000000e+00> : vector<2x4x4xf32>
    %59 = tpu.matmul %57, %58, %cst_32 {dimension_numbers = #tpu.dot_dimension_numbers<[2], [2], [1], [1], [0, 0, 0, 1, 1, 1], [0], [0]>} : vector<2x4x4xf32>, vector<2x4x4xf32>, vector<2x4x4xf32> -> vector<2x4x4xf32>
    "tpu.trace_stop"() : () -> ()
    %60 = arith.subf %55, %56 : vector<2x4x4xf32>
    %61 = math.tanh %60 : vector<2x4x4xf32>
    %62 = arith.subf %59, %55 : vector<2x4x4xf32>
    %63 = arith.subf %62, %56 : vector<2x4x4xf32>
    %64 = math.tanh %63 : vector<2x4x4xf32>
    "tpu.trace_start"() <{level = 10 : i32, message = "bxy,bye->bxe"}> : () -> ()
    %cst_33 = arith.constant dense<0.000000e+00> : vector<2x4x4xf32>
    %65 = tpu.matmul %61, %53, %cst_33 {dimension_numbers = #tpu.dot_dimension_numbers<[2], [1], [1], [2], [0, 0, 0, 1, 1, 2], [0], [0]>} : vector<2x4x4xf32>, vector<2x4x4xf32>, vector<2x4x4xf32> -> vector<2x4x4xf32>
    %cst_34 = arith.constant dense<0.000000e+00> : vector<2x4x4xf32>
    %66 = tpu.matmul %64, %54, %cst_34 {dimension_numbers = #tpu.dot_dimension_numbers<[2], [1], [1], [2], [0, 0, 0, 1, 1, 2], [0], [0]>} : vector<2x4x4xf32>, vector<2x4x4xf32>, vector<2x4x4xf32> -> vector<2x4x4xf32>
    "tpu.trace_stop"() : () -> ()
    %67 = arith.addf %61, %64 : vector<2x4x4xf32>
    %68 = arith.addf %53, %54 : vector<2x4x4xf32>
    "tpu.trace_start"() <{level = 10 : i32, message = "bxy,bye->bxe"}> : () -> ()
    %cst_35 = arith.constant dense<0.000000e+00> : vector<2x4x4xf32>
    %69 = tpu.matmul %67, %68, %cst_35 {dimension_numbers = #tpu.dot_dimension_numbers<[2], [1], [1], [2], [0, 0, 0, 1, 1, 2], [0], [0]>} : vector<2x4x4xf32>, vector<2x4x4xf32>, vector<2x4x4xf32> -> vector<2x4x4xf32>
    "tpu.trace_stop"() : () -> ()
    %70 = arith.subf %65, %66 : vector<2x4x4xf32>
    %71 = arith.subf %69, %65 : vector<2x4x4xf32>
    %72 = arith.subf %71, %66 : vector<2x4x4xf32>
    %73 = vector.extract_strided_slice %70 {offsets = [0, 0, 0], sizes = [1, 4, 4], strides = [1, 1, 1]} : vector<2x4x4xf32> to vector<1x4x4xf32>
    %74 = vector.shape_cast %73 : vector<1x4x4xf32> to vector<4x4xf32>
    %75 = vector.shape_cast %74 : vector<4x4xf32> to vector<4x1x4xf32>
    %76 = vector.extract_strided_slice %70 {offsets = [1, 0, 0], sizes = [1, 4, 4], strides = [1, 1, 1]} : vector<2x4x4xf32> to vector<1x4x4xf32>
    %77 = vector.shape_cast %76 : vector<1x4x4xf32> to vector<4x4xf32>
    %78 = vector.shape_cast %77 : vector<4x4xf32> to vector<4x1x4xf32>
    %79 = vector.extract_strided_slice %72 {offsets = [0, 0, 0], sizes = [1, 4, 4], strides = [1, 1, 1]} : vector<2x4x4xf32> to vector<1x4x4xf32>
    %80 = vector.shape_cast %79 : vector<1x4x4xf32> to vector<4x4xf32>
    %81 = vector.shape_cast %80 : vector<4x4xf32> to vector<4x1x4xf32>
    %82 = vector.extract_strided_slice %72 {offsets = [1, 0, 0], sizes = [1, 4, 4], strides = [1, 1, 1]} : vector<2x4x4xf32> to vector<1x4x4xf32>
    %83 = vector.shape_cast %82 : vector<1x4x4xf32> to vector<4x4xf32>
    %84 = vector.shape_cast %83 : vector<4x4xf32> to vector<4x1x4xf32>
    %85 = tpu.concatenate %75, %78, %81, %84 in 1 : vector<4x1x4xf32>, vector<4x1x4xf32>, vector<4x1x4xf32>, vector<4x1x4xf32> -> vector<4x4x4xf32>
    %c1 = arith.constant 1 : index
    %c0_36 = arith.constant 0 : index
    %c0_37 = arith.constant 0 : index
    %c0_38 = arith.constant 0 : index
    %86 = vector.load %arg6[%c1, %c0_36, %c0_37, %c0_38] : memref<2x4x8x4xf32, #tpu.memory_space<vmem>>, vector<1x4x8x4xf32>
    %87 = vector.shape_cast %86 : vector<1x4x8x4xf32> to vector<4x8x4xf32>
    "tpu.trace_start"() <{level = 10 : i32, message = "mre,moe->mro"}> : () -> ()
    %cst_39 = arith.constant dense<0.000000e+00> : vector<4x4x8xf32>
    %88 = tpu.matmul %85, %87, %cst_39 {dimension_numbers = #tpu.dot_dimension_numbers<[2], [2], [1], [1], [0, 0, 0, 1, 1, 1], [0], [0]>} : vector<4x4x4xf32>, vector<4x8x4xf32>, vector<4x4x8xf32> -> vector<4x4x8xf32>
    "tpu.trace_stop"() : () -> ()
    %c0_40 = arith.constant 0 : index
    %c0_41 = arith.constant 0 : index
    %89 = vector.load %arg7[%c0_40, %c0_41] : memref<16x8xf32, #tpu.memory_space<vmem>>, vector<16x8xf32>
    %90 = vector.extract_strided_slice %48 {offsets = [0, 0, 0], sizes = [4, 1, 4], strides = [1, 1, 1]} : vector<4x4x8xf32> to vector<4x1x4xf32>
    %91 = vector.shape_cast %90 : vector<4x1x4xf32> to vector<4x4xf32>
    %92 = vector.extract_strided_slice %48 {offsets = [0, 2, 4], sizes = [4, 1, 4], strides = [1, 1, 1]} : vector<4x4x8xf32> to vector<4x1x4xf32>
    %93 = vector.shape_cast %92 : vector<4x1x4xf32> to vector<4x4xf32>
    %94 = arith.subf %91, %93 : vector<4x4xf32>
    %95 = vector.extract_strided_slice %48 {offsets = [0, 0, 4], sizes = [4, 1, 4], strides = [1, 1, 1]} : vector<4x4x8xf32> to vector<4x1x4xf32>
    %96 = vector.shape_cast %95 : vector<4x1x4xf32> to vector<4x4xf32>
    %97 = vector.extract_strided_slice %48 {offsets = [0, 2, 0], sizes = [4, 1, 4], strides = [1, 1, 1]} : vector<4x4x8xf32> to vector<4x1x4xf32>
    %98 = vector.shape_cast %97 : vector<4x1x4xf32> to vector<4x4xf32>
    %99 = arith.addf %96, %98 : vector<4x4xf32>
    %100 = tpu.concatenate %94, %99 in 0 : vector<4x4xf32>, vector<4x4xf32> -> vector<8x4xf32>
    %101 = vector.extract_strided_slice %88 {offsets = [0, 0, 0], sizes = [4, 1, 4], strides = [1, 1, 1]} : vector<4x4x8xf32> to vector<4x1x4xf32>
    %102 = vector.shape_cast %101 : vector<4x1x4xf32> to vector<4x4xf32>
    %103 = vector.extract_strided_slice %88 {offsets = [0, 2, 4], sizes = [4, 1, 4], strides = [1, 1, 1]} : vector<4x4x8xf32> to vector<4x1x4xf32>
    %104 = vector.shape_cast %103 : vector<4x1x4xf32> to vector<4x4xf32>
    %105 = arith.subf %102, %104 : vector<4x4xf32>
    %106 = vector.extract_strided_slice %88 {offsets = [0, 0, 4], sizes = [4, 1, 4], strides = [1, 1, 1]} : vector<4x4x8xf32> to vector<4x1x4xf32>
    %107 = vector.shape_cast %106 : vector<4x1x4xf32> to vector<4x4xf32>
    %108 = vector.extract_strided_slice %88 {offsets = [0, 2, 0], sizes = [4, 1, 4], strides = [1, 1, 1]} : vector<4x4x8xf32> to vector<4x1x4xf32>
    %109 = vector.shape_cast %108 : vector<4x1x4xf32> to vector<4x4xf32>
    %110 = arith.addf %107, %109 : vector<4x4xf32>
    %111 = tpu.concatenate %105, %110 in 0 : vector<4x4xf32>, vector<4x4xf32> -> vector<8x4xf32>
    %112 = tpu.concatenate %100, %111 in 1 : vector<8x4xf32>, vector<8x4xf32> -> vector<8x8xf32>
    %cst_42 = arith.constant dense<0.000000e+00> : vector<16x8xf32>
    %113 = tpu.matmul %89, %112, %cst_42 {dimension_numbers = #tpu.dot_dimension_numbers<[1], [0], [0], [1], [0, 0, 1, 1], [], []>} : vector<16x8xf32>, vector<8x8xf32>, vector<16x8xf32> -> vector<16x8xf32>
    %c0_43 = arith.constant 0 : index
    %c0_44 = arith.constant 0 : index
    %c0_45 = arith.constant 0 : index
    %114 = vector.load %arg8[%c0_43, %c0_44, %c0_45] : memref<2x16x8xf32, #tpu.memory_space<vmem>>, vector<1x16x8xf32>
    %115 = vector.shape_cast %114 : vector<1x16x8xf32> to vector<16x8xf32>
    %116 = vector.shape_cast %113 : vector<16x8xf32> to vector<1x16x8xf32>
    tpu.vector_store %arg8[%c0_43, %c0_44, %c0_45], %116 {strides = array<i32>} : memref<2x16x8xf32, #tpu.memory_space<vmem>>, vector<1x16x8xf32>,
    %117 = vector.extract_strided_slice %48 {offsets = [0, 1, 0], sizes = [4, 1, 4], strides = [1, 1, 1]} : vector<4x4x8xf32> to vector<4x1x4xf32>
    %118 = vector.shape_cast %117 : vector<4x1x4xf32> to vector<4x4xf32>
    %119 = vector.extract_strided_slice %48 {offsets = [0, 3, 4], sizes = [4, 1, 4], strides = [1, 1, 1]} : vector<4x4x8xf32> to vector<4x1x4xf32>
    %120 = vector.shape_cast %119 : vector<4x1x4xf32> to vector<4x4xf32>
    %121 = arith.subf %118, %120 : vector<4x4xf32>
    %122 = vector.extract_strided_slice %48 {offsets = [0, 1, 4], sizes = [4, 1, 4], strides = [1, 1, 1]} : vector<4x4x8xf32> to vector<4x1x4xf32>
    %123 = vector.shape_cast %122 : vector<4x1x4xf32> to vector<4x4xf32>
    %124 = vector.extract_strided_slice %48 {offsets = [0, 3, 0], sizes = [4, 1, 4], strides = [1, 1, 1]} : vector<4x4x8xf32> to vector<4x1x4xf32>
    %125 = vector.shape_cast %124 : vector<4x1x4xf32> to vector<4x4xf32>
    %126 = arith.addf %123, %125 : vector<4x4xf32>
    %127 = tpu.concatenate %121, %126 in 0 : vector<4x4xf32>, vector<4x4xf32> -> vector<8x4xf32>
    %128 = vector.extract_strided_slice %88 {offsets = [0, 1, 0], sizes = [4, 1, 4], strides = [1, 1, 1]} : vector<4x4x8xf32> to vector<4x1x4xf32>
    %129 = vector.shape_cast %128 : vector<4x1x4xf32> to vector<4x4xf32>
    %130 = vector.extract_strided_slice %88 {offsets = [0, 3, 4], sizes = [4, 1, 4], strides = [1, 1, 1]} : vector<4x4x8xf32> to vector<4x1x4xf32>
    %131 = vector.shape_cast %130 : vector<4x1x4xf32> to vector<4x4xf32>
    %132 = arith.subf %129, %131 : vector<4x4xf32>
    %133 = vector.extract_strided_slice %88 {offsets = [0, 1, 4], sizes = [4, 1, 4], strides = [1, 1, 1]} : vector<4x4x8xf32> to vector<4x1x4xf32>
    %134 = vector.shape_cast %133 : vector<4x1x4xf32> to vector<4x4xf32>
    %135 = vector.extract_strided_slice %88 {offsets = [0, 3, 0], sizes = [4, 1, 4], strides = [1, 1, 1]} : vector<4x4x8xf32> to vector<4x1x4xf32>
    %136 = vector.shape_cast %135 : vector<4x1x4xf32> to vector<4x4xf32>
    %137 = arith.addf %134, %136 : vector<4x4xf32>
    %138 = tpu.concatenate %132, %137 in 0 : vector<4x4xf32>, vector<4x4xf32> -> vector<8x4xf32>
    %139 = tpu.concatenate %127, %138 in 1 : vector<8x4xf32>, vector<8x4xf32> -> vector<8x8xf32>
    %cst_46 = arith.constant dense<0.000000e+00> : vector<16x8xf32>
    %140 = tpu.matmul %89, %139, %cst_46 {dimension_numbers = #tpu.dot_dimension_numbers<[1], [0], [0], [1], [0, 0, 1, 1], [], []>} : vector<16x8xf32>, vector<8x8xf32>, vector<16x8xf32> -> vector<16x8xf32>
    %c1_47 = arith.constant 1 : index
    %c0_48 = arith.constant 0 : index
    %c0_49 = arith.constant 0 : index
    %141 = vector.load %arg8[%c1_47, %c0_48, %c0_49] : memref<2x16x8xf32, #tpu.memory_space<vmem>>, vector<1x16x8xf32>
    %142 = vector.shape_cast %141 : vector<1x16x8xf32> to vector<16x8xf32>
    %143 = vector.shape_cast %140 : vector<16x8xf32> to vector<1x16x8xf32>
    tpu.vector_store %arg8[%c1_47, %c0_48, %c0_49], %143 {strides = array<i32>} : memref<2x16x8xf32, #tpu.memory_space<vmem>>, vector<1x16x8xf32>,
    return
  }
  func.func @transform_0(%arg0: i32) -> (i32, i32, i32) {
    %c0_i32 = arith.constant 0 : i32
    %c0_i32_0 = arith.constant 0 : i32
    %c0_i32_1 = arith.constant 0 : i32
    return %arg0, %c0_i32, %c0_i32_0 : i32, i32, i32
  }
  func.func @transform_1(%arg0: i32) -> (i32, i32, i32) {
    %c0_i32 = arith.constant 0 : i32
    %c0_i32_0 = arith.constant 0 : i32
    %c0_i32_1 = arith.constant 0 : i32
    return %arg0, %c0_i32, %c0_i32_0 : i32, i32, i32
  }
  func.func @transform_2(%arg0: i32) -> (i32, i32, i32) {
    %c0_i32 = arith.constant 0 : i32
    %c0_i32_0 = arith.constant 0 : i32
    %c0_i32_1 = arith.constant 0 : i32
    return %arg0, %c0_i32, %c0_i32_0 : i32, i32, i32
  }
  func.func @transform_3(%arg0: i32) -> (i32, i32, i32) {
    %c0_i32 = arith.constant 0 : i32
    %c0_i32_0 = arith.constant 0 : i32
    %c0_i32_1 = arith.constant 0 : i32
    %c0_i32_2 = arith.constant 0 : i32
    return %c0_i32, %c0_i32_0, %c0_i32_1 : i32, i32, i32
  }
  func.func @transform_4(%arg0: i32) -> (i32, i32, i32) {
    %c0_i32 = arith.constant 0 : i32
    %c0_i32_0 = arith.constant 0 : i32
    %c0_i32_1 = arith.constant 0 : i32
    %c0_i32_2 = arith.constant 0 : i32
    return %c0_i32, %c0_i32_0, %c0_i32_1 : i32, i32, i32
  }
  func.func @transform_5(%arg0: i32) -> (i32, i32, i32, i32) {
    %c0_i32 = arith.constant 0 : i32
    %c0_i32_0 = arith.constant 0 : i32
    %c0_i32_1 = arith.constant 0 : i32
    %c0_i32_2 = arith.constant 0 : i32
    %c0_i32_3 = arith.constant 0 : i32
    return %c0_i32, %c0_i32_0, %c0_i32_1, %c0_i32_2 : i32, i32, i32, i32
  }
  func.func @transform_6(%arg0: i32) -> (i32, i32) {
    %c0_i32 = arith.constant 0 : i32
    %c0_i32_0 = arith.constant 0 : i32
    %c0_i32_1 = arith.constant 0 : i32
    return %c0_i32, %c0_i32_0 : i32, i32
  }
  func.func @transform_7(%arg0: i32) -> (i32, i32, i32) {
    %c0_i32 = arith.constant 0 : i32
    %c0_i32_0 = arith.constant 0 : i32
    %c0_i32_1 = arith.constant 0 : i32
    return %arg0, %c0_i32, %c0_i32_0 : i32, i32, i32
  }
}

</mosaic_0001>

<llo_original>
// kernel: tpu_custom_call.1
$region0: #{tpu_custom_call.1}
  #allocation0 [shape = 'u32[]', space=smem, size = 0x4, offset = 0x4, fixed_abs, tag = 'smem constant byte address 0x4 - core index']
  #allocation1 [shape = 'u32[144,128]{1,0:T(1,128)}', space=vmem, size = 0x12000, scoped, tag = 'internal scratch']
  %s0 = inlined_call_operand.vmem [shape: f32[4,16,8], index: 0, kind: input, shape index: {}]
  %s1 = inlined_call_operand.vmem [shape: f32[4,16,8], index: 1, kind: input, shape index: {}]
  %s2 = inlined_call_operand.vmem [shape: f32[4,16,8], index: 2, kind: input, shape index: {}]
  %s3 = inlined_call_operand.vmem [shape: f32[2,8,16], index: 3, kind: input, shape index: {}]
  %s4 = inlined_call_operand.vmem [shape: f32[2,8,16], index: 4, kind: input, shape index: {}]
  %s5 = inlined_call_operand.vmem [shape: f32[2,4,8,4], index: 5, kind: input, shape index: {}]
  %s6 = inlined_call_operand.vmem [shape: f32[16,8], index: 6, kind: input, shape index: {}]
  %s7 = inlined_call_operand.vmem [shape: f32[4,16,8], index: 7, kind: output, shape index: {}]
  %s8 = sld [smem:[#allocation0]]
  $region61: #{tpu_custom_call.1} parent=0
    _
  %s10 = ssub.s32 1, %s8
  %s11 = scalar_select 0, %s10, %s8
  loop: start=0, step=1, limit=4
  $region2: #{tpu_custom_call.1} parent=0 // loop_pre_header
    _
  $region3: #{tpu_custom_call.1} parent=0 // loop_header
    %s13 = sphi 0, %s17
    %p14 = scmp.ge.s32.totalorder %s13, 4
    %s23 = sphi 0, %s25
    %s26 = sphi 0, %s23
    %s27 = sphi 0, %s26
    %s43 = sphi 0, %s27
    %s49 = sphi 0, %s51
    %s52 = sphi 0, %s49
    %s53 = sphi 0, %s52
    %s69 = sphi 0, %s53
    %s75 = sphi 0, %s77
    %s78 = sphi 0, %s75
    %s79 = sphi 0, %s78
    %s95 = sphi 0, %s79
    %s99 = sphi 0, %s99
    %s101 = sphi 0, %s99
    %s102 = sphi 0, %s101
    %s116 = sphi 0, %s102
    %s120 = sphi 0, %s120
    %s122 = sphi 0, %s120
    %s123 = sphi 0, %s122
    %s137 = sphi 0, %s123
    %s141 = sphi 0, %s141
    %s143 = sphi 0, %s141
    %s144 = sphi 0, %s143
    %s158 = sphi 0, %s144
    %s162 = sphi 0, %s162
    %s164 = sphi 0, %s162
    %s165 = sphi 0, %s164
    %s179 = sphi 0, %s165
    %s185 = sphi 0, %s187
    %s188 = sphi 0, %s185
    %s189 = sphi 0, %s188
    %s205 = sphi 0, %s189
  $region4: #{tpu_custom_call.1} parent=0 // loop_header_branch
    %16 = sbr.rel (%p14) target = $region8
  $region5: #{tpu_custom_call.1} parent=0 // loop_body
    %s18 = ssub.s32 %s13, 1
    %s19 = ssub.s32 %s13, 2
    %s20 = sadd.s32 %s13, 1
    %s21 = ssub.s32 %s13, %s20
    %p22 = scmp.eq.s32.totalorder %s21, 0
    %s24 = sadd.s32 %s23, 1
    %s25 = scalar_select %p22, %s23, %s24
    %p28 = pneg %p22
    %p29 = scmp.eq.s32.totalorder %s13, 1
    %p30 = por %p28, %p29
    %p31 = scmp.ne.s32.totalorder %s23, %s26
    %p32 = scmp.eq.s32.totalorder %s13, 0
    %p33 = por %p31, %p32
    %p34 = scmp.ne.s32.totalorder %s23, %s26
    %p35 = scmp.eq.s32.totalorder %s18, 1
    %p36 = por %p34, %p35
    %p37 = scmp.ne.s32.totalorder %s26, %s27
    %p38 = scmp.eq.s32.totalorder %s18, 0
    %p39 = por %p37, %p38
    %p40 = scmp.ne.s32.totalorder %s26, %s27
    %p41 = scmp.eq.s32.totalorder %s19, 1
    %p42 = por %p40, %p41
    %p44 = scmp.ne.s32.totalorder %s27, %s43
    %p45 = scmp.eq.s32.totalorder %s19, 0
    %p46 = por %p44, %p45
    %s47 = ssub.s32 %s13, %s20
    %p48 = scmp.eq.s32.totalorder %s47, 0
    %s50 = sadd.s32 %s49, 1
    %s51 = scalar_select %p48, %s49, %s50
    %p54 = pneg %p48
    %p55 = scmp.eq.s32.totalorder %s13, 1
    %p56 = por %p54, %p55
    %p57 = scmp.ne.s32.totalorder %s49, %s52
    %p58 = scmp.eq.s32.totalorder %s13, 0
    %p59 = por %p57, %p58
    %p60 = scmp.ne.s32.totalorder %s49, %s52
    %p61 = scmp.eq.s32.totalorder %s18, 1
    %p62 = por %p60, %p61
    %p63 = scmp.ne.s32.totalorder %s52, %s53
    %p64 = scmp.eq.s32.totalorder %s18, 0
    %p65 = por %p63, %p64
    %p66 = scmp.ne.s32.totalorder %s52, %s53
    %p67 = scmp.eq.s32.totalorder %s19, 1
    %p68 = por %p66, %p67
    %p70 = scmp.ne.s32.totalorder %s53, %s69
    %p71 = scmp.eq.s32.totalorder %s19, 0
    %p72 = por %p70, %p71
    %s73 = ssub.s32 %s13, %s20
    %p74 = scmp.eq.s32.totalorder %s73, 0
    %s76 = sadd.s32 %s75, 1
    %s77 = scalar_select %p74, %s75, %s76
    %p80 = pneg %p74
    %p81 = scmp.eq.s32.totalorder %s13, 1
    %p82 = por %p80, %p81
    %p83 = scmp.ne.s32.totalorder %s75, %s78
    %p84 = scmp.eq.s32.totalorder %s13, 0
    %p85 = por %p83, %p84
    %p86 = scmp.ne.s32.totalorder %s75, %s78
    %p87 = scmp.eq.s32.totalorder %s18, 1
    %p88 = por %p86, %p87
    %p89 = scmp.ne.s32.totalorder %s78, %s79
    %p90 = scmp.eq.s32.totalorder %s18, 0
    %p91 = por %p89, %p90
    %p92 = scmp.ne.s32.totalorder %s78, %s79
    %p93 = scmp.eq.s32.totalorder %s19, 1
    %p94 = por %p92, %p93
    %p96 = scmp.ne.s32.totalorder %s79, %s95
    %p97 = scmp.eq.s32.totalorder %s19, 0
    %p98 = por %p96, %p97
    %s100 = sadd.s32 %s99, 1
    %p103 = scmp.eq.s32.totalorder %s13, 1
    %p104 = scmp.ne.s32.totalorder %s99, %s101
    %p105 = scmp.eq.s32.totalorder %s13, 0
    %p106 = por %p104, %p105
    %p107 = scmp.ne.s32.totalorder %s99, %s101
    %p108 = scmp.eq.s32.totalorder %s18, 1
    %p109 = por %p107, %p108
    %p110 = scmp.ne.s32.totalorder %s101, %s102
    %p111 = scmp.eq.s32.totalorder %s18, 0
    %p112 = por %p110, %p111
    %p113 = scmp.ne.s32.totalorder %s101, %s102
    %p114 = scmp.eq.s32.totalorder %s19, 1
    %p115 = por %p113, %p114
    %p117 = scmp.ne.s32.totalorder %s102, %s116
    %p118 = scmp.eq.s32.totalorder %s19, 0
    %p119 = por %p117, %p118
    %s121 = sadd.s32 %s120, 1
    %p124 = scmp.eq.s32.totalorder %s13, 1
    %p125 = scmp.ne.s32.totalorder %s120, %s122
    %p126 = scmp.eq.s32.totalorder %s13, 0
    %p127 = por %p125, %p126
    %p128 = scmp.ne.s32.totalorder %s120, %s122
    %p129 = scmp.eq.s32.totalorder %s18, 1
    %p130 = por %p128, %p129
    %p131 = scmp.ne.s32.totalorder %s122, %s123
    %p132 = scmp.eq.s32.totalorder %s18, 0
    %p133 = por %p131, %p132
    %p134 = scmp.ne.s32.totalorder %s122, %s123
    %p135 = scmp.eq.s32.totalorder %s19, 1
    %p136 = por %p134, %p135
    %p138 = scmp.ne.s32.totalorder %s123, %s137
    %p139 = scmp.eq.s32.totalorder %s19, 0
    %p140 = por %p138, %p139
    %s142 = sadd.s32 %s141, 1
    %p145 = scmp.eq.s32.totalorder %s13, 1
    %p146 = scmp.ne.s32.totalorder %s141, %s143
    %p147 = scmp.eq.s32.totalorder %s13, 0
    %p148 = por %p146, %p147
    %p149 = scmp.ne.s32.totalorder %s141, %s143
    %p150 = scmp.eq.s32.totalorder %s18, 1
    %p151 = por %p149, %p150
    %p152 = scmp.ne.s32.totalorder %s143, %s144
    %p153 = scmp.eq.s32.totalorder %s18, 0
    %p154 = por %p152, %p153
    %p155 = scmp.ne.s32.totalorder %s143, %s144
    %p156 = scmp.eq.s32.totalorder %s19, 1
    %p157 = por %p155, %p156
    %p159 = scmp.ne.s32.totalorder %s144, %s158
    %p160 = scmp.eq.s32.totalorder %s19, 0
    %p161 = por %p159, %p160
    %s163 = sadd.s32 %s162, 1
    %p166 = scmp.eq.s32.totalorder %s13, 1
    %p167 = scmp.ne.s32.totalorder %s162, %s164
    %p168 = scmp.eq.s32.totalorder %s13, 0
    %p169 = por %p167, %p168
    %p170 = scmp.ne.s32.totalorder %s162, %s164
    %p171 = scmp.eq.s32.totalorder %s18, 1
    %p172 = por %p170, %p171
    %p173 = scmp.ne.s32.totalorder %s164, %s165
    %p174 = scmp.eq.s32.totalorder %s18, 0
    %p175 = por %p173, %p174
    %p176 = scmp.ne.s32.totalorder %s164, %s165
    %p177 = scmp.eq.s32.totalorder %s19, 1
    %p178 = por %p176, %p177
    %p180 = scmp.ne.s32.totalorder %s165, %s179
    %p181 = scmp.eq.s32.totalorder %s19, 0
    %p182 = por %p180, %p181
    %s183 = ssub.s32 %s13, %s20
    %p184 = scmp.eq.s32.totalorder %s183, 0
    %s186 = sadd.s32 %s185, 1
    %s187 = scalar_select %p184, %s185, %s186
    %p190 = pneg %p184
    %p191 = scmp.eq.s32.totalorder %s13, 1
    %p192 = por %p190, %p191
    %p193 = scmp.ne.s32.totalorder %s185, %s188
    %p194 = scmp.eq.s32.totalorder %s13, 0
    %p195 = por %p193, %p194
    %p196 = scmp.ne.s32.totalorder %s185, %s188
    %p197 = scmp.eq.s32.totalorder %s18, 1
    %p198 = por %p196, %p197
    %p199 = scmp.ne.s32.totalorder %s188, %s189
    %p200 = scmp.eq.s32.totalorder %s18, 0
    %p201 = por %p199, %p200
    %p202 = scmp.ne.s32.totalorder %s188, %s189
    %p203 = scmp.eq.s32.totalorder %s19, 1
    %p204 = por %p202, %p203
    %p206 = scmp.ne.s32.totalorder %s189, %s205
    %p207 = scmp.eq.s32.totalorder %s19, 0
    %p208 = por %p206, %p207
    %p209 = scmp.le.s32.totalorder 1, %s13
    %p210 = scmp.lt.s32.totalorder %s13, 3
    %p211 = pnand %p209, %p210
    %p212 = pneg %p211
    // Predicated region
    $region9: #{tpu_custom_call.1} parent=5 // pred_check
      _
    $region10: #{tpu_custom_call.1} parent=5 // pred_check_branch
      %214 = sbr.rel (%p211) target = $region12
    $region11: #{tpu_custom_call.1} parent=5 // pred_region
      %s215 = ssub.s32 %s13, 1
      // Predicated region
      $region13: #{tpu_custom_call.1} parent=11 // pred_check
        %p216 = pneg %p112
      $region14: #{tpu_custom_call.1} parent=11 // pred_check_branch
        %218 = sbr.rel (%p216) target = $region16
      $region15: #{tpu_custom_call.1} parent=11 // pred_region
        _
      $region16: #{tpu_custom_call.1} parent=11 // pred_fallthru
        _
      // Predicated region
      $region17: #{tpu_custom_call.1} parent=11 // pred_check
        %p219 = pneg %p133
      $region18: #{tpu_custom_call.1} parent=11 // pred_check_branch
        %221 = sbr.rel (%p219) target = $region20
      $region19: #{tpu_custom_call.1} parent=11 // pred_region
        _
      $region20: #{tpu_custom_call.1} parent=11 // pred_fallthru
        _
      // Predicated region
      $region21: #{tpu_custom_call.1} parent=11 // pred_check
        %p222 = pneg %p154
      $region22: #{tpu_custom_call.1} parent=11 // pred_check_branch
        %224 = sbr.rel (%p222) target = $region24
      $region23: #{tpu_custom_call.1} parent=11 // pred_region
        _
      $region24: #{tpu_custom_call.1} parent=11 // pred_fallthru
        _
      // Predicated region
      $region25: #{tpu_custom_call.1} parent=11 // pred_check
        %p225 = pneg %p175
      $region26: #{tpu_custom_call.1} parent=11 // pred_check_branch
        %227 = sbr.rel (%p225) target = $region28
      $region27: #{tpu_custom_call.1} parent=11 // pred_region
        _
      $region28: #{tpu_custom_call.1} parent=11 // pred_fallthru
        _
    $region12: #{tpu_custom_call.1} parent=5 // pred_fallthru
      _
    %p228 = scmp.lt.s32.totalorder %s13, 2
    // Predicated region
    $region29: #{tpu_custom_call.1} parent=5 // pred_check
      %p229 = pneg %p228
    $region30: #{tpu_custom_call.1} parent=5 // pred_check_branch
      %231 = sbr.rel (%p229) target = $region32
    $region31: #{tpu_custom_call.1} parent=5 // pred_region
      // Predicated region
      $region33: #{tpu_custom_call.1} parent=31 // pred_check
        %p232 = pneg %p33
      $region34: #{tpu_custom_call.1} parent=31 // pred_check_branch
        %234 = sbr.rel (%p232) target = $region36
      $region35: #{tpu_custom_call.1} parent=31 // pred_region
        %s235 = smul.u32 2, %s13
        %p236 = scmp.lt.s32.totalorder %s235, 3
        %s237 = scalar_select %p236, %s235, 3
        %s238 = smul.addr %s237, 2
        %s239 = smul.addr %s238, 8
        %s240 = scalar_lea.vmem %s0, %s239
        %s241 = smul.u32 2, %s13
      $region36: #{tpu_custom_call.1} parent=31 // pred_fallthru
        _
      // Predicated region
      $region37: #{tpu_custom_call.1} parent=31 // pred_check
        %p242 = pneg %p59
      $region38: #{tpu_custom_call.1} parent=31 // pred_check_branch
        %244 = sbr.rel (%p242) target = $region40
      $region39: #{tpu_custom_call.1} parent=31 // pred_region
        %s245 = smul.u32 2, %s13
        %p246 = scmp.lt.s32.totalorder %s245, 3
        %s247 = scalar_select %p246, %s245, 3
        %s248 = smul.addr %s247, 2
        %s249 = smul.addr %s248, 8
        %s250 = scalar_lea.vmem %s1, %s249
        %s251 = smul.u32 2, %s13
      $region40: #{tpu_custom_call.1} parent=31 // pred_fallthru
        _
      // Predicated region
      $region41: #{tpu_custom_call.1} parent=31 // pred_check
        %p252 = pneg %p85
      $region42: #{tpu_custom_call.1} parent=31 // pred_check_branch
        %254 = sbr.rel (%p252) target = $region44
      $region43: #{tpu_custom_call.1} parent=31 // pred_region
        %s255 = smul.u32 2, %s13
        %p256 = scmp.lt.s32.totalorder %s255, 3
        %s257 = scalar_select %p256, %s255, 3
        %s258 = smul.addr %s257, 2
        %s259 = smul.addr %s258, 8
        %s260 = scalar_lea.vmem %s2, %s259
        %s261 = smul.u32 2, %s13
      $region44: #{tpu_custom_call.1} parent=31 // pred_fallthru
        _
    $region32: #{tpu_custom_call.1} parent=5 // pred_fallthru
      _
    %p262 = scmp.le.s32.totalorder 1, %s13
    %p263 = scmp.lt.s32.totalorder %s13, 3
    %p264 = pnand %p262, %p263
    %p265 = pneg %p264
    // Predicated region
    $region45: #{tpu_custom_call.1} parent=5 // pred_check
      _
    $region46: #{tpu_custom_call.1} parent=5 // pred_check_branch
      %267 = sbr.rel (%p264) target = $region48
    $region47: #{tpu_custom_call.1} parent=5 // pred_region
      %s268 = ssub.s32 %s13, 1
      %s269 = smul.u32 2, %s18
      %p270 = scmp.lt.s32.totalorder %s269, 3
      %s271 = scalar_select %p270, %s269, 3
      %s272 = smul.addr %s271, 2
      %s273 = smul.addr %s272, 8
      %s274 = scalar_lea.vmem %s0, %s273
      %p275 = pneg %p39
      %p276 = pneg %p36
      %s277 = smul.u32 2, %s18
      %p278 = scmp.lt.s32.totalorder %s277, 3
      %s279 = scalar_select %p278, %s277, 3
      %s280 = smul.addr %s279, 2
      %s281 = smul.addr %s280, 8
      %s282 = scalar_lea.vmem %s1, %s281
      %p283 = pneg %p65
      %p284 = pneg %p62
      %s285 = smul.u32 2, %s18
      %p286 = scmp.lt.s32.totalorder %s285, 3
      %s287 = scalar_select %p286, %s285, 3
      %s288 = smul.addr %s287, 2
      %s289 = smul.addr %s288, 8
      %s290 = scalar_lea.vmem %s2, %s289
      %p291 = pneg %p91
      %p292 = pneg %p88
      %p293 = pneg %p112
      %p294 = pneg %p109
      %p295 = pneg %p133
      %p296 = pneg %p130
      %p297 = pneg %p154
      %p298 = pneg %p151
      %p299 = pneg %p175
      %p300 = pneg %p172
      %p301 = pneg %p201
      %p302 = pneg %p198
      %s303 = smul.u32 2, %s18
      %p304 = scmp.lt.s32.totalorder %s303, 3
      %s305 = scalar_select %p304, %s303, 3
      %s306 = smul.addr %s305, 2
      %s307 = smul.addr %s306, 8
      %s308 = scalar_lea.vmem %s7, %s307
      %s309 = smul.u32 2, %s18
      %p310 = scmp.lt.s32.totalorder %s309, 3
      %s311 = scalar_select %p310, %s309, 3
      %s312 = smul.addr %s311, 2
      %s313 = smul.addr %s312, 8
      %s314 = scalar_lea.vmem %s0, %s313
      %s315 = smul.u32 2, %s18
      %s316 = smul.u32 2, %s18
      %p317 = scmp.lt.s32.totalorder %s316, 3
      %s318 = scalar_select %p317, %s316, 3
      %s319 = smul.addr %s318, 2
      %s320 = smul.addr %s319, 8
      %s321 = scalar_lea.vmem %s1, %s320
      %s322 = smul.u32 2, %s18
      %s323 = smul.u32 2, %s18
      %p324 = scmp.lt.s32.totalorder %s323, 3
      %s325 = scalar_select %p324, %s323, 3
      %s326 = smul.addr %s325, 2
      %s327 = smul.addr %s326, 8
      %s328 = scalar_lea.vmem %s2, %s327
      %s329 = smul.u32 2, %s18
      %s330 = smul.u32 2, %s18
      %p331 = scmp.lt.s32.totalorder %s330, 3
      %s332 = scalar_select %p331, %s330, 3
      %s333 = smul.addr %s332, 2
      %s334 = smul.addr %s333, 8
      %s335 = scalar_lea.vmem %s7, %s334
      %s336 = smul.u32 2, %s18
      %v337 = vld [vmem:[%s3] sm:$0xff]
      %v338 = vld [vmem:[%s3 + $0x8] sm:$0xff]
      %v339 = vld [vmem:[%s314] sm:$0xff]
      %v340 = vld [vmem:[%s314 + $0x8] sm:$0xff]
      %v341 = vld [vmem:[%s314 + $0x10] sm:$0xff]
      %v342 = vld [vmem:[%s314 + $0x18] sm:$0xff]
      %vm343 = vcmask 130048
      %v345 = vsel %vm343, %v337, 0
      %347 = vmatprep.subr.mxu0 0.0
      %348 = vmatpush1.msra.mxu0 %v339
      %349 = vmatprep.subr.mxu0 0.0
      %350 = vmatpush1.msra.mxu0 %v340
      %351 = vmatprep.subr.mxu0 0.0
      %352 = vmatpush1.msra.mxu0 0.0
      %353 = vmatprep.subr.mxu0 0.0
      %354 = vmatpush1.msra.mxu0 0.0
      %355 = vmatprep.subr.mxu0 0.0
      %356 = vmatpush1.msra.mxu0 0.0
      %357 = vmatprep.subr.mxu0 0.0
      %358 = vmatpush1.msra.mxu0 0.0
      %359 = vmatprep.subr.mxu0 0.0
      %360 = vmatpush1.msra.mxu0 0.0
      %361 = vmatprep.subr.mxu0 0.0
      %362 = vmatpush1.msra.mxu0 0.0
      %363 = vmatprep.subr.mxu0 0.0
      %364 = vmatpush1.msra.mxu0 0.0
      %365 = vmatprep.subr.mxu0 0.0
      %366 = vmatpush1.msra.mxu0 0.0
      %367 = vmatprep.subr.mxu0 0.0
      %368 = vmatpush1.msra.mxu0 0.0
      %369 = vmatprep.subr.mxu0 0.0
      %370 = vmatpush1.msra.mxu0 0.0
      %371 = vmatprep.subr.mxu0 0.0
      %372 = vmatpush1.msra.mxu0 0.0
      %373 = vmatprep.subr.mxu0 0.0
      %374 = vmatpush1.msra.mxu0 0.0
      %375 = vmatprep.subr.mxu0 0.0
      %376 = vmatpush1.msra.mxu0 0.0
      %377 = vmatprep.subr.mxu0 0.0
      %378 = vmatpush1.msra.mxu0 0.0
      %379 = vmatprep.subr.mxu0 0.0
      %380 = vmatpush1.msra.mxu0 0.0
      %381 = vmatprep.subr.mxu0 0.0
      %382 = vmatpush1.msra.mxu0 0.0
      %383 = vmatprep.subr.mxu0 0.0
      %384 = vmatpush1.msra.mxu0 0.0
      %385 = vmatprep.subr.mxu0 0.0
      %386 = vmatpush1.msra.mxu0 0.0
      %387 = vmatprep.subr.mxu0 0.0
      %388 = vmatpush1.msra.mxu0 0.0
      %389 = vmatprep.subr.mxu0 0.0
      %390 = vmatpush1.msra.mxu0 0.0
      %391 = vmatprep.subr.mxu0 0.0
      %392 = vmatpush1.msra.mxu0 0.0
      %393 = vmatprep.subr.mxu0 0.0
      %394 = vmatpush1.msra.mxu0 0.0
      %395 = vmatprep.subr.mxu0 0.0
      %396 = vmatpush1.msra.mxu0 0.0
      %397 = vmatprep.subr.mxu0 0.0
      %398 = vmatpush1.msra.mxu0 0.0
      %399 = vmatprep.subr.mxu0 0.0
      %400 = vmatpush1.msra.mxu0 0.0
      %401 = vmatprep.subr.mxu0 0.0
      %402 = vmatpush1.msra.mxu0 0.0
      %403 = vmatprep.subr.mxu0 0.0
      %404 = vmatpush1.msra.mxu0 0.0
      %405 = vmatprep.subr.mxu0 0.0
      %406 = vmatpush1.msra.mxu0 0.0
      %407 = vmatprep.subr.mxu0 0.0
      %408 = vmatpush1.msra.mxu0 0.0
      %409 = vmatprep.subr.mxu0 0.0
      %410 = vmatpush1.msra.mxu0 0.0
      %411 = vmatprep.mubr.f32.mxu0 0.0
      %412 = vmatmul.mubr.f32.gmra.mrb[0].mxu0 %v345
      %v413 = vpop.f32.mrb[0].mxu0
      %v414 = vadd.f32 0.0, %v413
      %v415 = vpop.f32.mrb[0].mxu0
      %416 = vdwg.mxu0
      %v418 = vsel %vm343, %v338, 0
      %420 = vmatprep.subr.mxu0 0.0
      %421 = vmatpush1.msra.mxu0 %v341
      %422 = vmatprep.subr.mxu0 0.0
      %423 = vmatpush1.msra.mxu0 %v342
      %424 = vmatprep.subr.mxu0 0.0
      %425 = vmatpush1.msra.mxu0 0.0
      %426 = vmatprep.subr.mxu0 0.0
      %427 = vmatpush1.msra.mxu0 0.0
      %428 = vmatprep.subr.mxu0 0.0
      %429 = vmatpush1.msra.mxu0 0.0
      %430 = vmatprep.subr.mxu0 0.0
      %431 = vmatpush1.msra.mxu0 0.0
      %432 = vmatprep.subr.mxu0 0.0
      %433 = vmatpush1.msra.mxu0 0.0
      %434 = vmatprep.subr.mxu0 0.0
      %435 = vmatpush1.msra.mxu0 0.0
      %436 = vmatprep.subr.mxu0 0.0
      %437 = vmatpush1.msra.mxu0 0.0
      %438 = vmatprep.subr.mxu0 0.0
      %439 = vmatpush1.msra.mxu0 0.0
      %440 = vmatprep.subr.mxu0 0.0
      %441 = vmatpush1.msra.mxu0 0.0
      %442 = vmatprep.subr.mxu0 0.0
      %443 = vmatpush1.msra.mxu0 0.0
      %444 = vmatprep.subr.mxu0 0.0
      %445 = vmatpush1.msra.mxu0 0.0
      %446 = vmatprep.subr.mxu0 0.0
      %447 = vmatpush1.msra.mxu0 0.0
      %448 = vmatprep.subr.mxu0 0.0
      %449 = vmatpush1.msra.mxu0 0.0
      %450 = vmatprep.subr.mxu0 0.0
      %451 = vmatpush1.msra.mxu0 0.0
      %452 = vmatprep.subr.mxu0 0.0
      %453 = vmatpush1.msra.mxu0 0.0
      %454 = vmatprep.subr.mxu0 0.0
      %455 = vmatpush1.msra.mxu0 0.0
      %456 = vmatprep.subr.mxu0 0.0
      %457 = vmatpush1.msra.mxu0 0.0
      %458 = vmatprep.subr.mxu0 0.0
      %459 = vmatpush1.msra.mxu0 0.0
      %460 = vmatprep.subr.mxu0 0.0
      %461 = vmatpush1.msra.mxu0 0.0
      %462 = vmatprep.subr.mxu0 0.0
      %463 = vmatpush1.msra.mxu0 0.0
      %464 = vmatprep.subr.mxu0 0.0
      %465 = vmatpush1.msra.mxu0 0.0
      %466 = vmatprep.subr.mxu0 0.0
      %467 = vmatpush1.msra.mxu0 0.0
      %468 = vmatprep.subr.mxu0 0.0
      %469 = vmatpush1.msra.mxu0 0.0
      %470 = vmatprep.subr.mxu0 0.0
      %471 = vmatpush1.msra.mxu0 0.0
      %472 = vmatprep.subr.mxu0 0.0
      %473 = vmatpush1.msra.mxu0 0.0
      %474 = vmatprep.subr.mxu0 0.0
      %475 = vmatpush1.msra.mxu0 0.0
      %476 = vmatprep.subr.mxu0 0.0
      %477 = vmatpush1.msra.mxu0 0.0
      %478 = vmatprep.subr.mxu0 0.0
      %479 = vmatpush1.msra.mxu0 0.0
      %480 = vmatprep.subr.mxu0 0.0
      %481 = vmatpush1.msra.mxu0 0.0
      %482 = vmatprep.subr.mxu0 0.0
      %483 = vmatpush1.msra.mxu0 0.0
      %484 = vmatprep.mubr.f32.mxu0 0.0
      %485 = vmatmul.mubr.f32.gmra.mrb[0].mxu0 %v418
      %v486 = vpop.f32.mrb[0].mxu0
      %v487 = vadd.f32 0.0, %v486
      %v488 = vpop.f32.mrb[0].mxu0
      %489 = vdwg.mxu0
      %v490 = vld [vmem:[%s4] sm:$0xff]
      %v491 = vld [vmem:[%s4 + $0x8] sm:$0xff]
      %v492 = vld [vmem:[%s321] sm:$0xff]
      %v493 = vld [vmem:[%s321 + $0x8] sm:$0xff]
      %v494 = vld [vmem:[%s321 + $0x10] sm:$0xff]
      %v495 = vld [vmem:[%s321 + $0x18] sm:$0xff]
      %v497 = vsel %vm343, %v490, 0
      %499 = vmatprep.subr.mxu0 0.0
      %500 = vmatpush1.msra.mxu0 %v492
      %501 = vmatprep.subr.mxu0 0.0
      %502 = vmatpush1.msra.mxu0 %v493
      %503 = vmatprep.subr.mxu0 0.0
      %504 = vmatpush1.msra.mxu0 0.0
      %505 = vmatprep.subr.mxu0 0.0
      %506 = vmatpush1.msra.mxu0 0.0
      %507 = vmatprep.subr.mxu0 0.0
      %508 = vmatpush1.msra.mxu0 0.0
      %509 = vmatprep.subr.mxu0 0.0
      %510 = vmatpush1.msra.mxu0 0.0
      %511 = vmatprep.subr.mxu0 0.0
      %512 = vmatpush1.msra.mxu0 0.0
      %513 = vmatprep.subr.mxu0 0.0
      %514 = vmatpush1.msra.mxu0 0.0
      %515 = vmatprep.subr.mxu0 0.0
      %516 = vmatpush1.msra.mxu0 0.0
      %517 = vmatprep.subr.mxu0 0.0
      %518 = vmatpush1.msra.mxu0 0.0
      %519 = vmatprep.subr.mxu0 0.0
      %520 = vmatpush1.msra.mxu0 0.0
      %521 = vmatprep.subr.mxu0 0.0
      %522 = vmatpush1.msra.mxu0 0.0
      %523 = vmatprep.subr.mxu0 0.0
      %524 = vmatpush1.msra.mxu0 0.0
      %525 = vmatprep.subr.mxu0 0.0
      %526 = vmatpush1.msra.mxu0 0.0
      %527 = vmatprep.subr.mxu0 0.0
      %528 = vmatpush1.msra.mxu0 0.0
      %529 = vmatprep.subr.mxu0 0.0
      %530 = vmatpush1.msra.mxu0 0.0
      %531 = vmatprep.subr.mxu0 0.0
      %532 = vmatpush1.msra.mxu0 0.0
      %533 = vmatprep.subr.mxu0 0.0
      %534 = vmatpush1.msra.mxu0 0.0
      %535 = vmatprep.subr.mxu0 0.0
      %536 = vmatpush1.msra.mxu0 0.0
      %537 = vmatprep.subr.mxu0 0.0
      %538 = vmatpush1.msra.mxu0 0.0
      %539 = vmatprep.subr.mxu0 0.0
      %540 = vmatpush1.msra.mxu0 0.0
      %541 = vmatprep.subr.mxu0 0.0
      %542 = vmatpush1.msra.mxu0 0.0
      %543 = vmatprep.subr.mxu0 0.0
      %544 = vmatpush1.msra.mxu0 0.0
      %545 = vmatprep.subr.mxu0 0.0
      %546 = vmatpush1.msra.mxu0 0.0
      %547 = vmatprep.subr.mxu0 0.0
      %548 = vmatpush1.msra.mxu0 0.0
      %549 = vmatprep.subr.mxu0 0.0
      %550 = vmatpush1.msra.mxu0 0.0
      %551 = vmatprep.subr.mxu0 0.0
      %552 = vmatpush1.msra.mxu0 0.0
      %553 = vmatprep.subr.mxu0 0.0
      %554 = vmatpush1.msra.mxu0 0.0
      %555 = vmatprep.subr.mxu0 0.0
      %556 = vmatpush1.msra.mxu0 0.0
      %557 = vmatprep.subr.mxu0 0.0
      %558 = vmatpush1.msra.mxu0 0.0
      %559 = vmatprep.subr.mxu0 0.0
      %560 = vmatpush1.msra.mxu0 0.0
      %561 = vmatprep.subr.mxu0 0.0
      %562 = vmatpush1.msra.mxu0 0.0
      %563 = vmatprep.mubr.f32.mxu0 0.0
      %564 = vmatmul.mubr.f32.gmra.mrb[0].mxu0 %v497
      %v565 = vpop.f32.mrb[0].mxu0
      %v566 = vadd.f32 0.0, %v565
      %v567 = vpop.f32.mrb[0].mxu0
      %568 = vdwg.mxu0
      %v570 = vsel %vm343, %v491, 0
      %572 = vmatprep.subr.mxu0 0.0
      %573 = vmatpush1.msra.mxu0 %v494
      %574 = vmatprep.subr.mxu0 0.0
      %575 = vmatpush1.msra.mxu0 %v495
      %576 = vmatprep.subr.mxu0 0.0
      %577 = vmatpush1.msra.mxu0 0.0
      %578 = vmatprep.subr.mxu0 0.0
      %579 = vmatpush1.msra.mxu0 0.0
      %580 = vmatprep.subr.mxu0 0.0
      %581 = vmatpush1.msra.mxu0 0.0
      %582 = vmatprep.subr.mxu0 0.0
      %583 = vmatpush1.msra.mxu0 0.0
      %584 = vmatprep.subr.mxu0 0.0
      %585 = vmatpush1.msra.mxu0 0.0
      %586 = vmatprep.subr.mxu0 0.0
      %587 = vmatpush1.msra.mxu0 0.0
      %588 = vmatprep.subr.mxu0 0.0
      %589 = vmatpush1.msra.mxu0 0.0
      %590 = vmatprep.subr.mxu0 0.0
      %591 = vmatpush1.msra.mxu0 0.0
      %592 = vmatprep.subr.mxu0 0.0
      %593 = vmatpush1.msra.mxu0 0.0
      %594 = vmatprep.subr.mxu0 0.0
      %595 = vmatpush1.msra.mxu0 0.0
      %596 = vmatprep.subr.mxu0 0.0
      %597 = vmatpush1.msra.mxu0 0.0
      %598 = vmatprep.subr.mxu0 0.0
      %599 = vmatpush1.msra.mxu0 0.0
      %600 = vmatprep.subr.mxu0 0.0
      %601 = vmatpush1.msra.mxu0 0.0
      %602 = vmatprep.subr.mxu0 0.0
      %603 = vmatpush1.msra.mxu0 0.0
      %604 = vmatprep.subr.mxu0 0.0
      %605 = vmatpush1.msra.mxu0 0.0
      %606 = vmatprep.subr.mxu0 0.0
      %607 = vmatpush1.msra.mxu0 0.0
      %608 = vmatprep.subr.mxu0 0.0
      %609 = vmatpush1.msra.mxu0 0.0
      %610 = vmatprep.subr.mxu0 0.0
      %611 = vmatpush1.msra.mxu0 0.0
      %612 = vmatprep.subr.mxu0 0.0
      %613 = vmatpush1.msra.mxu0 0.0
      %614 = vmatprep.subr.mxu0 0.0
      %615 = vmatpush1.msra.mxu0 0.0
      %616 = vmatprep.subr.mxu0 0.0
      %617 = vmatpush1.msra.mxu0 0.0
      %618 = vmatprep.subr.mxu0 0.0
      %619 = vmatpush1.msra.mxu0 0.0
      %620 = vmatprep.subr.mxu0 0.0
      %621 = vmatpush1.msra.mxu0 0.0
      %622 = vmatprep.subr.mxu0 0.0
      %623 = vmatpush1.msra.mxu0 0.0
      %624 = vmatprep.subr.mxu0 0.0
      %625 = vmatpush1.msra.mxu0 0.0
      %626 = vmatprep.subr.mxu0 0.0
      %627 = vmatpush1.msra.mxu0 0.0
      %628 = vmatprep.subr.mxu0 0.0
      %629 = vmatpush1.msra.mxu0 0.0
      %630 = vmatprep.subr.mxu0 0.0
      %631 = vmatpush1.msra.mxu0 0.0
      %632 = vmatprep.subr.mxu0 0.0
      %633 = vmatpush1.msra.mxu0 0.0
      %634 = vmatprep.subr.mxu0 0.0
      %635 = vmatpush1.msra.mxu0 0.0
      %636 = vmatprep.mubr.f32.mxu0 0.0
      %637 = vmatmul.mubr.f32.gmra.mrb[0].mxu0 %v570
      %v638 = vpop.f32.mrb[0].mxu0
      %v639 = vadd.f32 0.0, %v638
      %v640 = vpop.f32.mrb[0].mxu0
      %641 = vdwg.mxu0
      %v642 = vld [vmem:[%s4] sm:$0xff]
      %v643 = vld [vmem:[%s4 + $0x8] sm:$0xff]
      %v644 = vld [vmem:[%s328] sm:$0xff]
      %v645 = vld [vmem:[%s328 + $0x8] sm:$0xff]
      %v646 = vld [vmem:[%s328 + $0x10] sm:$0xff]
      %v647 = vld [vmem:[%s328 + $0x18] sm:$0xff]
      %v649 = vsel %vm343, %v642, 0
      %651 = vmatprep.subr.mxu0 0.0
      %652 = vmatpush1.msra.mxu0 %v644
      %653 = vmatprep.subr.mxu0 0.0
      %654 = vmatpush1.msra.mxu0 %v645
      %655 = vmatprep.subr.mxu0 0.0
      %656 = vmatpush1.msra.mxu0 0.0
      %657 = vmatprep.subr.mxu0 0.0
      %658 = vmatpush1.msra.mxu0 0.0
      %659 = vmatprep.subr.mxu0 0.0
      %660 = vmatpush1.msra.mxu0 0.0
      %661 = vmatprep.subr.mxu0 0.0
      %662 = vmatpush1.msra.mxu0 0.0
      %663 = vmatprep.subr.mxu0 0.0
      %664 = vmatpush1.msra.mxu0 0.0
      %665 = vmatprep.subr.mxu0 0.0
      %666 = vmatpush1.msra.mxu0 0.0
      %667 = vmatprep.subr.mxu0 0.0
      %668 = vmatpush1.msra.mxu0 0.0
      %669 = vmatprep.subr.mxu0 0.0
      %670 = vmatpush1.msra.mxu0 0.0
      %671 = vmatprep.subr.mxu0 0.0
      %672 = vmatpush1.msra.mxu0 0.0
      %673 = vmatprep.subr.mxu0 0.0
      %674 = vmatpush1.msra.mxu0 0.0
      %675 = vmatprep.subr.mxu0 0.0
      %676 = vmatpush1.msra.mxu0 0.0
      %677 = vmatprep.subr.mxu0 0.0
      %678 = vmatpush1.msra.mxu0 0.0
      %679 = vmatprep.subr.mxu0 0.0
      %680 = vmatpush1.msra.mxu0 0.0
      %681 = vmatprep.subr.mxu0 0.0
      %682 = vmatpush1.msra.mxu0 0.0
      %683 = vmatprep.subr.mxu0 0.0
      %684 = vmatpush1.msra.mxu0 0.0
      %685 = vmatprep.subr.mxu0 0.0
      %686 = vmatpush1.msra.mxu0 0.0
      %687 = vmatprep.subr.mxu0 0.0
      %688 = vmatpush1.msra.mxu0 0.0
      %689 = vmatprep.subr.mxu0 0.0
      %690 = vmatpush1.msra.mxu0 0.0
      %691 = vmatprep.subr.mxu0 0.0
      %692 = vmatpush1.msra.mxu0 0.0
      %693 = vmatprep.subr.mxu0 0.0
      %694 = vmatpush1.msra.mxu0 0.0
      %695 = vmatprep.subr.mxu0 0.0
      %696 = vmatpush1.msra.mxu0 0.0
      %697 = vmatprep.subr.mxu0 0.0
      %698 = vmatpush1.msra.mxu0 0.0
      %699 = vmatprep.subr.mxu0 0.0
      %700 = vmatpush1.msra.mxu0 0.0
      %701 = vmatprep.subr.mxu0 0.0
      %702 = vmatpush1.msra.mxu0 0.0
      %703 = vmatprep.subr.mxu0 0.0
      %704 = vmatpush1.msra.mxu0 0.0
      %705 = vmatprep.subr.mxu0 0.0
      %706 = vmatpush1.msra.mxu0 0.0
      %707 = vmatprep.subr.mxu0 0.0
      %708 = vmatpush1.msra.mxu0 0.0
      %709 = vmatprep.subr.mxu0 0.0
      %710 = vmatpush1.msra.mxu0 0.0
      %711 = vmatprep.subr.mxu0 0.0
      %712 = vmatpush1.msra.mxu0 0.0
      %713 = vmatprep.subr.mxu0 0.0
      %714 = vmatpush1.msra.mxu0 0.0
      %715 = vmatprep.mubr.f32.mxu0 0.0
      %716 = vmatmul.mubr.f32.gmra.mrb[0].mxu0 %v649
      %v717 = vpop.f32.mrb[0].mxu0
      %v718 = vadd.f32 0.0, %v717
      %v719 = vpop.f32.mrb[0].mxu0
      %720 = vdwg.mxu0
      %v722 = vsel %vm343, %v643, 0
      %724 = vmatprep.subr.mxu0 0.0
      %725 = vmatpush1.msra.mxu0 %v646
      %726 = vmatprep.subr.mxu0 0.0
      %727 = vmatpush1.msra.mxu0 %v647
      %728 = vmatprep.subr.mxu0 0.0
      %729 = vmatpush1.msra.mxu0 0.0
      %730 = vmatprep.subr.mxu0 0.0
      %731 = vmatpush1.msra.mxu0 0.0
      %732 = vmatprep.subr.mxu0 0.0
      %733 = vmatpush1.msra.mxu0 0.0
      %734 = vmatprep.subr.mxu0 0.0
      %735 = vmatpush1.msra.mxu0 0.0
      %736 = vmatprep.subr.mxu0 0.0
      %737 = vmatpush1.msra.mxu0 0.0
      %738 = vmatprep.subr.mxu0 0.0
      %739 = vmatpush1.msra.mxu0 0.0
      %740 = vmatprep.subr.mxu0 0.0
      %741 = vmatpush1.msra.mxu0 0.0
      %742 = vmatprep.subr.mxu0 0.0
      %743 = vmatpush1.msra.mxu0 0.0
      %744 = vmatprep.subr.mxu0 0.0
      %745 = vmatpush1.msra.mxu0 0.0
      %746 = vmatprep.subr.mxu0 0.0
      %747 = vmatpush1.msra.mxu0 0.0
      %748 = vmatprep.subr.mxu0 0.0
      %749 = vmatpush1.msra.mxu0 0.0
      %750 = vmatprep.subr.mxu0 0.0
      %751 = vmatpush1.msra.mxu0 0.0
      %752 = vmatprep.subr.mxu0 0.0
      %753 = vmatpush1.msra.mxu0 0.0
      %754 = vmatprep.subr.mxu0 0.0
      %755 = vmatpush1.msra.mxu0 0.0
      %756 = vmatprep.subr.mxu0 0.0
      %757 = vmatpush1.msra.mxu0 0.0
      %758 = vmatprep.subr.mxu0 0.0
      %759 = vmatpush1.msra.mxu0 0.0
      %760 = vmatprep.subr.mxu0 0.0
      %761 = vmatpush1.msra.mxu0 0.0
      %762 = vmatprep.subr.mxu0 0.0
      %763 = vmatpush1.msra.mxu0 0.0
      %764 = vmatprep.subr.mxu0 0.0
      %765 = vmatpush1.msra.mxu0 0.0
      %766 = vmatprep.subr.mxu0 0.0
      %767 = vmatpush1.msra.mxu0 0.0
      %768 = vmatprep.subr.mxu0 0.0
      %769 = vmatpush1.msra.mxu0 0.0
      %770 = vmatprep.subr.mxu0 0.0
      %771 = vmatpush1.msra.mxu0 0.0
      %772 = vmatprep.subr.mxu0 0.0
      %773 = vmatpush1.msra.mxu0 0.0
      %774 = vmatprep.subr.mxu0 0.0
      %775 = vmatpush1.msra.mxu0 0.0
      %776 = vmatprep.subr.mxu0 0.0
      %777 = vmatpush1.msra.mxu0 0.0
      %778 = vmatprep.subr.mxu0 0.0
      %779 = vmatpush1.msra.mxu0 0.0
      %780 = vmatprep.subr.mxu0 0.0
      %781 = vmatpush1.msra.mxu0 0.0
      %782 = vmatprep.subr.mxu0 0.0
      %783 = vmatpush1.msra.mxu0 0.0
      %784 = vmatprep.subr.mxu0 0.0
      %785 = vmatpush1.msra.mxu0 0.0
      %786 = vmatprep.subr.mxu0 0.0
      %787 = vmatpush1.msra.mxu0 0.0
      %788 = vmatprep.mubr.f32.mxu0 0.0
      %789 = vmatmul.mubr.f32.gmra.mrb[0].mxu0 %v722
      %v790 = vpop.f32.mrb[0].mxu0
      %v791 = vadd.f32 0.0, %v790
      %v792 = vpop.f32.mrb[0].mxu0
      %793 = vdwg.mxu0
      %vm794 = vcmask 31744
      %v796 = vsel %vm794, %v414, 0
      %v799 = vsel %vm794, %v566, 0
      %801 = vmatprep.subr.mxu0 0.0
      %802 = vmatpush1.xpose.msra.mxu0 %v799
      %803 = vmatprep.subr.mxu0 0.0
      %804 = vmatpush1.xpose.msra.mxu0 0.0
      %805 = vmatprep.subr.mxu0 0.0
      %806 = vmatpush1.xpose.msra.mxu0 0.0
      %807 = vmatprep.subr.mxu0 0.0
      %808 = vmatpush1.xpose.msra.mxu0 0.0
      %809 = vmatprep.subr.mxu0 0.0
      %810 = vmatpush1.xpose.msra.mxu0 0.0
      %811 = vmatprep.subr.mxu0 0.0
      %812 = vmatpush1.xpose.msra.mxu0 0.0
      %813 = vmatprep.subr.mxu0 0.0
      %814 = vmatpush1.xpose.msra.mxu0 0.0
      %815 = vmatprep.subr.mxu0 0.0
      %816 = vmatpush1.xpose.msra.mxu0 0.0
      %817 = vmatprep.subr.mxu0 0.0
      %818 = vmatpush1.xpose.msra.mxu0 0.0
      %819 = vmatprep.subr.mxu0 0.0
      %820 = vmatpush1.xpose.msra.mxu0 0.0
      %821 = vmatprep.subr.mxu0 0.0
      %822 = vmatpush1.xpose.msra.mxu0 0.0
      %823 = vmatprep.subr.mxu0 0.0
      %824 = vmatpush1.xpose.msra.mxu0 0.0
      %825 = vmatprep.subr.mxu0 0.0
      %826 = vmatpush1.xpose.msra.mxu0 0.0
      %827 = vmatprep.subr.mxu0 0.0
      %828 = vmatpush1.xpose.msra.mxu0 0.0
      %829 = vmatprep.subr.mxu0 0.0
      %830 = vmatpush1.xpose.msra.mxu0 0.0
      %831 = vmatprep.subr.mxu0 0.0
      %832 = vmatpush1.xpose.msra.mxu0 0.0
      %833 = vmatprep.subr.mxu0 0.0
      %834 = vmatpush1.xpose.msra.mxu0 0.0
      %835 = vmatprep.subr.mxu0 0.0
      %836 = vmatpush1.xpose.msra.mxu0 0.0
      %837 = vmatprep.subr.mxu0 0.0
      %838 = vmatpush1.xpose.msra.mxu0 0.0
      %839 = vmatprep.subr.mxu0 0.0
      %840 = vmatpush1.xpose.msra.mxu0 0.0
      %841 = vmatprep.subr.mxu0 0.0
      %842 = vmatpush1.xpose.msra.mxu0 0.0
      %843 = vmatprep.subr.mxu0 0.0
      %844 = vmatpush1.xpose.msra.mxu0 0.0
      %845 = vmatprep.subr.mxu0 0.0
      %846 = vmatpush1.xpose.msra.mxu0 0.0
      %847 = vmatprep.subr.mxu0 0.0
      %848 = vmatpush1.xpose.msra.mxu0 0.0
      %849 = vmatprep.subr.mxu0 0.0
      %850 = vmatpush1.xpose.msra.mxu0 0.0
      %851 = vmatprep.subr.mxu0 0.0
      %852 = vmatpush1.xpose.msra.mxu0 0.0
      %853 = vmatprep.subr.mxu0 0.0
      %854 = vmatpush1.xpose.msra.mxu0 0.0
      %855 = vmatprep.subr.mxu0 0.0
      %856 = vmatpush1.xpose.msra.mxu0 0.0
      %857 = vmatprep.subr.mxu0 0.0
      %858 = vmatpush1.xpose.msra.mxu0 0.0
      %859 = vmatprep.subr.mxu0 0.0
      %860 = vmatpush1.xpose.msra.mxu0 0.0
      %861 = vmatprep.subr.mxu0 0.0
      %862 = vmatpush1.xpose.msra.mxu0 0.0
      %863 = vmatprep.subr.mxu0 0.0
      %864 = vmatpush1.xpose.msra.mxu0 0.0
      %865 = vmatprep.mubr.f32.mxu0 0.0
      %866 = vmatmul.mubr.f32.gmra.mrb[0].mxu0 %v796
      %v867 = vpop.f32.mrb[0].mxu0
      %v868 = vadd.f32 0.0, %v867
      %v869 = vpop.f32.mrb[0].mxu0
      %870 = vdwg.mxu0
      %v872 = vsel %vm794, %v487, 0
      %v875 = vsel %vm794, %v639, 0
      %877 = vmatprep.subr.mxu0 0.0
      %878 = vmatpush1.xpose.msra.mxu0 %v875
      %879 = vmatprep.subr.mxu0 0.0
      %880 = vmatpush1.xpose.msra.mxu0 0.0
      %881 = vmatprep.subr.mxu0 0.0
      %882 = vmatpush1.xpose.msra.mxu0 0.0
      %883 = vmatprep.subr.mxu0 0.0
      %884 = vmatpush1.xpose.msra.mxu0 0.0
      %885 = vmatprep.subr.mxu0 0.0
      %886 = vmatpush1.xpose.msra.mxu0 0.0
      %887 = vmatprep.subr.mxu0 0.0
      %888 = vmatpush1.xpose.msra.mxu0 0.0
      %889 = vmatprep.subr.mxu0 0.0
      %890 = vmatpush1.xpose.msra.mxu0 0.0
      %891 = vmatprep.subr.mxu0 0.0
      %892 = vmatpush1.xpose.msra.mxu0 0.0
      %893 = vmatprep.subr.mxu0 0.0
      %894 = vmatpush1.xpose.msra.mxu0 0.0
      %895 = vmatprep.subr.mxu0 0.0
      %896 = vmatpush1.xpose.msra.mxu0 0.0
      %897 = vmatprep.subr.mxu0 0.0
      %898 = vmatpush1.xpose.msra.mxu0 0.0
      %899 = vmatprep.subr.mxu0 0.0
      %900 = vmatpush1.xpose.msra.mxu0 0.0
      %901 = vmatprep.subr.mxu0 0.0
      %902 = vmatpush1.xpose.msra.mxu0 0.0
      %903 = vmatprep.subr.mxu0 0.0
      %904 = vmatpush1.xpose.msra.mxu0 0.0
      %905 = vmatprep.subr.mxu0 0.0
      %906 = vmatpush1.xpose.msra.mxu0 0.0
      %907 = vmatprep.subr.mxu0 0.0
      %908 = vmatpush1.xpose.msra.mxu0 0.0
      %909 = vmatprep.subr.mxu0 0.0
      %910 = vmatpush1.xpose.msra.mxu0 0.0
      %911 = vmatprep.subr.mxu0 0.0
      %912 = vmatpush1.xpose.msra.mxu0 0.0
      %913 = vmatprep.subr.mxu0 0.0
      %914 = vmatpush1.xpose.msra.mxu0 0.0
      %915 = vmatprep.subr.mxu0 0.0
      %916 = vmatpush1.xpose.msra.mxu0 0.0
      %917 = vmatprep.subr.mxu0 0.0
      %918 = vmatpush1.xpose.msra.mxu0 0.0
      %919 = vmatprep.subr.mxu0 0.0
      %920 = vmatpush1.xpose.msra.mxu0 0.0
      %921 = vmatprep.subr.mxu0 0.0
      %922 = vmatpush1.xpose.msra.mxu0 0.0
      %923 = vmatprep.subr.mxu0 0.0
      %924 = vmatpush1.xpose.msra.mxu0 0.0
      %925 = vmatprep.subr.mxu0 0.0
      %926 = vmatpush1.xpose.msra.mxu0 0.0
      %927 = vmatprep.subr.mxu0 0.0
      %928 = vmatpush1.xpose.msra.mxu0 0.0
      %929 = vmatprep.subr.mxu0 0.0
      %930 = vmatpush1.xpose.msra.mxu0 0.0
      %931 = vmatprep.subr.mxu0 0.0
      %932 = vmatpush1.xpose.msra.mxu0 0.0
      %933 = vmatprep.subr.mxu0 0.0
      %934 = vmatpush1.xpose.msra.mxu0 0.0
      %935 = vmatprep.subr.mxu0 0.0
      %936 = vmatpush1.xpose.msra.mxu0 0.0
      %937 = vmatprep.subr.mxu0 0.0
      %938 = vmatpush1.xpose.msra.mxu0 0.0
      %939 = vmatprep.subr.mxu0 0.0
      %940 = vmatpush1.xpose.msra.mxu0 0.0
      %941 = vmatprep.mubr.f32.mxu0 0.0
      %942 = vmatmul.mubr.f32.gmra.mrb[0].mxu0 %v872
      %v943 = vpop.f32.mrb[0].mxu0
      %v944 = vadd.f32 0.0, %v943
      %v945 = vpop.f32.mrb[0].mxu0
      %946 = vdwg.mxu0
      %v947 = vrot.slane %v414, 4
      %v948 = vrot.slane %v566, 4
      %v949 = vsel %vm794, %v947, 0
      %v951 = vsel %vm794, %v948, 0
      %953 = vmatprep.subr.mxu0 0.0
      %954 = vmatpush1.xpose.msra.mxu0 %v951
      %955 = vmatprep.subr.mxu0 0.0
      %956 = vmatpush1.xpose.msra.mxu0 0.0
      %957 = vmatprep.subr.mxu0 0.0
      %958 = vmatpush1.xpose.msra.mxu0 0.0
      %959 = vmatprep.subr.mxu0 0.0
      %960 = vmatpush1.xpose.msra.mxu0 0.0
      %961 = vmatprep.subr.mxu0 0.0
      %962 = vmatpush1.xpose.msra.mxu0 0.0
      %963 = vmatprep.subr.mxu0 0.0
      %964 = vmatpush1.xpose.msra.mxu0 0.0
      %965 = vmatprep.subr.mxu0 0.0
      %966 = vmatpush1.xpose.msra.mxu0 0.0
      %967 = vmatprep.subr.mxu0 0.0
      %968 = vmatpush1.xpose.msra.mxu0 0.0
      %969 = vmatprep.subr.mxu0 0.0
      %970 = vmatpush1.xpose.msra.mxu0 0.0
      %971 = vmatprep.subr.mxu0 0.0
      %972 = vmatpush1.xpose.msra.mxu0 0.0
      %973 = vmatprep.subr.mxu0 0.0
      %974 = vmatpush1.xpose.msra.mxu0 0.0
      %975 = vmatprep.subr.mxu0 0.0
      %976 = vmatpush1.xpose.msra.mxu0 0.0
      %977 = vmatprep.subr.mxu0 0.0
      %978 = vmatpush1.xpose.msra.mxu0 0.0
      %979 = vmatprep.subr.mxu0 0.0
      %980 = vmatpush1.xpose.msra.mxu0 0.0
      %981 = vmatprep.subr.mxu0 0.0
      %982 = vmatpush1.xpose.msra.mxu0 0.0
      %983 = vmatprep.subr.mxu0 0.0
      %984 = vmatpush1.xpose.msra.mxu0 0.0
      %985 = vmatprep.subr.mxu0 0.0
      %986 = vmatpush1.xpose.msra.mxu0 0.0
      %987 = vmatprep.subr.mxu0 0.0
      %988 = vmatpush1.xpose.msra.mxu0 0.0
      %989 = vmatprep.subr.mxu0 0.0
      %990 = vmatpush1.xpose.msra.mxu0 0.0
      %991 = vmatprep.subr.mxu0 0.0
      %992 = vmatpush1.xpose.msra.mxu0 0.0
      %993 = vmatprep.subr.mxu0 0.0
      %994 = vmatpush1.xpose.msra.mxu0 0.0
      %995 = vmatprep.subr.mxu0 0.0
      %996 = vmatpush1.xpose.msra.mxu0 0.0
      %997 = vmatprep.subr.mxu0 0.0
      %998 = vmatpush1.xpose.msra.mxu0 0.0
      %999 = vmatprep.subr.mxu0 0.0
      %1000 = vmatpush1.xpose.msra.mxu0 0.0
      %1001 = vmatprep.subr.mxu0 0.0
      %1002 = vmatpush1.xpose.msra.mxu0 0.0
      %1003 = vmatprep.subr.mxu0 0.0
      %1004 = vmatpush1.xpose.msra.mxu0 0.0
      %1005 = vmatprep.subr.mxu0 0.0
      %1006 = vmatpush1.xpose.msra.mxu0 0.0
      %1007 = vmatprep.subr.mxu0 0.0
      %1008 = vmatpush1.xpose.msra.mxu0 0.0
      %1009 = vmatprep.subr.mxu0 0.0
      %1010 = vmatpush1.xpose.msra.mxu0 0.0
      %1011 = vmatprep.subr.mxu0 0.0
      %1012 = vmatpush1.xpose.msra.mxu0 0.0
      %1013 = vmatprep.subr.mxu0 0.0
      %1014 = vmatpush1.xpose.msra.mxu0 0.0
      %1015 = vmatprep.subr.mxu0 0.0
      %1016 = vmatpush1.xpose.msra.mxu0 0.0
      %1017 = vmatprep.mubr.f32.mxu0 0.0
      %1018 = vmatmul.mubr.f32.gmra.mrb[0].mxu0 %v949
      %v1019 = vpop.f32.mrb[0].mxu0
      %v1020 = vadd.f32 0.0, %v1019
      %v1021 = vpop.f32.mrb[0].mxu0
      %1022 = vdwg.mxu0
      %v1023 = vrot.slane %v487, 4
      %v1024 = vrot.slane %v639, 4
      %v1025 = vsel %vm794, %v1023, 0
      %v1027 = vsel %vm794, %v1024, 0
      %1029 = vmatprep.subr.mxu0 0.0
      %1030 = vmatpush1.xpose.msra.mxu0 %v1027
      %1031 = vmatprep.subr.mxu0 0.0
      %1032 = vmatpush1.xpose.msra.mxu0 0.0
      %1033 = vmatprep.subr.mxu0 0.0
      %1034 = vmatpush1.xpose.msra.mxu0 0.0
      %1035 = vmatprep.subr.mxu0 0.0
      %1036 = vmatpush1.xpose.msra.mxu0 0.0
      %1037 = vmatprep.subr.mxu0 0.0
      %1038 = vmatpush1.xpose.msra.mxu0 0.0
      %1039 = vmatprep.subr.mxu0 0.0
      %1040 = vmatpush1.xpose.msra.mxu0 0.0
      %1041 = vmatprep.subr.mxu0 0.0
      %1042 = vmatpush1.xpose.msra.mxu0 0.0
      %1043 = vmatprep.subr.mxu0 0.0
      %1044 = vmatpush1.xpose.msra.mxu0 0.0
      %1045 = vmatprep.subr.mxu0 0.0
      %1046 = vmatpush1.xpose.msra.mxu0 0.0
      %1047 = vmatprep.subr.mxu0 0.0
      %1048 = vmatpush1.xpose.msra.mxu0 0.0
      %1049 = vmatprep.subr.mxu0 0.0
      %1050 = vmatpush1.xpose.msra.mxu0 0.0
      %1051 = vmatprep.subr.mxu0 0.0
      %1052 = vmatpush1.xpose.msra.mxu0 0.0
      %1053 = vmatprep.subr.mxu0 0.0
      %1054 = vmatpush1.xpose.msra.mxu0 0.0
      %1055 = vmatprep.subr.mxu0 0.0
      %1056 = vmatpush1.xpose.msra.mxu0 0.0
      %1057 = vmatprep.subr.mxu0 0.0
      %1058 = vmatpush1.xpose.msra.mxu0 0.0
      %1059 = vmatprep.subr.mxu0 0.0
      %1060 = vmatpush1.xpose.msra.mxu0 0.0
      %1061 = vmatprep.subr.mxu0 0.0
      %1062 = vmatpush1.xpose.msra.mxu0 0.0
      %1063 = vmatprep.subr.mxu0 0.0
      %1064 = vmatpush1.xpose.msra.mxu0 0.0
      %1065 = vmatprep.subr.mxu0 0.0
      %1066 = vmatpush1.xpose.msra.mxu0 0.0
      %1067 = vmatprep.subr.mxu0 0.0
      %1068 = vmatpush1.xpose.msra.mxu0 0.0
      %1069 = vmatprep.subr.mxu0 0.0
      %1070 = vmatpush1.xpose.msra.mxu0 0.0
      %1071 = vmatprep.subr.mxu0 0.0
      %1072 = vmatpush1.xpose.msra.mxu0 0.0
      %1073 = vmatprep.subr.mxu0 0.0
      %1074 = vmatpush1.xpose.msra.mxu0 0.0
      %1075 = vmatprep.subr.mxu0 0.0
      %1076 = vmatpush1.xpose.msra.mxu0 0.0
      %1077 = vmatprep.subr.mxu0 0.0
      %1078 = vmatpush1.xpose.msra.mxu0 0.0
      %1079 = vmatprep.subr.mxu0 0.0
      %1080 = vmatpush1.xpose.msra.mxu0 0.0
      %1081 = vmatprep.subr.mxu0 0.0
      %1082 = vmatpush1.xpose.msra.mxu0 0.0
      %1083 = vmatprep.subr.mxu0 0.0
      %1084 = vmatpush1.xpose.msra.mxu0 0.0
      %1085 = vmatprep.subr.mxu0 0.0
      %1086 = vmatpush1.xpose.msra.mxu0 0.0
      %1087 = vmatprep.subr.mxu0 0.0
      %1088 = vmatpush1.xpose.msra.mxu0 0.0
      %1089 = vmatprep.subr.mxu0 0.0
      %1090 = vmatpush1.xpose.msra.mxu0 0.0
      %1091 = vmatprep.subr.mxu0 0.0
      %1092 = vmatpush1.xpose.msra.mxu0 0.0
      %1093 = vmatprep.mubr.f32.mxu0 0.0
      %1094 = vmatmul.mubr.f32.gmra.mrb[0].mxu0 %v1025
      %v1095 = vpop.f32.mrb[0].mxu0
      %v1096 = vadd.f32 0.0, %v1095
      %v1097 = vpop.f32.mrb[0].mxu0
      %1098 = vdwg.mxu0
      %v1101 = vadd.f32 %v414, %v947
      %v1102 = vadd.f32 %v487, %v1023
      %v1105 = vadd.f32 %v566, %v948
      %v1106 = vadd.f32 %v639, %v1024
      %v1108 = vsel %vm794, %v1101, 0
      %v1111 = vsel %vm794, %v1105, 0
      %1113 = vmatprep.subr.mxu0 0.0
      %1114 = vmatpush1.xpose.msra.mxu0 %v1111
      %1115 = vmatprep.subr.mxu0 0.0
      %1116 = vmatpush1.xpose.msra.mxu0 0.0
      %1117 = vmatprep.subr.mxu0 0.0
      %1118 = vmatpush1.xpose.msra.mxu0 0.0
      %1119 = vmatprep.subr.mxu0 0.0
      %1120 = vmatpush1.xpose.msra.mxu0 0.0
      %1121 = vmatprep.subr.mxu0 0.0
      %1122 = vmatpush1.xpose.msra.mxu0 0.0
      %1123 = vmatprep.subr.mxu0 0.0
      %1124 = vmatpush1.xpose.msra.mxu0 0.0
      %1125 = vmatprep.subr.mxu0 0.0
      %1126 = vmatpush1.xpose.msra.mxu0 0.0
      %1127 = vmatprep.subr.mxu0 0.0
      %1128 = vmatpush1.xpose.msra.mxu0 0.0
      %1129 = vmatprep.subr.mxu0 0.0
      %1130 = vmatpush1.xpose.msra.mxu0 0.0
      %1131 = vmatprep.subr.mxu0 0.0
      %1132 = vmatpush1.xpose.msra.mxu0 0.0
      %1133 = vmatprep.subr.mxu0 0.0
      %1134 = vmatpush1.xpose.msra.mxu0 0.0
      %1135 = vmatprep.subr.mxu0 0.0
      %1136 = vmatpush1.xpose.msra.mxu0 0.0
      %1137 = vmatprep.subr.mxu0 0.0
      %1138 = vmatpush1.xpose.msra.mxu0 0.0
      %1139 = vmatprep.subr.mxu0 0.0
      %1140 = vmatpush1.xpose.msra.mxu0 0.0
      %1141 = vmatprep.subr.mxu0 0.0
      %1142 = vmatpush1.xpose.msra.mxu0 0.0
      %1143 = vmatprep.subr.mxu0 0.0
      %1144 = vmatpush1.xpose.msra.mxu0 0.0
      %1145 = vmatprep.subr.mxu0 0.0
      %1146 = vmatpush1.xpose.msra.mxu0 0.0
      %1147 = vmatprep.subr.mxu0 0.0
      %1148 = vmatpush1.xpose.msra.mxu0 0.0
      %1149 = vmatprep.subr.mxu0 0.0
      %1150 = vmatpush1.xpose.msra.mxu0 0.0
      %1151 = vmatprep.subr.mxu0 0.0
      %1152 = vmatpush1.xpose.msra.mxu0 0.0
      %1153 = vmatprep.subr.mxu0 0.0
      %1154 = vmatpush1.xpose.msra.mxu0 0.0
      %1155 = vmatprep.subr.mxu0 0.0
      %1156 = vmatpush1.xpose.msra.mxu0 0.0
      %1157 = vmatprep.subr.mxu0 0.0
      %1158 = vmatpush1.xpose.msra.mxu0 0.0
      %1159 = vmatprep.subr.mxu0 0.0
      %1160 = vmatpush1.xpose.msra.mxu0 0.0
      %1161 = vmatprep.subr.mxu0 0.0
      %1162 = vmatpush1.xpose.msra.mxu0 0.0
      %1163 = vmatprep.subr.mxu0 0.0
      %1164 = vmatpush1.xpose.msra.mxu0 0.0
      %1165 = vmatprep.subr.mxu0 0.0
      %1166 = vmatpush1.xpose.msra.mxu0 0.0
      %1167 = vmatprep.subr.mxu0 0.0
      %1168 = vmatpush1.xpose.msra.mxu0 0.0
      %1169 = vmatprep.subr.mxu0 0.0
      %1170 = vmatpush1.xpose.msra.mxu0 0.0
      %1171 = vmatprep.subr.mxu0 0.0
      %1172 = vmatpush1.xpose.msra.mxu0 0.0
      %1173 = vmatprep.subr.mxu0 0.0
      %1174 = vmatpush1.xpose.msra.mxu0 0.0
      %1175 = vmatprep.subr.mxu0 0.0
      %1176 = vmatpush1.xpose.msra.mxu0 0.0
      %1177 = vmatprep.mubr.f32.mxu0 0.0
      %1178 = vmatmul.mubr.f32.gmra.mrb[0].mxu0 %v1108
      %v1179 = vpop.f32.mrb[0].mxu0
      %v1180 = vadd.f32 0.0, %v1179
      %v1181 = vpop.f32.mrb[0].mxu0
      %1182 = vdwg.mxu0
      %v1184 = vsel %vm794, %v1102, 0
      %v1187 = vsel %vm794, %v1106, 0
      %1189 = vmatprep.subr.mxu0 0.0
      %1190 = vmatpush1.xpose.msra.mxu0 %v1187
      %1191 = vmatprep.subr.mxu0 0.0
      %1192 = vmatpush1.xpose.msra.mxu0 0.0
      %1193 = vmatprep.subr.mxu0 0.0
      %1194 = vmatpush1.xpose.msra.mxu0 0.0
      %1195 = vmatprep.subr.mxu0 0.0
      %1196 = vmatpush1.xpose.msra.mxu0 0.0
      %1197 = vmatprep.subr.mxu0 0.0
      %1198 = vmatpush1.xpose.msra.mxu0 0.0
      %1199 = vmatprep.subr.mxu0 0.0
      %1200 = vmatpush1.xpose.msra.mxu0 0.0
      %1201 = vmatprep.subr.mxu0 0.0
      %1202 = vmatpush1.xpose.msra.mxu0 0.0
      %1203 = vmatprep.subr.mxu0 0.0
      %1204 = vmatpush1.xpose.msra.mxu0 0.0
      %1205 = vmatprep.subr.mxu0 0.0
      %1206 = vmatpush1.xpose.msra.mxu0 0.0
      %1207 = vmatprep.subr.mxu0 0.0
      %1208 = vmatpush1.xpose.msra.mxu0 0.0
      %1209 = vmatprep.subr.mxu0 0.0
      %1210 = vmatpush1.xpose.msra.mxu0 0.0
      %1211 = vmatprep.subr.mxu0 0.0
      %1212 = vmatpush1.xpose.msra.mxu0 0.0
      %1213 = vmatprep.subr.mxu0 0.0
      %1214 = vmatpush1.xpose.msra.mxu0 0.0
      %1215 = vmatprep.subr.mxu0 0.0
      %1216 = vmatpush1.xpose.msra.mxu0 0.0
      %1217 = vmatprep.subr.mxu0 0.0
      %1218 = vmatpush1.xpose.msra.mxu0 0.0
      %1219 = vmatprep.subr.mxu0 0.0
      %1220 = vmatpush1.xpose.msra.mxu0 0.0
      %1221 = vmatprep.subr.mxu0 0.0
      %1222 = vmatpush1.xpose.msra.mxu0 0.0
      %1223 = vmatprep.subr.mxu0 0.0
      %1224 = vmatpush1.xpose.msra.mxu0 0.0
      %1225 = vmatprep.subr.mxu0 0.0
      %1226 = vmatpush1.xpose.msra.mxu0 0.0
      %1227 = vmatprep.subr.mxu0 0.0
      %1228 = vmatpush1.xpose.msra.mxu0 0.0
      %1229 = vmatprep.subr.mxu0 0.0
      %1230 = vmatpush1.xpose.msra.mxu0 0.0
      %1231 = vmatprep.subr.mxu0 0.0
      %1232 = vmatpush1.xpose.msra.mxu0 0.0
      %1233 = vmatprep.subr.mxu0 0.0
      %1234 = vmatpush1.xpose.msra.mxu0 0.0
      %1235 = vmatprep.subr.mxu0 0.0
      %1236 = vmatpush1.xpose.msra.mxu0 0.0
      %1237 = vmatprep.subr.mxu0 0.0
      %1238 = vmatpush1.xpose.msra.mxu0 0.0
      %1239 = vmatprep.subr.mxu0 0.0
      %1240 = vmatpush1.xpose.msra.mxu0 0.0
      %1241 = vmatprep.subr.mxu0 0.0
      %1242 = vmatpush1.xpose.msra.mxu0 0.0
      %1243 = vmatprep.subr.mxu0 0.0
      %1244 = vmatpush1.xpose.msra.mxu0 0.0
      %1245 = vmatprep.subr.mxu0 0.0
      %1246 = vmatpush1.xpose.msra.mxu0 0.0
      %1247 = vmatprep.subr.mxu0 0.0
      %1248 = vmatpush1.xpose.msra.mxu0 0.0
      %1249 = vmatprep.subr.mxu0 0.0
      %1250 = vmatpush1.xpose.msra.mxu0 0.0
      %1251 = vmatprep.subr.mxu0 0.0
      %1252 = vmatpush1.xpose.msra.mxu0 0.0
      %1253 = vmatprep.mubr.f32.mxu0 0.0
      %1254 = vmatmul.mubr.f32.gmra.mrb[0].mxu0 %v1184
      %v1255 = vpop.f32.mrb[0].mxu0
      %v1256 = vadd.f32 0.0, %v1255
      %v1257 = vpop.f32.mrb[0].mxu0
      %1258 = vdwg.mxu0
      %v1259 = vsub.f32 %v868, %v1020
      %v1260 = vsub.f32 %v944, %v1096
      %v1261 = vtanh.pop %v1259
      %v1262 = vtanh.pop %v1260
      %v1263 = vsub.f32 %v1180, %v868
      %v1264 = vsub.f32 %v1256, %v944
      %v1265 = vsub.f32 %v1263, %v1020
      %v1266 = vsub.f32 %v1264, %v1096
      %v1267 = vtanh.pop %v1265
      %v1268 = vtanh.pop %v1266
      %v1270 = vsel %vm794, %v1261, 0
      %vm1272 = vcmask 1043456
      %v1274 = vsel %vm1272, %v718, 0
      %1276 = vmatprep.subr.mxu0 0.0
      %1277 = vmatpush1.msra.mxu0 %v1274
      %1278 = vmatprep.subr.mxu0 0.0
      %1279 = vmatpush1.msra.mxu0 0.0
      %1280 = vmatprep.subr.mxu0 0.0
      %1281 = vmatpush1.msra.mxu0 0.0
      %1282 = vmatprep.subr.mxu0 0.0
      %1283 = vmatpush1.msra.mxu0 0.0
      %1284 = vmatprep.subr.mxu0 0.0
      %1285 = vmatpush1.msra.mxu0 0.0
      %1286 = vmatprep.subr.mxu0 0.0
      %1287 = vmatpush1.msra.mxu0 0.0
      %1288 = vmatprep.subr.mxu0 0.0
      %1289 = vmatpush1.msra.mxu0 0.0
      %1290 = vmatprep.subr.mxu0 0.0
      %1291 = vmatpush1.msra.mxu0 0.0
      %1292 = vmatprep.subr.mxu0 0.0
      %1293 = vmatpush1.msra.mxu0 0.0
      %1294 = vmatprep.subr.mxu0 0.0
      %1295 = vmatpush1.msra.mxu0 0.0
      %1296 = vmatprep.subr.mxu0 0.0
      %1297 = vmatpush1.msra.mxu0 0.0
      %1298 = vmatprep.subr.mxu0 0.0
      %1299 = vmatpush1.msra.mxu0 0.0
      %1300 = vmatprep.subr.mxu0 0.0
      %1301 = vmatpush1.msra.mxu0 0.0
      %1302 = vmatprep.subr.mxu0 0.0
      %1303 = vmatpush1.msra.mxu0 0.0
      %1304 = vmatprep.subr.mxu0 0.0
      %1305 = vmatpush1.msra.mxu0 0.0
      %1306 = vmatprep.subr.mxu0 0.0
      %1307 = vmatpush1.msra.mxu0 0.0
      %1308 = vmatprep.subr.mxu0 0.0
      %1309 = vmatpush1.msra.mxu0 0.0
      %1310 = vmatprep.subr.mxu0 0.0
      %1311 = vmatpush1.msra.mxu0 0.0
      %1312 = vmatprep.subr.mxu0 0.0
      %1313 = vmatpush1.msra.mxu0 0.0
      %1314 = vmatprep.subr.mxu0 0.0
      %1315 = vmatpush1.msra.mxu0 0.0
      %1316 = vmatprep.subr.mxu0 0.0
      %1317 = vmatpush1.msra.mxu0 0.0
      %1318 = vmatprep.subr.mxu0 0.0
      %1319 = vmatpush1.msra.mxu0 0.0
      %1320 = vmatprep.subr.mxu0 0.0
      %1321 = vmatpush1.msra.mxu0 0.0
      %1322 = vmatprep.subr.mxu0 0.0
      %1323 = vmatpush1.msra.mxu0 0.0
      %1324 = vmatprep.subr.mxu0 0.0
      %1325 = vmatpush1.msra.mxu0 0.0
      %1326 = vmatprep.subr.mxu0 0.0
      %1327 = vmatpush1.msra.mxu0 0.0
      %1328 = vmatprep.subr.mxu0 0.0
      %1329 = vmatpush1.msra.mxu0 0.0
      %1330 = vmatprep.subr.mxu0 0.0
      %1331 = vmatpush1.msra.mxu0 0.0
      %1332 = vmatprep.subr.mxu0 0.0
      %1333 = vmatpush1.msra.mxu0 0.0
      %1334 = vmatprep.subr.mxu0 0.0
      %1335 = vmatpush1.msra.mxu0 0.0
      %1336 = vmatprep.subr.mxu0 0.0
      %1337 = vmatpush1.msra.mxu0 0.0
      %1338 = vmatprep.subr.mxu0 0.0
      %1339 = vmatpush1.msra.mxu0 0.0
      %1340 = vmatprep.mubr.f32.mxu0 0.0
      %1341 = vmatmul.mubr.f32.gmra.mrb[0].mxu0 %v1270
      %v1342 = vpop.f32.mrb[0].mxu0
      %v1343 = vadd.f32 0.0, %v1342
      %v1344 = vpop.f32.mrb[0].mxu0
      %1345 = vdwg.mxu0
      %v1347 = vsel %vm794, %v1262, 0
      %v1350 = vsel %vm1272, %v791, 0
      %1352 = vmatprep.subr.mxu0 0.0
      %1353 = vmatpush1.msra.mxu0 %v1350
      %1354 = vmatprep.subr.mxu0 0.0
      %1355 = vmatpush1.msra.mxu0 0.0
      %1356 = vmatprep.subr.mxu0 0.0
      %1357 = vmatpush1.msra.mxu0 0.0
      %1358 = vmatprep.subr.mxu0 0.0
      %1359 = vmatpush1.msra.mxu0 0.0
      %1360 = vmatprep.subr.mxu0 0.0
      %1361 = vmatpush1.msra.mxu0 0.0
      %1362 = vmatprep.subr.mxu0 0.0
      %1363 = vmatpush1.msra.mxu0 0.0
      %1364 = vmatprep.subr.mxu0 0.0
      %1365 = vmatpush1.msra.mxu0 0.0
      %1366 = vmatprep.subr.mxu0 0.0
      %1367 = vmatpush1.msra.mxu0 0.0
      %1368 = vmatprep.subr.mxu0 0.0
      %1369 = vmatpush1.msra.mxu0 0.0
      %1370 = vmatprep.subr.mxu0 0.0
      %1371 = vmatpush1.msra.mxu0 0.0
      %1372 = vmatprep.subr.mxu0 0.0
      %1373 = vmatpush1.msra.mxu0 0.0
      %1374 = vmatprep.subr.mxu0 0.0
      %1375 = vmatpush1.msra.mxu0 0.0
      %1376 = vmatprep.subr.mxu0 0.0
      %1377 = vmatpush1.msra.mxu0 0.0
      %1378 = vmatprep.subr.mxu0 0.0
      %1379 = vmatpush1.msra.mxu0 0.0
      %1380 = vmatprep.subr.mxu0 0.0
      %1381 = vmatpush1.msra.mxu0 0.0
      %1382 = vmatprep.subr.mxu0 0.0
      %1383 = vmatpush1.msra.mxu0 0.0
      %1384 = vmatprep.subr.mxu0 0.0
      %1385 = vmatpush1.msra.mxu0 0.0
      %1386 = vmatprep.subr.mxu0 0.0
      %1387 = vmatpush1.msra.mxu0 0.0
      %1388 = vmatprep.subr.mxu0 0.0
      %1389 = vmatpush1.msra.mxu0 0.0
      %1390 = vmatprep.subr.mxu0 0.0
      %1391 = vmatpush1.msra.mxu0 0.0
      %1392 = vmatprep.subr.mxu0 0.0
      %1393 = vmatpush1.msra.mxu0 0.0
      %1394 = vmatprep.subr.mxu0 0.0
      %1395 = vmatpush1.msra.mxu0 0.0
      %1396 = vmatprep.subr.mxu0 0.0
      %1397 = vmatpush1.msra.mxu0 0.0
      %1398 = vmatprep.subr.mxu0 0.0
      %1399 = vmatpush1.msra.mxu0 0.0
      %1400 = vmatprep.subr.mxu0 0.0
      %1401 = vmatpush1.msra.mxu0 0.0
      %1402 = vmatprep.subr.mxu0 0.0
      %1403 = vmatpush1.msra.mxu0 0.0
      %1404 = vmatprep.subr.mxu0 0.0
      %1405 = vmatpush1.msra.mxu0 0.0
      %1406 = vmatprep.subr.mxu0 0.0
      %1407 = vmatpush1.msra.mxu0 0.0
      %1408 = vmatprep.subr.mxu0 0.0
      %1409 = vmatpush1.msra.mxu0 0.0
      %1410 = vmatprep.subr.mxu0 0.0
      %1411 = vmatpush1.msra.mxu0 0.0
      %1412 = vmatprep.subr.mxu0 0.0
      %1413 = vmatpush1.msra.mxu0 0.0
      %1414 = vmatprep.subr.mxu0 0.0
      %1415 = vmatpush1.msra.mxu0 0.0
      %1416 = vmatprep.mubr.f32.mxu0 0.0
      %1417 = vmatmul.mubr.f32.gmra.mrb[0].mxu0 %v1347
      %v1418 = vpop.f32.mrb[0].mxu0
      %v1419 = vadd.f32 0.0, %v1418
      %v1420 = vpop.f32.mrb[0].mxu0
      %1421 = vdwg.mxu0
      %v1422 = vrot.slane %v718, 4
      %v1424 = vsel %vm794, %v1267, 0
      %v1426 = vsel %vm1272, %v1422, 0
      %1428 = vmatprep.subr.mxu0 0.0
      %1429 = vmatpush1.msra.mxu0 %v1426
      %1430 = vmatprep.subr.mxu0 0.0
      %1431 = vmatpush1.msra.mxu0 0.0
      %1432 = vmatprep.subr.mxu0 0.0
      %1433 = vmatpush1.msra.mxu0 0.0
      %1434 = vmatprep.subr.mxu0 0.0
      %1435 = vmatpush1.msra.mxu0 0.0
      %1436 = vmatprep.subr.mxu0 0.0
      %1437 = vmatpush1.msra.mxu0 0.0
      %1438 = vmatprep.subr.mxu0 0.0
      %1439 = vmatpush1.msra.mxu0 0.0
      %1440 = vmatprep.subr.mxu0 0.0
      %1441 = vmatpush1.msra.mxu0 0.0
      %1442 = vmatprep.subr.mxu0 0.0
      %1443 = vmatpush1.msra.mxu0 0.0
      %1444 = vmatprep.subr.mxu0 0.0
      %1445 = vmatpush1.msra.mxu0 0.0
      %1446 = vmatprep.subr.mxu0 0.0
      %1447 = vmatpush1.msra.mxu0 0.0
      %1448 = vmatprep.subr.mxu0 0.0
      %1449 = vmatpush1.msra.mxu0 0.0
      %1450 = vmatprep.subr.mxu0 0.0
      %1451 = vmatpush1.msra.mxu0 0.0
      %1452 = vmatprep.subr.mxu0 0.0
      %1453 = vmatpush1.msra.mxu0 0.0
      %1454 = vmatprep.subr.mxu0 0.0
      %1455 = vmatpush1.msra.mxu0 0.0
      %1456 = vmatprep.subr.mxu0 0.0
      %1457 = vmatpush1.msra.mxu0 0.0
      %1458 = vmatprep.subr.mxu0 0.0
      %1459 = vmatpush1.msra.mxu0 0.0
      %1460 = vmatprep.subr.mxu0 0.0
      %1461 = vmatpush1.msra.mxu0 0.0
      %1462 = vmatprep.subr.mxu0 0.0
      %1463 = vmatpush1.msra.mxu0 0.0
      %1464 = vmatprep.subr.mxu0 0.0
      %1465 = vmatpush1.msra.mxu0 0.0
      %1466 = vmatprep.subr.mxu0 0.0
      %1467 = vmatpush1.msra.mxu0 0.0
      %1468 = vmatprep.subr.mxu0 0.0
      %1469 = vmatpush1.msra.mxu0 0.0
      %1470 = vmatprep.subr.mxu0 0.0
      %1471 = vmatpush1.msra.mxu0 0.0
      %1472 = vmatprep.subr.mxu0 0.0
      %1473 = vmatpush1.msra.mxu0 0.0
      %1474 = vmatprep.subr.mxu0 0.0
      %1475 = vmatpush1.msra.mxu0 0.0
      %1476 = vmatprep.subr.mxu0 0.0
      %1477 = vmatpush1.msra.mxu0 0.0
      %1478 = vmatprep.subr.mxu0 0.0
      %1479 = vmatpush1.msra.mxu0 0.0
      %1480 = vmatprep.subr.mxu0 0.0
      %1481 = vmatpush1.msra.mxu0 0.0
      %1482 = vmatprep.subr.mxu0 0.0
      %1483 = vmatpush1.msra.mxu0 0.0
      %1484 = vmatprep.subr.mxu0 0.0
      %1485 = vmatpush1.msra.mxu0 0.0
      %1486 = vmatprep.subr.mxu0 0.0
      %1487 = vmatpush1.msra.mxu0 0.0
      %1488 = vmatprep.subr.mxu0 0.0
      %1489 = vmatpush1.msra.mxu0 0.0
      %1490 = vmatprep.subr.mxu0 0.0
      %1491 = vmatpush1.msra.mxu0 0.0
      %1492 = vmatprep.mubr.f32.mxu0 0.0
      %1493 = vmatmul.mubr.f32.gmra.mrb[0].mxu0 %v1424
      %v1494 = vpop.f32.mrb[0].mxu0
      %v1495 = vadd.f32 0.0, %v1494
      %v1496 = vpop.f32.mrb[0].mxu0
      %1497 = vdwg.mxu0
      %v1498 = vrot.slane %v791, 4
      %v1500 = vsel %vm794, %v1268, 0
      %v1502 = vsel %vm1272, %v1498, 0
      %1504 = vmatprep.subr.mxu0 0.0
      %1505 = vmatpush1.msra.mxu0 %v1502
      %1506 = vmatprep.subr.mxu0 0.0
      %1507 = vmatpush1.msra.mxu0 0.0
      %1508 = vmatprep.subr.mxu0 0.0
      %1509 = vmatpush1.msra.mxu0 0.0
      %1510 = vmatprep.subr.mxu0 0.0
      %1511 = vmatpush1.msra.mxu0 0.0
      %1512 = vmatprep.subr.mxu0 0.0
      %1513 = vmatpush1.msra.mxu0 0.0
      %1514 = vmatprep.subr.mxu0 0.0
      %1515 = vmatpush1.msra.mxu0 0.0
      %1516 = vmatprep.subr.mxu0 0.0
      %1517 = vmatpush1.msra.mxu0 0.0
      %1518 = vmatprep.subr.mxu0 0.0
      %1519 = vmatpush1.msra.mxu0 0.0
      %1520 = vmatprep.subr.mxu0 0.0
      %1521 = vmatpush1.msra.mxu0 0.0
      %1522 = vmatprep.subr.mxu0 0.0
      %1523 = vmatpush1.msra.mxu0 0.0
      %1524 = vmatprep.subr.mxu0 0.0
      %1525 = vmatpush1.msra.mxu0 0.0
      %1526 = vmatprep.subr.mxu0 0.0
      %1527 = vmatpush1.msra.mxu0 0.0
      %1528 = vmatprep.subr.mxu0 0.0
      %1529 = vmatpush1.msra.mxu0 0.0
      %1530 = vmatprep.subr.mxu0 0.0
      %1531 = vmatpush1.msra.mxu0 0.0
      %1532 = vmatprep.subr.mxu0 0.0
      %1533 = vmatpush1.msra.mxu0 0.0
      %1534 = vmatprep.subr.mxu0 0.0
      %1535 = vmatpush1.msra.mxu0 0.0
      %1536 = vmatprep.subr.mxu0 0.0
      %1537 = vmatpush1.msra.mxu0 0.0
      %1538 = vmatprep.subr.mxu0 0.0
      %1539 = vmatpush1.msra.mxu0 0.0
      %1540 = vmatprep.subr.mxu0 0.0
      %1541 = vmatpush1.msra.mxu0 0.0
      %1542 = vmatprep.subr.mxu0 0.0
      %1543 = vmatpush1.msra.mxu0 0.0
      %1544 = vmatprep.subr.mxu0 0.0
      %1545 = vmatpush1.msra.mxu0 0.0
      %1546 = vmatprep.subr.mxu0 0.0
      %1547 = vmatpush1.msra.mxu0 0.0
      %1548 = vmatprep.subr.mxu0 0.0
      %1549 = vmatpush1.msra.mxu0 0.0
      %1550 = vmatprep.subr.mxu0 0.0
      %1551 = vmatpush1.msra.mxu0 0.0
      %1552 = vmatprep.subr.mxu0 0.0
      %1553 = vmatpush1.msra.mxu0 0.0
      %1554 = vmatprep.subr.mxu0 0.0
      %1555 = vmatpush1.msra.mxu0 0.0
      %1556 = vmatprep.subr.mxu0 0.0
      %1557 = vmatpush1.msra.mxu0 0.0
      %1558 = vmatprep.subr.mxu0 0.0
      %1559 = vmatpush1.msra.mxu0 0.0
      %1560 = vmatprep.subr.mxu0 0.0
      %1561 = vmatpush1.msra.mxu0 0.0
      %1562 = vmatprep.subr.mxu0 0.0
      %1563 = vmatpush1.msra.mxu0 0.0
      %1564 = vmatprep.subr.mxu0 0.0
      %1565 = vmatpush1.msra.mxu0 0.0
      %1566 = vmatprep.subr.mxu0 0.0
      %1567 = vmatpush1.msra.mxu0 0.0
      %1568 = vmatprep.mubr.f32.mxu0 0.0
      %1569 = vmatmul.mubr.f32.gmra.mrb[0].mxu0 %v1500
      %v1570 = vpop.f32.mrb[0].mxu0
      %v1571 = vadd.f32 0.0, %v1570
      %v1572 = vpop.f32.mrb[0].mxu0
      %1573 = vdwg.mxu0
      %v1574 = vadd.f32 %v1261, %v1267
      %v1575 = vadd.f32 %v1262, %v1268
      %v1578 = vadd.f32 %v718, %v1422
      %v1579 = vadd.f32 %v791, %v1498
      %v1581 = vsel %vm794, %v1574, 0
      %v1584 = vsel %vm1272, %v1578, 0
      %1586 = vmatprep.subr.mxu0 0.0
      %1587 = vmatpush1.msra.mxu0 %v1584
      %1588 = vmatprep.subr.mxu0 0.0
      %1589 = vmatpush1.msra.mxu0 0.0
      %1590 = vmatprep.subr.mxu0 0.0
      %1591 = vmatpush1.msra.mxu0 0.0
      %1592 = vmatprep.subr.mxu0 0.0
      %1593 = vmatpush1.msra.mxu0 0.0
      %1594 = vmatprep.subr.mxu0 0.0
      %1595 = vmatpush1.msra.mxu0 0.0
      %1596 = vmatprep.subr.mxu0 0.0
      %1597 = vmatpush1.msra.mxu0 0.0
      %1598 = vmatprep.subr.mxu0 0.0
      %1599 = vmatpush1.msra.mxu0 0.0
      %1600 = vmatprep.subr.mxu0 0.0
      %1601 = vmatpush1.msra.mxu0 0.0
      %1602 = vmatprep.subr.mxu0 0.0
      %1603 = vmatpush1.msra.mxu0 0.0
      %1604 = vmatprep.subr.mxu0 0.0
      %1605 = vmatpush1.msra.mxu0 0.0
      %1606 = vmatprep.subr.mxu0 0.0
      %1607 = vmatpush1.msra.mxu0 0.0
      %1608 = vmatprep.subr.mxu0 0.0
      %1609 = vmatpush1.msra.mxu0 0.0
      %1610 = vmatprep.subr.mxu0 0.0
      %1611 = vmatpush1.msra.mxu0 0.0
      %1612 = vmatprep.subr.mxu0 0.0
      %1613 = vmatpush1.msra.mxu0 0.0
      %1614 = vmatprep.subr.mxu0 0.0
      %1615 = vmatpush1.msra.mxu0 0.0
      %1616 = vmatprep.subr.mxu0 0.0
      %1617 = vmatpush1.msra.mxu0 0.0
      %1618 = vmatprep.subr.mxu0 0.0
      %1619 = vmatpush1.msra.mxu0 0.0
      %1620 = vmatprep.subr.mxu0 0.0
      %1621 = vmatpush1.msra.mxu0 0.0
      %1622 = vmatprep.subr.mxu0 0.0
      %1623 = vmatpush1.msra.mxu0 0.0
      %1624 = vmatprep.subr.mxu0 0.0
      %1625 = vmatpush1.msra.mxu0 0.0
      %1626 = vmatprep.subr.mxu0 0.0
      %1627 = vmatpush1.msra.mxu0 0.0
      %1628 = vmatprep.subr.mxu0 0.0
      %1629 = vmatpush1.msra.mxu0 0.0
      %1630 = vmatprep.subr.mxu0 0.0
      %1631 = vmatpush1.msra.mxu0 0.0
      %1632 = vmatprep.subr.mxu0 0.0
      %1633 = vmatpush1.msra.mxu0 0.0
      %1634 = vmatprep.subr.mxu0 0.0
      %1635 = vmatpush1.msra.mxu0 0.0
      %1636 = vmatprep.subr.mxu0 0.0
      %1637 = vmatpush1.msra.mxu0 0.0
      %1638 = vmatprep.subr.mxu0 0.0
      %1639 = vmatpush1.msra.mxu0 0.0
      %1640 = vmatprep.subr.mxu0 0.0
      %1641 = vmatpush1.msra.mxu0 0.0
      %1642 = vmatprep.subr.mxu0 0.0
      %1643 = vmatpush1.msra.mxu0 0.0
      %1644 = vmatprep.subr.mxu0 0.0
      %1645 = vmatpush1.msra.mxu0 0.0
      %1646 = vmatprep.subr.mxu0 0.0
      %1647 = vmatpush1.msra.mxu0 0.0
      %1648 = vmatprep.subr.mxu0 0.0
      %1649 = vmatpush1.msra.mxu0 0.0
      %1650 = vmatprep.mubr.f32.mxu0 0.0
      %1651 = vmatmul.mubr.f32.gmra.mrb[0].mxu0 %v1581
      %v1652 = vpop.f32.mrb[0].mxu0
      %v1653 = vadd.f32 0.0, %v1652
      %v1654 = vpop.f32.mrb[0].mxu0
      %1655 = vdwg.mxu0
      %v1657 = vsel %vm794, %v1575, 0
      %v1660 = vsel %vm1272, %v1579, 0
      %1662 = vmatprep.subr.mxu0 0.0
      %1663 = vmatpush1.msra.mxu0 %v1660
      %1664 = vmatprep.subr.mxu0 0.0
      %1665 = vmatpush1.msra.mxu0 0.0
      %1666 = vmatprep.subr.mxu0 0.0
      %1667 = vmatpush1.msra.mxu0 0.0
      %1668 = vmatprep.subr.mxu0 0.0
      %1669 = vmatpush1.msra.mxu0 0.0
      %1670 = vmatprep.subr.mxu0 0.0
      %1671 = vmatpush1.msra.mxu0 0.0
      %1672 = vmatprep.subr.mxu0 0.0
      %1673 = vmatpush1.msra.mxu0 0.0
      %1674 = vmatprep.subr.mxu0 0.0
      %1675 = vmatpush1.msra.mxu0 0.0
      %1676 = vmatprep.subr.mxu0 0.0
      %1677 = vmatpush1.msra.mxu0 0.0
      %1678 = vmatprep.subr.mxu0 0.0
      %1679 = vmatpush1.msra.mxu0 0.0
      %1680 = vmatprep.subr.mxu0 0.0
      %1681 = vmatpush1.msra.mxu0 0.0
      %1682 = vmatprep.subr.mxu0 0.0
      %1683 = vmatpush1.msra.mxu0 0.0
      %1684 = vmatprep.subr.mxu0 0.0
      %1685 = vmatpush1.msra.mxu0 0.0
      %1686 = vmatprep.subr.mxu0 0.0
      %1687 = vmatpush1.msra.mxu0 0.0
      %1688 = vmatprep.subr.mxu0 0.0
      %1689 = vmatpush1.msra.mxu0 0.0
      %1690 = vmatprep.subr.mxu0 0.0
      %1691 = vmatpush1.msra.mxu0 0.0
      %1692 = vmatprep.subr.mxu0 0.0
      %1693 = vmatpush1.msra.mxu0 0.0
      %1694 = vmatprep.subr.mxu0 0.0
      %1695 = vmatpush1.msra.mxu0 0.0
      %1696 = vmatprep.subr.mxu0 0.0
      %1697 = vmatpush1.msra.mxu0 0.0
      %1698 = vmatprep.subr.mxu0 0.0
      %1699 = vmatpush1.msra.mxu0 0.0
      %1700 = vmatprep.subr.mxu0 0.0
      %1701 = vmatpush1.msra.mxu0 0.0
      %1702 = vmatprep.subr.mxu0 0.0
      %1703 = vmatpush1.msra.mxu0 0.0
      %1704 = vmatprep.subr.mxu0 0.0
      %1705 = vmatpush1.msra.mxu0 0.0
      %1706 = vmatprep.subr.mxu0 0.0
      %1707 = vmatpush1.msra.mxu0 0.0
      %1708 = vmatprep.subr.mxu0 0.0
      %1709 = vmatpush1.msra.mxu0 0.0
      %1710 = vmatprep.subr.mxu0 0.0
      %1711 = vmatpush1.msra.mxu0 0.0
      %1712 = vmatprep.subr.mxu0 0.0
      %1713 = vmatpush1.msra.mxu0 0.0
      %1714 = vmatprep.subr.mxu0 0.0
      %1715 = vmatpush1.msra.mxu0 0.0
      %1716 = vmatprep.subr.mxu0 0.0
      %1717 = vmatpush1.msra.mxu0 0.0
      %1718 = vmatprep.subr.mxu0 0.0
      %1719 = vmatpush1.msra.mxu0 0.0
      %1720 = vmatprep.subr.mxu0 0.0
      %1721 = vmatpush1.msra.mxu0 0.0
      %1722 = vmatprep.subr.mxu0 0.0
      %1723 = vmatpush1.msra.mxu0 0.0
      %1724 = vmatprep.subr.mxu0 0.0
      %1725 = vmatpush1.msra.mxu0 0.0
      %1726 = vmatprep.mubr.f32.mxu0 0.0
      %1727 = vmatmul.mubr.f32.gmra.mrb[0].mxu0 %v1657
      %v1728 = vpop.f32.mrb[0].mxu0
      %v1729 = vadd.f32 0.0, %v1728
      %v1730 = vpop.f32.mrb[0].mxu0
      %1731 = vdwg.mxu0
      %v1732 = vsub.f32 %v1343, %v1495
      %v1733 = vsub.f32 %v1419, %v1571
      %v1734 = vsub.f32 %v1653, %v1343
      %v1735 = vsub.f32 %v1729, %v1419
      %v1736 = vsub.f32 %v1734, %v1495
      %v1737 = vsub.f32 %v1735, %v1571
      %v1740 = vunpack.c.l.s4 1966171168
      %v1741 = vunpack.c.0.s8 %v1740
      %v1742 = vlaneseq
      %v1743 = vshrl.u32 %v1742, 7
      %v1744 = vsub.s32 %v1741, %v1743
      %v1745 = vrot.slane %v1732, %v1744
      %v1746 = vcombine.high %v1745, %v1745
      %v1748 = vunpack.c.l.s4 1966171168
      %v1749 = vunpack.c.0.s8 %v1748
      %v1750 = vlaneseq
      %v1751 = vshrl.u32 %v1750, 7
      %v1752 = vsub.s32 %v1749, %v1751
      %v1753 = vrot.slane %v1745, %v1752
      %v1755 = vunpack.c.l.s4 1966171168
      %v1756 = vunpack.c.0.s8 %v1755
      %v1757 = vlaneseq
      %v1758 = vshrl.u32 %v1757, 7
      %v1759 = vsub.s32 %v1756, %v1758
      %v1760 = vrot.slane %v1746, %v1759
      %v1761 = vcombine.high %v1753, %v1753
      %v1762 = vcombine.high %v1760, %v1760
      %v1769 = vunpack.c.l.s4 1966171168
      %v1770 = vunpack.c.0.s8 %v1769
      %v1771 = vlaneseq
      %v1772 = vshrl.u32 %v1771, 7
      %v1773 = vsub.s32 %v1770, %v1772
      %v1774 = vrot.slane %v1733, %v1773
      %v1775 = vcombine.high %v1774, %v1774
      %v1777 = vunpack.c.l.s4 1966171168
      %v1778 = vunpack.c.0.s8 %v1777
      %v1779 = vlaneseq
      %v1780 = vshrl.u32 %v1779, 7
      %v1781 = vsub.s32 %v1778, %v1780
      %v1782 = vrot.slane %v1774, %v1781
      %v1784 = vunpack.c.l.s4 1966171168
      %v1785 = vunpack.c.0.s8 %v1784
      %v1786 = vlaneseq
      %v1787 = vshrl.u32 %v1786, 7
      %v1788 = vsub.s32 %v1785, %v1787
      %v1789 = vrot.slane %v1775, %v1788
      %v1790 = vcombine.high %v1782, %v1782
      %v1791 = vcombine.high %v1789, %v1789
      %v1794 = vunpack.c.l.s4 1966171168
      %v1795 = vunpack.c.0.s8 %v1794
      %v1796 = vlaneseq
      %v1797 = vshrl.u32 %v1796, 7
      %v1798 = vsub.s32 %v1795, %v1797
      %v1799 = vrot.slane %v1736, %v1798
      %v1800 = vcombine.high %v1799, %v1799
      %v1802 = vunpack.c.l.s4 1966171168
      %v1803 = vunpack.c.0.s8 %v1802
      %v1804 = vlaneseq
      %v1805 = vshrl.u32 %v1804, 7
      %v1806 = vsub.s32 %v1803, %v1805
      %v1807 = vrot.slane %v1799, %v1806
      %v1809 = vunpack.c.l.s4 1966171168
      %v1810 = vunpack.c.0.s8 %v1809
      %v1811 = vlaneseq
      %v1812 = vshrl.u32 %v1811, 7
      %v1813 = vsub.s32 %v1810, %v1812
      %v1814 = vrot.slane %v1800, %v1813
      %v1815 = vcombine.high %v1807, %v1807
      %v1816 = vcombine.high %v1814, %v1814
      %v1819 = vunpack.c.l.s4 1966171168
      %v1820 = vunpack.c.0.s8 %v1819
      %v1821 = vlaneseq
      %v1822 = vshrl.u32 %v1821, 7
      %v1823 = vsub.s32 %v1820, %v1822
      %v1824 = vrot.slane %v1737, %v1823
      %v1825 = vcombine.high %v1824, %v1824
      %v1827 = vunpack.c.l.s4 1966171168
      %v1828 = vunpack.c.0.s8 %v1827
      %v1829 = vlaneseq
      %v1830 = vshrl.u32 %v1829, 7
      %v1831 = vsub.s32 %v1828, %v1830
      %v1832 = vrot.slane %v1824, %v1831
      %v1834 = vunpack.c.l.s4 1966171168
      %v1835 = vunpack.c.0.s8 %v1834
      %v1836 = vlaneseq
      %v1837 = vshrl.u32 %v1836, 7
      %v1838 = vsub.s32 %v1835, %v1837
      %v1839 = vrot.slane %v1825, %v1838
      %v1840 = vcombine.high %v1832, %v1832
      %v1841 = vcombine.high %v1839, %v1839
      %v1842 = vlaneseq
      %v1843 = vshrl.u32 %v1842, 7
      %v1844 = vsub.s32 0, %v1843
      %v1845 = vrot.slane %v1782, %v1844
      %v1846 = vlaneseq
      %v1847 = vshrl.u32 %v1846, 7
      %v1848 = vsub.s32 0, %v1847
      %v1849 = vrot.slane %v1789, %v1848
      %v1850 = vlaneseq
      %v1851 = vshrl.u32 %v1850, 7
      %v1852 = vsub.s32 0, %v1851
      %v1853 = vrot.slane %v1790, %v1852
      %v1854 = vlaneseq
      %v1855 = vshrl.u32 %v1854, 7
      %v1856 = vsub.s32 0, %v1855
      %v1857 = vrot.slane %v1791, %v1856
      %v1862 = vlaneseq
      %v1863 = vshrl.u32 %v1862, 7
      %v1864 = vsub.s32 0, %v1863
      %v1865 = vrot.slane %v1807, %v1864
      %v1866 = vlaneseq
      %v1867 = vshrl.u32 %v1866, 7
      %v1868 = vsub.s32 0, %v1867
      %v1869 = vrot.slane %v1814, %v1868
      %v1870 = vlaneseq
      %v1871 = vshrl.u32 %v1870, 7
      %v1872 = vsub.s32 0, %v1871
      %v1873 = vrot.slane %v1815, %v1872
      %v1874 = vlaneseq
      %v1875 = vshrl.u32 %v1874, 7
      %v1876 = vsub.s32 0, %v1875
      %v1877 = vrot.slane %v1816, %v1876
      %v1882 = vlaneseq
      %v1883 = vshrl.u32 %v1882, 7
      %v1884 = vsub.s32 0, %v1883
      %v1885 = vrot.slane %v1832, %v1884
      %v1886 = vlaneseq
      %v1887 = vshrl.u32 %v1886, 7
      %v1888 = vsub.s32 0, %v1887
      %v1889 = vrot.slane %v1839, %v1888
      %v1890 = vlaneseq
      %v1891 = vshrl.u32 %v1890, 7
      %v1892 = vsub.s32 0, %v1891
      %v1893 = vrot.slane %v1840, %v1892
      %v1894 = vlaneseq
      %v1895 = vshrl.u32 %v1894, 7
      %v1896 = vsub.s32 0, %v1895
      %v1897 = vrot.slane %v1841, %v1896
      %vm1902 = vcmask 1040384
      %v1903 = vsel %vm1902, %v1753, %v1845
      %v1904 = vsel %vm1902, %v1760, %v1849
      %v1905 = vsel %vm1902, %v1761, %v1853
      %v1906 = vsel %vm1902, %v1762, %v1857
      %vm1907 = vcmask 1041408
      %v1908 = vsel %vm1907, %v1903, %v1865
      %v1909 = vsel %vm1907, %v1904, %v1869
      %v1910 = vsel %vm1907, %v1905, %v1873
      %v1911 = vsel %vm1907, %v1906, %v1877
      %vm1912 = vcmask 1042432
      %v1913 = vsel %vm1912, %v1908, %v1885
      %v1914 = vsel %vm1912, %v1909, %v1889
      %v1915 = vsel %vm1912, %v1910, %v1893
      %v1916 = vsel %vm1912, %v1911, %v1897
      %v1917 = vld [vmem:[%s5] sm:$0xff]
      %v1918 = vld [vmem:[%s5 + $0x8] sm:$0xff]
      %v1919 = vld [vmem:[%s5 + $0x10] sm:$0xff]
      %v1920 = vld [vmem:[%s5 + $0x18] sm:$0xff]
      %v1922 = vsel %vm794, %v1913, 0
      %v1925 = vsel %vm794, %v1917, 0
      %1927 = vmatprep.subr.mxu0 0.0
      %1928 = vmatpush1.xpose.msra.mxu0 %v1925
      %1929 = vmatprep.subr.mxu0 0.0
      %1930 = vmatpush1.xpose.msra.mxu0 0.0
      %1931 = vmatprep.subr.mxu0 0.0
      %1932 = vmatpush1.xpose.msra.mxu0 0.0
      %1933 = vmatprep.subr.mxu0 0.0
      %1934 = vmatpush1.xpose.msra.mxu0 0.0
      %1935 = vmatprep.subr.mxu0 0.0
      %1936 = vmatpush1.xpose.msra.mxu0 0.0
      %1937 = vmatprep.subr.mxu0 0.0
      %1938 = vmatpush1.xpose.msra.mxu0 0.0
      %1939 = vmatprep.subr.mxu0 0.0
      %1940 = vmatpush1.xpose.msra.mxu0 0.0
      %1941 = vmatprep.subr.mxu0 0.0
      %1942 = vmatpush1.xpose.msra.mxu0 0.0
      %1943 = vmatprep.subr.mxu0 0.0
      %1944 = vmatpush1.xpose.msra.mxu0 0.0
      %1945 = vmatprep.subr.mxu0 0.0
      %1946 = vmatpush1.xpose.msra.mxu0 0.0
      %1947 = vmatprep.subr.mxu0 0.0
      %1948 = vmatpush1.xpose.msra.mxu0 0.0
      %1949 = vmatprep.subr.mxu0 0.0
      %1950 = vmatpush1.xpose.msra.mxu0 0.0
      %1951 = vmatprep.subr.mxu0 0.0
      %1952 = vmatpush1.xpose.msra.mxu0 0.0
      %1953 = vmatprep.subr.mxu0 0.0
      %1954 = vmatpush1.xpose.msra.mxu0 0.0
      %1955 = vmatprep.subr.mxu0 0.0
      %1956 = vmatpush1.xpose.msra.mxu0 0.0
      %1957 = vmatprep.subr.mxu0 0.0
      %1958 = vmatpush1.xpose.msra.mxu0 0.0
      %1959 = vmatprep.subr.mxu0 0.0
      %1960 = vmatpush1.xpose.msra.mxu0 0.0
      %1961 = vmatprep.subr.mxu0 0.0
      %1962 = vmatpush1.xpose.msra.mxu0 0.0
      %1963 = vmatprep.subr.mxu0 0.0
      %1964 = vmatpush1.xpose.msra.mxu0 0.0
      %1965 = vmatprep.subr.mxu0 0.0
      %1966 = vmatpush1.xpose.msra.mxu0 0.0
      %1967 = vmatprep.subr.mxu0 0.0
      %1968 = vmatpush1.xpose.msra.mxu0 0.0
      %1969 = vmatprep.subr.mxu0 0.0
      %1970 = vmatpush1.xpose.msra.mxu0 0.0
      %1971 = vmatprep.subr.mxu0 0.0
      %1972 = vmatpush1.xpose.msra.mxu0 0.0
      %1973 = vmatprep.subr.mxu0 0.0
      %1974 = vmatpush1.xpose.msra.mxu0 0.0
      %1975 = vmatprep.subr.mxu0 0.0
      %1976 = vmatpush1.xpose.msra.mxu0 0.0
      %1977 = vmatprep.subr.mxu0 0.0
      %1978 = vmatpush1.xpose.msra.mxu0 0.0
      %1979 = vmatprep.subr.mxu0 0.0
      %1980 = vmatpush1.xpose.msra.mxu0 0.0
      %1981 = vmatprep.subr.mxu0 0.0
      %1982 = vmatpush1.xpose.msra.mxu0 0.0
      %1983 = vmatprep.subr.mxu0 0.0
      %1984 = vmatpush1.xpose.msra.mxu0 0.0
      %1985 = vmatprep.subr.mxu0 0.0
      %1986 = vmatpush1.xpose.msra.mxu0 0.0
      %1987 = vmatprep.subr.mxu0 0.0
      %1988 = vmatpush1.xpose.msra.mxu0 0.0
      %1989 = vmatprep.subr.mxu0 0.0
      %1990 = vmatpush1.xpose.msra.mxu0 0.0
      %1991 = vmatprep.mubr.f32.mxu0 0.0
      %1992 = vmatmul.mubr.f32.gmra.mrb[0].mxu0 %v1922
      %v1993 = vpop.f32.mrb[0].mxu0
      %v1994 = vadd.f32 0.0, %v1993
      %v1995 = vpop.f32.mrb[0].mxu0
      %1996 = vdwg.mxu0
      %v1998 = vsel %vm794, %v1914, 0
      %v2001 = vsel %vm794, %v1918, 0
      %2003 = vmatprep.subr.mxu0 0.0
      %2004 = vmatpush1.xpose.msra.mxu0 %v2001
      %2005 = vmatprep.subr.mxu0 0.0
      %2006 = vmatpush1.xpose.msra.mxu0 0.0
      %2007 = vmatprep.subr.mxu0 0.0
      %2008 = vmatpush1.xpose.msra.mxu0 0.0
      %2009 = vmatprep.subr.mxu0 0.0
      %2010 = vmatpush1.xpose.msra.mxu0 0.0
      %2011 = vmatprep.subr.mxu0 0.0
      %2012 = vmatpush1.xpose.msra.mxu0 0.0
      %2013 = vmatprep.subr.mxu0 0.0
      %2014 = vmatpush1.xpose.msra.mxu0 0.0
      %2015 = vmatprep.subr.mxu0 0.0
      %2016 = vmatpush1.xpose.msra.mxu0 0.0
      %2017 = vmatprep.subr.mxu0 0.0
      %2018 = vmatpush1.xpose.msra.mxu0 0.0
      %2019 = vmatprep.subr.mxu0 0.0
      %2020 = vmatpush1.xpose.msra.mxu0 0.0
      %2021 = vmatprep.subr.mxu0 0.0
      %2022 = vmatpush1.xpose.msra.mxu0 0.0
      %2023 = vmatprep.subr.mxu0 0.0
      %2024 = vmatpush1.xpose.msra.mxu0 0.0
      %2025 = vmatprep.subr.mxu0 0.0
      %2026 = vmatpush1.xpose.msra.mxu0 0.0
      %2027 = vmatprep.subr.mxu0 0.0
      %2028 = vmatpush1.xpose.msra.mxu0 0.0
      %2029 = vmatprep.subr.mxu0 0.0
      %2030 = vmatpush1.xpose.msra.mxu0 0.0
      %2031 = vmatprep.subr.mxu0 0.0
      %2032 = vmatpush1.xpose.msra.mxu0 0.0
      %2033 = vmatprep.subr.mxu0 0.0
      %2034 = vmatpush1.xpose.msra.mxu0 0.0
      %2035 = vmatprep.subr.mxu0 0.0
      %2036 = vmatpush1.xpose.msra.mxu0 0.0
      %2037 = vmatprep.subr.mxu0 0.0
      %2038 = vmatpush1.xpose.msra.mxu0 0.0
      %2039 = vmatprep.subr.mxu0 0.0
      %2040 = vmatpush1.xpose.msra.mxu0 0.0
      %2041 = vmatprep.subr.mxu0 0.0
      %2042 = vmatpush1.xpose.msra.mxu0 0.0
      %2043 = vmatprep.subr.mxu0 0.0
      %2044 = vmatpush1.xpose.msra.mxu0 0.0
      %2045 = vmatprep.subr.mxu0 0.0
      %2046 = vmatpush1.xpose.msra.mxu0 0.0
      %2047 = vmatprep.subr.mxu0 0.0
      %2048 = vmatpush1.xpose.msra.mxu0 0.0
      %2049 = vmatprep.subr.mxu0 0.0
      %2050 = vmatpush1.xpose.msra.mxu0 0.0
      %2051 = vmatprep.subr.mxu0 0.0
      %2052 = vmatpush1.xpose.msra.mxu0 0.0
      %2053 = vmatprep.subr.mxu0 0.0
      %2054 = vmatpush1.xpose.msra.mxu0 0.0
      %2055 = vmatprep.subr.mxu0 0.0
      %2056 = vmatpush1.xpose.msra.mxu0 0.0
      %2057 = vmatprep.subr.mxu0 0.0
      %2058 = vmatpush1.xpose.msra.mxu0 0.0
      %2059 = vmatprep.subr.mxu0 0.0
      %2060 = vmatpush1.xpose.msra.mxu0 0.0
      %2061 = vmatprep.subr.mxu0 0.0
      %2062 = vmatpush1.xpose.msra.mxu0 0.0
      %2063 = vmatprep.subr.mxu0 0.0
      %2064 = vmatpush1.xpose.msra.mxu0 0.0
      %2065 = vmatprep.subr.mxu0 0.0
      %2066 = vmatpush1.xpose.msra.mxu0 0.0
      %2067 = vmatprep.mubr.f32.mxu0 0.0
      %2068 = vmatmul.mubr.f32.gmra.mrb[0].mxu0 %v1998
      %v2069 = vpop.f32.mrb[0].mxu0
      %v2070 = vadd.f32 0.0, %v2069
      %v2071 = vpop.f32.mrb[0].mxu0
      %2072 = vdwg.mxu0
      %v2074 = vsel %vm794, %v1915, 0
      %v2077 = vsel %vm794, %v1919, 0
      %2079 = vmatprep.subr.mxu0 0.0
      %2080 = vmatpush1.xpose.msra.mxu0 %v2077
      %2081 = vmatprep.subr.mxu0 0.0
      %2082 = vmatpush1.xpose.msra.mxu0 0.0
      %2083 = vmatprep.subr.mxu0 0.0
      %2084 = vmatpush1.xpose.msra.mxu0 0.0
      %2085 = vmatprep.subr.mxu0 0.0
      %2086 = vmatpush1.xpose.msra.mxu0 0.0
      %2087 = vmatprep.subr.mxu0 0.0
      %2088 = vmatpush1.xpose.msra.mxu0 0.0
      %2089 = vmatprep.subr.mxu0 0.0
      %2090 = vmatpush1.xpose.msra.mxu0 0.0
      %2091 = vmatprep.subr.mxu0 0.0
      %2092 = vmatpush1.xpose.msra.mxu0 0.0
      %2093 = vmatprep.subr.mxu0 0.0
      %2094 = vmatpush1.xpose.msra.mxu0 0.0
      %2095 = vmatprep.subr.mxu0 0.0
      %2096 = vmatpush1.xpose.msra.mxu0 0.0
      %2097 = vmatprep.subr.mxu0 0.0
      %2098 = vmatpush1.xpose.msra.mxu0 0.0
      %2099 = vmatprep.subr.mxu0 0.0
      %2100 = vmatpush1.xpose.msra.mxu0 0.0
      %2101 = vmatprep.subr.mxu0 0.0
      %2102 = vmatpush1.xpose.msra.mxu0 0.0
      %2103 = vmatprep.subr.mxu0 0.0
      %2104 = vmatpush1.xpose.msra.mxu0 0.0
      %2105 = vmatprep.subr.mxu0 0.0
      %2106 = vmatpush1.xpose.msra.mxu0 0.0
      %2107 = vmatprep.subr.mxu0 0.0
      %2108 = vmatpush1.xpose.msra.mxu0 0.0
      %2109 = vmatprep.subr.mxu0 0.0
      %2110 = vmatpush1.xpose.msra.mxu0 0.0
      %2111 = vmatprep.subr.mxu0 0.0
      %2112 = vmatpush1.xpose.msra.mxu0 0.0
      %2113 = vmatprep.subr.mxu0 0.0
      %2114 = vmatpush1.xpose.msra.mxu0 0.0
      %2115 = vmatprep.subr.mxu0 0.0
      %2116 = vmatpush1.xpose.msra.mxu0 0.0
      %2117 = vmatprep.subr.mxu0 0.0
      %2118 = vmatpush1.xpose.msra.mxu0 0.0
      %2119 = vmatprep.subr.mxu0 0.0
      %2120 = vmatpush1.xpose.msra.mxu0 0.0
      %2121 = vmatprep.subr.mxu0 0.0
      %2122 = vmatpush1.xpose.msra.mxu0 0.0
      %2123 = vmatprep.subr.mxu0 0.0
      %2124 = vmatpush1.xpose.msra.mxu0 0.0
      %2125 = vmatprep.subr.mxu0 0.0
      %2126 = vmatpush1.xpose.msra.mxu0 0.0
      %2127 = vmatprep.subr.mxu0 0.0
      %2128 = vmatpush1.xpose.msra.mxu0 0.0
      %2129 = vmatprep.subr.mxu0 0.0
      %2130 = vmatpush1.xpose.msra.mxu0 0.0
      %2131 = vmatprep.subr.mxu0 0.0
      %2132 = vmatpush1.xpose.msra.mxu0 0.0
      %2133 = vmatprep.subr.mxu0 0.0
      %2134 = vmatpush1.xpose.msra.mxu0 0.0
      %2135 = vmatprep.subr.mxu0 0.0
      %2136 = vmatpush1.xpose.msra.mxu0 0.0
      %2137 = vmatprep.subr.mxu0 0.0
      %2138 = vmatpush1.xpose.msra.mxu0 0.0
      %2139 = vmatprep.subr.mxu0 0.0
      %2140 = vmatpush1.xpose.msra.mxu0 0.0
      %2141 = vmatprep.subr.mxu0 0.0
      %2142 = vmatpush1.xpose.msra.mxu0 0.0
      %2143 = vmatprep.mubr.f32.mxu0 0.0
      %2144 = vmatmul.mubr.f32.gmra.mrb[0].mxu0 %v2074
      %v2145 = vpop.f32.mrb[0].mxu0
      %v2146 = vadd.f32 0.0, %v2145
      %v2147 = vpop.f32.mrb[0].mxu0
      %2148 = vdwg.mxu0
      %v2150 = vsel %vm794, %v1916, 0
      %v2153 = vsel %vm794, %v1920, 0
      %2155 = vmatprep.subr.mxu0 0.0
      %2156 = vmatpush1.xpose.msra.mxu0 %v2153
      %2157 = vmatprep.subr.mxu0 0.0
      %2158 = vmatpush1.xpose.msra.mxu0 0.0
      %2159 = vmatprep.subr.mxu0 0.0
      %2160 = vmatpush1.xpose.msra.mxu0 0.0
      %2161 = vmatprep.subr.mxu0 0.0
      %2162 = vmatpush1.xpose.msra.mxu0 0.0
      %2163 = vmatprep.subr.mxu0 0.0
      %2164 = vmatpush1.xpose.msra.mxu0 0.0
      %2165 = vmatprep.subr.mxu0 0.0
      %2166 = vmatpush1.xpose.msra.mxu0 0.0
      %2167 = vmatprep.subr.mxu0 0.0
      %2168 = vmatpush1.xpose.msra.mxu0 0.0
      %2169 = vmatprep.subr.mxu0 0.0
      %2170 = vmatpush1.xpose.msra.mxu0 0.0
      %2171 = vmatprep.subr.mxu0 0.0
      %2172 = vmatpush1.xpose.msra.mxu0 0.0
      %2173 = vmatprep.subr.mxu0 0.0
      %2174 = vmatpush1.xpose.msra.mxu0 0.0
      %2175 = vmatprep.subr.mxu0 0.0
      %2176 = vmatpush1.xpose.msra.mxu0 0.0
      %2177 = vmatprep.subr.mxu0 0.0
      %2178 = vmatpush1.xpose.msra.mxu0 0.0
      %2179 = vmatprep.subr.mxu0 0.0
      %2180 = vmatpush1.xpose.msra.mxu0 0.0
      %2181 = vmatprep.subr.mxu0 0.0
      %2182 = vmatpush1.xpose.msra.mxu0 0.0
      %2183 = vmatprep.subr.mxu0 0.0
      %2184 = vmatpush1.xpose.msra.mxu0 0.0
      %2185 = vmatprep.subr.mxu0 0.0
      %2186 = vmatpush1.xpose.msra.mxu0 0.0
      %2187 = vmatprep.subr.mxu0 0.0
      %2188 = vmatpush1.xpose.msra.mxu0 0.0
      %2189 = vmatprep.subr.mxu0 0.0
      %2190 = vmatpush1.xpose.msra.mxu0 0.0
      %2191 = vmatprep.subr.mxu0 0.0
      %2192 = vmatpush1.xpose.msra.mxu0 0.0
      %2193 = vmatprep.subr.mxu0 0.0
      %2194 = vmatpush1.xpose.msra.mxu0 0.0
      %2195 = vmatprep.subr.mxu0 0.0
      %2196 = vmatpush1.xpose.msra.mxu0 0.0
      %2197 = vmatprep.subr.mxu0 0.0
      %2198 = vmatpush1.xpose.msra.mxu0 0.0
      %2199 = vmatprep.subr.mxu0 0.0
      %2200 = vmatpush1.xpose.msra.mxu0 0.0
      %2201 = vmatprep.subr.mxu0 0.0
      %2202 = vmatpush1.xpose.msra.mxu0 0.0
      %2203 = vmatprep.subr.mxu0 0.0
      %2204 = vmatpush1.xpose.msra.mxu0 0.0
      %2205 = vmatprep.subr.mxu0 0.0
      %2206 = vmatpush1.xpose.msra.mxu0 0.0
      %2207 = vmatprep.subr.mxu0 0.0
      %2208 = vmatpush1.xpose.msra.mxu0 0.0
      %2209 = vmatprep.subr.mxu0 0.0
      %2210 = vmatpush1.xpose.msra.mxu0 0.0
      %2211 = vmatprep.subr.mxu0 0.0
      %2212 = vmatpush1.xpose.msra.mxu0 0.0
      %2213 = vmatprep.subr.mxu0 0.0
      %2214 = vmatpush1.xpose.msra.mxu0 0.0
      %2215 = vmatprep.subr.mxu0 0.0
      %2216 = vmatpush1.xpose.msra.mxu0 0.0
      %2217 = vmatprep.subr.mxu0 0.0
      %2218 = vmatpush1.xpose.msra.mxu0 0.0
      %2219 = vmatprep.mubr.f32.mxu0 0.0
      %2220 = vmatmul.mubr.f32.gmra.mrb[0].mxu0 %v2150
      %v2221 = vpop.f32.mrb[0].mxu0
      %v2222 = vadd.f32 0.0, %v2221
      %v2223 = vpop.f32.mrb[0].mxu0
      %2224 = vdwg.mxu0
      %2225 = vrot.lane.b32.xlu0 %v414, 124
      %v2226 = vpop.permute.xlu0 %2225
      %2227 = vrot.lane.b32.xlu0 %v566, 124
      %v2228 = vpop.permute.xlu0 %2227
      %v2229 = vsel %vm794, %v2226, 0
      %v2231 = vsel %vm794, %v2228, 0
      %2233 = vmatprep.subr.mxu0 0.0
      %2234 = vmatpush1.xpose.msra.mxu0 %v2231
      %2235 = vmatprep.subr.mxu0 0.0
      %2236 = vmatpush1.xpose.msra.mxu0 0.0
      %2237 = vmatprep.subr.mxu0 0.0
      %2238 = vmatpush1.xpose.msra.mxu0 0.0
      %2239 = vmatprep.subr.mxu0 0.0
      %2240 = vmatpush1.xpose.msra.mxu0 0.0
      %2241 = vmatprep.subr.mxu0 0.0
      %2242 = vmatpush1.xpose.msra.mxu0 0.0
      %2243 = vmatprep.subr.mxu0 0.0
      %2244 = vmatpush1.xpose.msra.mxu0 0.0
      %2245 = vmatprep.subr.mxu0 0.0
      %2246 = vmatpush1.xpose.msra.mxu0 0.0
      %2247 = vmatprep.subr.mxu0 0.0
      %2248 = vmatpush1.xpose.msra.mxu0 0.0
      %2249 = vmatprep.subr.mxu0 0.0
      %2250 = vmatpush1.xpose.msra.mxu0 0.0
      %2251 = vmatprep.subr.mxu0 0.0
      %2252 = vmatpush1.xpose.msra.mxu0 0.0
      %2253 = vmatprep.subr.mxu0 0.0
      %2254 = vmatpush1.xpose.msra.mxu0 0.0
      %2255 = vmatprep.subr.mxu0 0.0
      %2256 = vmatpush1.xpose.msra.mxu0 0.0
      %2257 = vmatprep.subr.mxu0 0.0
      %2258 = vmatpush1.xpose.msra.mxu0 0.0
      %2259 = vmatprep.subr.mxu0 0.0
      %2260 = vmatpush1.xpose.msra.mxu0 0.0
      %2261 = vmatprep.subr.mxu0 0.0
      %2262 = vmatpush1.xpose.msra.mxu0 0.0
      %2263 = vmatprep.subr.mxu0 0.0
      %2264 = vmatpush1.xpose.msra.mxu0 0.0
      %2265 = vmatprep.subr.mxu0 0.0
      %2266 = vmatpush1.xpose.msra.mxu0 0.0
      %2267 = vmatprep.subr.mxu0 0.0
      %2268 = vmatpush1.xpose.msra.mxu0 0.0
      %2269 = vmatprep.subr.mxu0 0.0
      %2270 = vmatpush1.xpose.msra.mxu0 0.0
      %2271 = vmatprep.subr.mxu0 0.0
      %2272 = vmatpush1.xpose.msra.mxu0 0.0
      %2273 = vmatprep.subr.mxu0 0.0
      %2274 = vmatpush1.xpose.msra.mxu0 0.0
      %2275 = vmatprep.subr.mxu0 0.0
      %2276 = vmatpush1.xpose.msra.mxu0 0.0
      %2277 = vmatprep.subr.mxu0 0.0
      %2278 = vmatpush1.xpose.msra.mxu0 0.0
      %2279 = vmatprep.subr.mxu0 0.0
      %2280 = vmatpush1.xpose.msra.mxu0 0.0
      %2281 = vmatprep.subr.mxu0 0.0
      %2282 = vmatpush1.xpose.msra.mxu0 0.0
      %2283 = vmatprep.subr.mxu0 0.0
      %2284 = vmatpush1.xpose.msra.mxu0 0.0
      %2285 = vmatprep.subr.mxu0 0.0
      %2286 = vmatpush1.xpose.msra.mxu0 0.0
      %2287 = vmatprep.subr.mxu0 0.0
      %2288 = vmatpush1.xpose.msra.mxu0 0.0
      %2289 = vmatprep.subr.mxu0 0.0
      %2290 = vmatpush1.xpose.msra.mxu0 0.0
      %2291 = vmatprep.subr.mxu0 0.0
      %2292 = vmatpush1.xpose.msra.mxu0 0.0
      %2293 = vmatprep.subr.mxu0 0.0
      %2294 = vmatpush1.xpose.msra.mxu0 0.0
      %2295 = vmatprep.subr.mxu0 0.0
      %2296 = vmatpush1.xpose.msra.mxu0 0.0
      %2297 = vmatprep.mubr.f32.mxu0 0.0
      %2298 = vmatmul.mubr.f32.gmra.mrb[0].mxu0 %v2229
      %v2299 = vpop.f32.mrb[0].mxu0
      %v2300 = vadd.f32 0.0, %v2299
      %v2301 = vpop.f32.mrb[0].mxu0
      %2302 = vdwg.mxu0
      %2303 = vrot.lane.b32.xlu0 %v487, 124
      %v2304 = vpop.permute.xlu0 %2303
      %2305 = vrot.lane.b32.xlu0 %v639, 124
      %v2306 = vpop.permute.xlu0 %2305
      %v2307 = vsel %vm794, %v2304, 0
      %v2309 = vsel %vm794, %v2306, 0
      %2311 = vmatprep.subr.mxu0 0.0
      %2312 = vmatpush1.xpose.msra.mxu0 %v2309
      %2313 = vmatprep.subr.mxu0 0.0
      %2314 = vmatpush1.xpose.msra.mxu0 0.0
      %2315 = vmatprep.subr.mxu0 0.0
      %2316 = vmatpush1.xpose.msra.mxu0 0.0
      %2317 = vmatprep.subr.mxu0 0.0
      %2318 = vmatpush1.xpose.msra.mxu0 0.0
      %2319 = vmatprep.subr.mxu0 0.0
      %2320 = vmatpush1.xpose.msra.mxu0 0.0
      %2321 = vmatprep.subr.mxu0 0.0
      %2322 = vmatpush1.xpose.msra.mxu0 0.0
      %2323 = vmatprep.subr.mxu0 0.0
      %2324 = vmatpush1.xpose.msra.mxu0 0.0
      %2325 = vmatprep.subr.mxu0 0.0
      %2326 = vmatpush1.xpose.msra.mxu0 0.0
      %2327 = vmatprep.subr.mxu0 0.0
      %2328 = vmatpush1.xpose.msra.mxu0 0.0
      %2329 = vmatprep.subr.mxu0 0.0
      %2330 = vmatpush1.xpose.msra.mxu0 0.0
      %2331 = vmatprep.subr.mxu0 0.0
      %2332 = vmatpush1.xpose.msra.mxu0 0.0
      %2333 = vmatprep.subr.mxu0 0.0
      %2334 = vmatpush1.xpose.msra.mxu0 0.0
      %2335 = vmatprep.subr.mxu0 0.0
      %2336 = vmatpush1.xpose.msra.mxu0 0.0
      %2337 = vmatprep.subr.mxu0 0.0
      %2338 = vmatpush1.xpose.msra.mxu0 0.0
      %2339 = vmatprep.subr.mxu0 0.0
      %2340 = vmatpush1.xpose.msra.mxu0 0.0
      %2341 = vmatprep.subr.mxu0 0.0
      %2342 = vmatpush1.xpose.msra.mxu0 0.0
      %2343 = vmatprep.subr.mxu0 0.0
      %2344 = vmatpush1.xpose.msra.mxu0 0.0
      %2345 = vmatprep.subr.mxu0 0.0
      %2346 = vmatpush1.xpose.msra.mxu0 0.0
      %2347 = vmatprep.subr.mxu0 0.0
      %2348 = vmatpush1.xpose.msra.mxu0 0.0
      %2349 = vmatprep.subr.mxu0 0.0
      %2350 = vmatpush1.xpose.msra.mxu0 0.0
      %2351 = vmatprep.subr.mxu0 0.0
      %2352 = vmatpush1.xpose.msra.mxu0 0.0
      %2353 = vmatprep.subr.mxu0 0.0
      %2354 = vmatpush1.xpose.msra.mxu0 0.0
      %2355 = vmatprep.subr.mxu0 0.0
      %2356 = vmatpush1.xpose.msra.mxu0 0.0
      %2357 = vmatprep.subr.mxu0 0.0
      %2358 = vmatpush1.xpose.msra.mxu0 0.0
      %2359 = vmatprep.subr.mxu0 0.0
      %2360 = vmatpush1.xpose.msra.mxu0 0.0
      %2361 = vmatprep.subr.mxu0 0.0
      %2362 = vmatpush1.xpose.msra.mxu0 0.0
      %2363 = vmatprep.subr.mxu0 0.0
      %2364 = vmatpush1.xpose.msra.mxu0 0.0
      %2365 = vmatprep.subr.mxu0 0.0
      %2366 = vmatpush1.xpose.msra.mxu0 0.0
      %2367 = vmatprep.subr.mxu0 0.0
      %2368 = vmatpush1.xpose.msra.mxu0 0.0
      %2369 = vmatprep.subr.mxu0 0.0
      %2370 = vmatpush1.xpose.msra.mxu0 0.0
      %2371 = vmatprep.subr.mxu0 0.0
      %2372 = vmatpush1.xpose.msra.mxu0 0.0
      %2373 = vmatprep.subr.mxu0 0.0
      %2374 = vmatpush1.xpose.msra.mxu0 0.0
      %2375 = vmatprep.mubr.f32.mxu0 0.0
      %2376 = vmatmul.mubr.f32.gmra.mrb[0].mxu0 %v2307
      %v2377 = vpop.f32.mrb[0].mxu0
      %v2378 = vadd.f32 0.0, %v2377
      %v2379 = vpop.f32.mrb[0].mxu0
      %2380 = vdwg.mxu0
      %2381 = vrot.lane.b32.xlu0 %v947, 124
      %v2382 = vpop.permute.xlu0 %2381
      %2383 = vrot.lane.b32.xlu0 %v948, 124
      %v2384 = vpop.permute.xlu0 %2383
      %v2385 = vsel %vm794, %v2382, 0
      %v2387 = vsel %vm794, %v2384, 0
      %2389 = vmatprep.subr.mxu0 0.0
      %2390 = vmatpush1.xpose.msra.mxu0 %v2387
      %2391 = vmatprep.subr.mxu0 0.0
      %2392 = vmatpush1.xpose.msra.mxu0 0.0
      %2393 = vmatprep.subr.mxu0 0.0
      %2394 = vmatpush1.xpose.msra.mxu0 0.0
      %2395 = vmatprep.subr.mxu0 0.0
      %2396 = vmatpush1.xpose.msra.mxu0 0.0
      %2397 = vmatprep.subr.mxu0 0.0
      %2398 = vmatpush1.xpose.msra.mxu0 0.0
      %2399 = vmatprep.subr.mxu0 0.0
      %2400 = vmatpush1.xpose.msra.mxu0 0.0
      %2401 = vmatprep.subr.mxu0 0.0
      %2402 = vmatpush1.xpose.msra.mxu0 0.0
      %2403 = vmatprep.subr.mxu0 0.0
      %2404 = vmatpush1.xpose.msra.mxu0 0.0
      %2405 = vmatprep.subr.mxu0 0.0
      %2406 = vmatpush1.xpose.msra.mxu0 0.0
      %2407 = vmatprep.subr.mxu0 0.0
      %2408 = vmatpush1.xpose.msra.mxu0 0.0
      %2409 = vmatprep.subr.mxu0 0.0
      %2410 = vmatpush1.xpose.msra.mxu0 0.0
      %2411 = vmatprep.subr.mxu0 0.0
      %2412 = vmatpush1.xpose.msra.mxu0 0.0
      %2413 = vmatprep.subr.mxu0 0.0
      %2414 = vmatpush1.xpose.msra.mxu0 0.0
      %2415 = vmatprep.subr.mxu0 0.0
      %2416 = vmatpush1.xpose.msra.mxu0 0.0
      %2417 = vmatprep.subr.mxu0 0.0
      %2418 = vmatpush1.xpose.msra.mxu0 0.0
      %2419 = vmatprep.subr.mxu0 0.0
      %2420 = vmatpush1.xpose.msra.mxu0 0.0
      %2421 = vmatprep.subr.mxu0 0.0
      %2422 = vmatpush1.xpose.msra.mxu0 0.0
      %2423 = vmatprep.subr.mxu0 0.0
      %2424 = vmatpush1.xpose.msra.mxu0 0.0
      %2425 = vmatprep.subr.mxu0 0.0
      %2426 = vmatpush1.xpose.msra.mxu0 0.0
      %2427 = vmatprep.subr.mxu0 0.0
      %2428 = vmatpush1.xpose.msra.mxu0 0.0
      %2429 = vmatprep.subr.mxu0 0.0
      %2430 = vmatpush1.xpose.msra.mxu0 0.0
      %2431 = vmatprep.subr.mxu0 0.0
      %2432 = vmatpush1.xpose.msra.mxu0 0.0
      %2433 = vmatprep.subr.mxu0 0.0
      %2434 = vmatpush1.xpose.msra.mxu0 0.0
      %2435 = vmatprep.subr.mxu0 0.0
      %2436 = vmatpush1.xpose.msra.mxu0 0.0
      %2437 = vmatprep.subr.mxu0 0.0
      %2438 = vmatpush1.xpose.msra.mxu0 0.0
      %2439 = vmatprep.subr.mxu0 0.0
      %2440 = vmatpush1.xpose.msra.mxu0 0.0
      %2441 = vmatprep.subr.mxu0 0.0
      %2442 = vmatpush1.xpose.msra.mxu0 0.0
      %2443 = vmatprep.subr.mxu0 0.0
      %2444 = vmatpush1.xpose.msra.mxu0 0.0
      %2445 = vmatprep.subr.mxu0 0.0
      %2446 = vmatpush1.xpose.msra.mxu0 0.0
      %2447 = vmatprep.subr.mxu0 0.0
      %2448 = vmatpush1.xpose.msra.mxu0 0.0
      %2449 = vmatprep.subr.mxu0 0.0
      %2450 = vmatpush1.xpose.msra.mxu0 0.0
      %2451 = vmatprep.subr.mxu0 0.0
      %2452 = vmatpush1.xpose.msra.mxu0 0.0
      %2453 = vmatprep.mubr.f32.mxu0 0.0
      %2454 = vmatmul.mubr.f32.gmra.mrb[0].mxu0 %v2385
      %v2455 = vpop.f32.mrb[0].mxu0
      %v2456 = vadd.f32 0.0, %v2455
      %v2457 = vpop.f32.mrb[0].mxu0
      %2458 = vdwg.mxu0
      %2459 = vrot.lane.b32.xlu0 %v1023, 124
      %v2460 = vpop.permute.xlu0 %2459
      %2461 = vrot.lane.b32.xlu0 %v1024, 124
      %v2462 = vpop.permute.xlu0 %2461
      %v2463 = vsel %vm794, %v2460, 0
      %v2465 = vsel %vm794, %v2462, 0
      %2467 = vmatprep.subr.mxu0 0.0
      %2468 = vmatpush1.xpose.msra.mxu0 %v2465
      %2469 = vmatprep.subr.mxu0 0.0
      %2470 = vmatpush1.xpose.msra.mxu0 0.0
      %2471 = vmatprep.subr.mxu0 0.0
      %2472 = vmatpush1.xpose.msra.mxu0 0.0
      %2473 = vmatprep.subr.mxu0 0.0
      %2474 = vmatpush1.xpose.msra.mxu0 0.0
      %2475 = vmatprep.subr.mxu0 0.0
      %2476 = vmatpush1.xpose.msra.mxu0 0.0
      %2477 = vmatprep.subr.mxu0 0.0
      %2478 = vmatpush1.xpose.msra.mxu0 0.0
      %2479 = vmatprep.subr.mxu0 0.0
      %2480 = vmatpush1.xpose.msra.mxu0 0.0
      %2481 = vmatprep.subr.mxu0 0.0
      %2482 = vmatpush1.xpose.msra.mxu0 0.0
      %2483 = vmatprep.subr.mxu0 0.0
      %2484 = vmatpush1.xpose.msra.mxu0 0.0
      %2485 = vmatprep.subr.mxu0 0.0
      %2486 = vmatpush1.xpose.msra.mxu0 0.0
      %2487 = vmatprep.subr.mxu0 0.0
      %2488 = vmatpush1.xpose.msra.mxu0 0.0
      %2489 = vmatprep.subr.mxu0 0.0
      %2490 = vmatpush1.xpose.msra.mxu0 0.0
      %2491 = vmatprep.subr.mxu0 0.0
      %2492 = vmatpush1.xpose.msra.mxu0 0.0
      %2493 = vmatprep.subr.mxu0 0.0
      %2494 = vmatpush1.xpose.msra.mxu0 0.0
      %2495 = vmatprep.subr.mxu0 0.0
      %2496 = vmatpush1.xpose.msra.mxu0 0.0
      %2497 = vmatprep.subr.mxu0 0.0
      %2498 = vmatpush1.xpose.msra.mxu0 0.0
      %2499 = vmatprep.subr.mxu0 0.0
      %2500 = vmatpush1.xpose.msra.mxu0 0.0
      %2501 = vmatprep.subr.mxu0 0.0
      %2502 = vmatpush1.xpose.msra.mxu0 0.0
      %2503 = vmatprep.subr.mxu0 0.0
      %2504 = vmatpush1.xpose.msra.mxu0 0.0
      %2505 = vmatprep.subr.mxu0 0.0
      %2506 = vmatpush1.xpose.msra.mxu0 0.0
      %2507 = vmatprep.subr.mxu0 0.0
      %2508 = vmatpush1.xpose.msra.mxu0 0.0
      %2509 = vmatprep.subr.mxu0 0.0
      %2510 = vmatpush1.xpose.msra.mxu0 0.0
      %2511 = vmatprep.subr.mxu0 0.0
      %2512 = vmatpush1.xpose.msra.mxu0 0.0
      %2513 = vmatprep.subr.mxu0 0.0
      %2514 = vmatpush1.xpose.msra.mxu0 0.0
      %2515 = vmatprep.subr.mxu0 0.0
      %2516 = vmatpush1.xpose.msra.mxu0 0.0
      %2517 = vmatprep.subr.mxu0 0.0
      %2518 = vmatpush1.xpose.msra.mxu0 0.0
      %2519 = vmatprep.subr.mxu0 0.0
      %2520 = vmatpush1.xpose.msra.mxu0 0.0
      %2521 = vmatprep.subr.mxu0 0.0
      %2522 = vmatpush1.xpose.msra.mxu0 0.0
      %2523 = vmatprep.subr.mxu0 0.0
      %2524 = vmatpush1.xpose.msra.mxu0 0.0
      %2525 = vmatprep.subr.mxu0 0.0
      %2526 = vmatpush1.xpose.msra.mxu0 0.0
      %2527 = vmatprep.subr.mxu0 0.0
      %2528 = vmatpush1.xpose.msra.mxu0 0.0
      %2529 = vmatprep.subr.mxu0 0.0
      %2530 = vmatpush1.xpose.msra.mxu0 0.0
      %2531 = vmatprep.mubr.f32.mxu0 0.0
      %2532 = vmatmul.mubr.f32.gmra.mrb[0].mxu0 %v2463
      %v2533 = vpop.f32.mrb[0].mxu0
      %v2534 = vadd.f32 0.0, %v2533
      %v2535 = vpop.f32.mrb[0].mxu0
      %2536 = vdwg.mxu0
      %2537 = vrot.lane.b32.xlu0 %v1101, 124
      %v2538 = vpop.permute.xlu0 %2537
      %2539 = vrot.lane.b32.xlu0 %v1105, 124
      %v2540 = vpop.permute.xlu0 %2539
      %v2541 = vsel %vm794, %v2538, 0
      %v2543 = vsel %vm794, %v2540, 0
      %2545 = vmatprep.subr.mxu0 0.0
      %2546 = vmatpush1.xpose.msra.mxu0 %v2543
      %2547 = vmatprep.subr.mxu0 0.0
      %2548 = vmatpush1.xpose.msra.mxu0 0.0
      %2549 = vmatprep.subr.mxu0 0.0
      %2550 = vmatpush1.xpose.msra.mxu0 0.0
      %2551 = vmatprep.subr.mxu0 0.0
      %2552 = vmatpush1.xpose.msra.mxu0 0.0
      %2553 = vmatprep.subr.mxu0 0.0
      %2554 = vmatpush1.xpose.msra.mxu0 0.0
      %2555 = vmatprep.subr.mxu0 0.0
      %2556 = vmatpush1.xpose.msra.mxu0 0.0
      %2557 = vmatprep.subr.mxu0 0.0
      %2558 = vmatpush1.xpose.msra.mxu0 0.0
      %2559 = vmatprep.subr.mxu0 0.0
      %2560 = vmatpush1.xpose.msra.mxu0 0.0
      %2561 = vmatprep.subr.mxu0 0.0
      %2562 = vmatpush1.xpose.msra.mxu0 0.0
      %2563 = vmatprep.subr.mxu0 0.0
      %2564 = vmatpush1.xpose.msra.mxu0 0.0
      %2565 = vmatprep.subr.mxu0 0.0
      %2566 = vmatpush1.xpose.msra.mxu0 0.0
      %2567 = vmatprep.subr.mxu0 0.0
      %2568 = vmatpush1.xpose.msra.mxu0 0.0
      %2569 = vmatprep.subr.mxu0 0.0
      %2570 = vmatpush1.xpose.msra.mxu0 0.0
      %2571 = vmatprep.subr.mxu0 0.0
      %2572 = vmatpush1.xpose.msra.mxu0 0.0
      %2573 = vmatprep.subr.mxu0 0.0
      %2574 = vmatpush1.xpose.msra.mxu0 0.0
      %2575 = vmatprep.subr.mxu0 0.0
      %2576 = vmatpush1.xpose.msra.mxu0 0.0
      %2577 = vmatprep.subr.mxu0 0.0
      %2578 = vmatpush1.xpose.msra.mxu0 0.0
      %2579 = vmatprep.subr.mxu0 0.0
      %2580 = vmatpush1.xpose.msra.mxu0 0.0
      %2581 = vmatprep.subr.mxu0 0.0
      %2582 = vmatpush1.xpose.msra.mxu0 0.0
      %2583 = vmatprep.subr.mxu0 0.0
      %2584 = vmatpush1.xpose.msra.mxu0 0.0
      %2585 = vmatprep.subr.mxu0 0.0
      %2586 = vmatpush1.xpose.msra.mxu0 0.0
      %2587 = vmatprep.subr.mxu0 0.0
      %2588 = vmatpush1.xpose.msra.mxu0 0.0
      %2589 = vmatprep.subr.mxu0 0.0
      %2590 = vmatpush1.xpose.msra.mxu0 0.0
      %2591 = vmatprep.subr.mxu0 0.0
      %2592 = vmatpush1.xpose.msra.mxu0 0.0
      %2593 = vmatprep.subr.mxu0 0.0
      %2594 = vmatpush1.xpose.msra.mxu0 0.0
      %2595 = vmatprep.subr.mxu0 0.0
      %2596 = vmatpush1.xpose.msra.mxu0 0.0
      %2597 = vmatprep.subr.mxu0 0.0
      %2598 = vmatpush1.xpose.msra.mxu0 0.0
      %2599 = vmatprep.subr.mxu0 0.0
      %2600 = vmatpush1.xpose.msra.mxu0 0.0
      %2601 = vmatprep.subr.mxu0 0.0
      %2602 = vmatpush1.xpose.msra.mxu0 0.0
      %2603 = vmatprep.subr.mxu0 0.0
      %2604 = vmatpush1.xpose.msra.mxu0 0.0
      %2605 = vmatprep.subr.mxu0 0.0
      %2606 = vmatpush1.xpose.msra.mxu0 0.0
      %2607 = vmatprep.subr.mxu0 0.0
      %2608 = vmatpush1.xpose.msra.mxu0 0.0
      %2609 = vmatprep.mubr.f32.mxu0 0.0
      %2610 = vmatmul.mubr.f32.gmra.mrb[0].mxu0 %v2541
      %v2611 = vpop.f32.mrb[0].mxu0
      %v2612 = vadd.f32 0.0, %v2611
      %v2613 = vpop.f32.mrb[0].mxu0
      %2614 = vdwg.mxu0
      %2615 = vrot.lane.b32.xlu0 %v1102, 124
      %v2616 = vpop.permute.xlu0 %2615
      %2617 = vrot.lane.b32.xlu0 %v1106, 124
      %v2618 = vpop.permute.xlu0 %2617
      %v2619 = vsel %vm794, %v2616, 0
      %v2621 = vsel %vm794, %v2618, 0
      %2623 = vmatprep.subr.mxu0 0.0
      %2624 = vmatpush1.xpose.msra.mxu0 %v2621
      %2625 = vmatprep.subr.mxu0 0.0
      %2626 = vmatpush1.xpose.msra.mxu0 0.0
      %2627 = vmatprep.subr.mxu0 0.0
      %2628 = vmatpush1.xpose.msra.mxu0 0.0
      %2629 = vmatprep.subr.mxu0 0.0
      %2630 = vmatpush1.xpose.msra.mxu0 0.0
      %2631 = vmatprep.subr.mxu0 0.0
      %2632 = vmatpush1.xpose.msra.mxu0 0.0
      %2633 = vmatprep.subr.mxu0 0.0
      %2634 = vmatpush1.xpose.msra.mxu0 0.0
      %2635 = vmatprep.subr.mxu0 0.0
      %2636 = vmatpush1.xpose.msra.mxu0 0.0
      %2637 = vmatprep.subr.mxu0 0.0
      %2638 = vmatpush1.xpose.msra.mxu0 0.0
      %2639 = vmatprep.subr.mxu0 0.0
      %2640 = vmatpush1.xpose.msra.mxu0 0.0
      %2641 = vmatprep.subr.mxu0 0.0
      %2642 = vmatpush1.xpose.msra.mxu0 0.0
      %2643 = vmatprep.subr.mxu0 0.0
      %2644 = vmatpush1.xpose.msra.mxu0 0.0
      %2645 = vmatprep.subr.mxu0 0.0
      %2646 = vmatpush1.xpose.msra.mxu0 0.0
      %2647 = vmatprep.subr.mxu0 0.0
      %2648 = vmatpush1.xpose.msra.mxu0 0.0
      %2649 = vmatprep.subr.mxu0 0.0
      %2650 = vmatpush1.xpose.msra.mxu0 0.0
      %2651 = vmatprep.subr.mxu0 0.0
      %2652 = vmatpush1.xpose.msra.mxu0 0.0
      %2653 = vmatprep.subr.mxu0 0.0
      %2654 = vmatpush1.xpose.msra.mxu0 0.0
      %2655 = vmatprep.subr.mxu0 0.0
      %2656 = vmatpush1.xpose.msra.mxu0 0.0
      %2657 = vmatprep.subr.mxu0 0.0
      %2658 = vmatpush1.xpose.msra.mxu0 0.0
      %2659 = vmatprep.subr.mxu0 0.0
      %2660 = vmatpush1.xpose.msra.mxu0 0.0
      %2661 = vmatprep.subr.mxu0 0.0
      %2662 = vmatpush1.xpose.msra.mxu0 0.0
      %2663 = vmatprep.subr.mxu0 0.0
      %2664 = vmatpush1.xpose.msra.mxu0 0.0
      %2665 = vmatprep.subr.mxu0 0.0
      %2666 = vmatpush1.xpose.msra.mxu0 0.0
      %2667 = vmatprep.subr.mxu0 0.0
      %2668 = vmatpush1.xpose.msra.mxu0 0.0
      %2669 = vmatprep.subr.mxu0 0.0
      %2670 = vmatpush1.xpose.msra.mxu0 0.0
      %2671 = vmatprep.subr.mxu0 0.0
      %2672 = vmatpush1.xpose.msra.mxu0 0.0
      %2673 = vmatprep.subr.mxu0 0.0
      %2674 = vmatpush1.xpose.msra.mxu0 0.0
      %2675 = vmatprep.subr.mxu0 0.0
      %2676 = vmatpush1.xpose.msra.mxu0 0.0
      %2677 = vmatprep.subr.mxu0 0.0
      %2678 = vmatpush1.xpose.msra.mxu0 0.0
      %2679 = vmatprep.subr.mxu0 0.0
      %2680 = vmatpush1.xpose.msra.mxu0 0.0
      %2681 = vmatprep.subr.mxu0 0.0
      %2682 = vmatpush1.xpose.msra.mxu0 0.0
      %2683 = vmatprep.subr.mxu0 0.0
      %2684 = vmatpush1.xpose.msra.mxu0 0.0
      %2685 = vmatprep.subr.mxu0 0.0
      %2686 = vmatpush1.xpose.msra.mxu0 0.0
      %2687 = vmatprep.mubr.f32.mxu0 0.0
      %2688 = vmatmul.mubr.f32.gmra.mrb[0].mxu0 %v2619
      %v2689 = vpop.f32.mrb[0].mxu0
      %v2690 = vadd.f32 0.0, %v2689
      %v2691 = vpop.f32.mrb[0].mxu0
      %2692 = vdwg.mxu0
      %v2693 = vsub.f32 %v2300, %v2456
      %v2694 = vsub.f32 %v2378, %v2534
      %v2695 = vtanh.pop %v2693
      %v2696 = vtanh.pop %v2694
      %v2697 = vsub.f32 %v2612, %v2300
      %v2698 = vsub.f32 %v2690, %v2378
      %v2699 = vsub.f32 %v2697, %v2456
      %v2700 = vsub.f32 %v2698, %v2534
      %v2701 = vtanh.pop %v2699
      %v2702 = vtanh.pop %v2700
      %2703 = vrot.lane.b32.xlu0 %v718, 124
      %v2704 = vpop.permute.xlu0 %2703
      %v2706 = vsel %vm794, %v2695, 0
      %v2708 = vsel %vm1272, %v2704, 0
      %2710 = vmatprep.subr.mxu0 0.0
      %2711 = vmatpush1.msra.mxu0 %v2708
      %2712 = vmatprep.subr.mxu0 0.0
      %2713 = vmatpush1.msra.mxu0 0.0
      %2714 = vmatprep.subr.mxu0 0.0
      %2715 = vmatpush1.msra.mxu0 0.0
      %2716 = vmatprep.subr.mxu0 0.0
      %2717 = vmatpush1.msra.mxu0 0.0
      %2718 = vmatprep.subr.mxu0 0.0
      %2719 = vmatpush1.msra.mxu0 0.0
      %2720 = vmatprep.subr.mxu0 0.0
      %2721 = vmatpush1.msra.mxu0 0.0
      %2722 = vmatprep.subr.mxu0 0.0
      %2723 = vmatpush1.msra.mxu0 0.0
      %2724 = vmatprep.subr.mxu0 0.0
      %2725 = vmatpush1.msra.mxu0 0.0
      %2726 = vmatprep.subr.mxu0 0.0
      %2727 = vmatpush1.msra.mxu0 0.0
      %2728 = vmatprep.subr.mxu0 0.0
      %2729 = vmatpush1.msra.mxu0 0.0
      %2730 = vmatprep.subr.mxu0 0.0
      %2731 = vmatpush1.msra.mxu0 0.0
      %2732 = vmatprep.subr.mxu0 0.0
      %2733 = vmatpush1.msra.mxu0 0.0
      %2734 = vmatprep.subr.mxu0 0.0
      %2735 = vmatpush1.msra.mxu0 0.0
      %2736 = vmatprep.subr.mxu0 0.0
      %2737 = vmatpush1.msra.mxu0 0.0
      %2738 = vmatprep.subr.mxu0 0.0
      %2739 = vmatpush1.msra.mxu0 0.0
      %2740 = vmatprep.subr.mxu0 0.0
      %2741 = vmatpush1.msra.mxu0 0.0
      %2742 = vmatprep.subr.mxu0 0.0
      %2743 = vmatpush1.msra.mxu0 0.0
      %2744 = vmatprep.subr.mxu0 0.0
      %2745 = vmatpush1.msra.mxu0 0.0
      %2746 = vmatprep.subr.mxu0 0.0
      %2747 = vmatpush1.msra.mxu0 0.0
      %2748 = vmatprep.subr.mxu0 0.0
      %2749 = vmatpush1.msra.mxu0 0.0
      %2750 = vmatprep.subr.mxu0 0.0
      %2751 = vmatpush1.msra.mxu0 0.0
      %2752 = vmatprep.subr.mxu0 0.0
      %2753 = vmatpush1.msra.mxu0 0.0
      %2754 = vmatprep.subr.mxu0 0.0
      %2755 = vmatpush1.msra.mxu0 0.0
      %2756 = vmatprep.subr.mxu0 0.0
      %2757 = vmatpush1.msra.mxu0 0.0
      %2758 = vmatprep.subr.mxu0 0.0
      %2759 = vmatpush1.msra.mxu0 0.0
      %2760 = vmatprep.subr.mxu0 0.0
      %2761 = vmatpush1.msra.mxu0 0.0
      %2762 = vmatprep.subr.mxu0 0.0
      %2763 = vmatpush1.msra.mxu0 0.0
      %2764 = vmatprep.subr.mxu0 0.0
      %2765 = vmatpush1.msra.mxu0 0.0
      %2766 = vmatprep.subr.mxu0 0.0
      %2767 = vmatpush1.msra.mxu0 0.0
      %2768 = vmatprep.subr.mxu0 0.0
      %2769 = vmatpush1.msra.mxu0 0.0
      %2770 = vmatprep.subr.mxu0 0.0
      %2771 = vmatpush1.msra.mxu0 0.0
      %2772 = vmatprep.subr.mxu0 0.0
      %2773 = vmatpush1.msra.mxu0 0.0
      %2774 = vmatprep.mubr.f32.mxu0 0.0
      %2775 = vmatmul.mubr.f32.gmra.mrb[0].mxu0 %v2706
      %v2776 = vpop.f32.mrb[0].mxu0
      %v2777 = vadd.f32 0.0, %v2776
      %v2778 = vpop.f32.mrb[0].mxu0
      %2779 = vdwg.mxu0
      %2780 = vrot.lane.b32.xlu0 %v791, 124
      %v2781 = vpop.permute.xlu0 %2780
      %v2783 = vsel %vm794, %v2696, 0
      %v2785 = vsel %vm1272, %v2781, 0
      %2787 = vmatprep.subr.mxu0 0.0
      %2788 = vmatpush1.msra.mxu0 %v2785
      %2789 = vmatprep.subr.mxu0 0.0
      %2790 = vmatpush1.msra.mxu0 0.0
      %2791 = vmatprep.subr.mxu0 0.0
      %2792 = vmatpush1.msra.mxu0 0.0
      %2793 = vmatprep.subr.mxu0 0.0
      %2794 = vmatpush1.msra.mxu0 0.0
      %2795 = vmatprep.subr.mxu0 0.0
      %2796 = vmatpush1.msra.mxu0 0.0
      %2797 = vmatprep.subr.mxu0 0.0
      %2798 = vmatpush1.msra.mxu0 0.0
      %2799 = vmatprep.subr.mxu0 0.0
      %2800 = vmatpush1.msra.mxu0 0.0
      %2801 = vmatprep.subr.mxu0 0.0
      %2802 = vmatpush1.msra.mxu0 0.0
      %2803 = vmatprep.subr.mxu0 0.0
      %2804 = vmatpush1.msra.mxu0 0.0
      %2805 = vmatprep.subr.mxu0 0.0
      %2806 = vmatpush1.msra.mxu0 0.0
      %2807 = vmatprep.subr.mxu0 0.0
      %2808 = vmatpush1.msra.mxu0 0.0
      %2809 = vmatprep.subr.mxu0 0.0
      %2810 = vmatpush1.msra.mxu0 0.0
      %2811 = vmatprep.subr.mxu0 0.0
      %2812 = vmatpush1.msra.mxu0 0.0
      %2813 = vmatprep.subr.mxu0 0.0
      %2814 = vmatpush1.msra.mxu0 0.0
      %2815 = vmatprep.subr.mxu0 0.0
      %2816 = vmatpush1.msra.mxu0 0.0
      %2817 = vmatprep.subr.mxu0 0.0
      %2818 = vmatpush1.msra.mxu0 0.0
      %2819 = vmatprep.subr.mxu0 0.0
      %2820 = vmatpush1.msra.mxu0 0.0
      %2821 = vmatprep.subr.mxu0 0.0
      %2822 = vmatpush1.msra.mxu0 0.0
      %2823 = vmatprep.subr.mxu0 0.0
      %2824 = vmatpush1.msra.mxu0 0.0
      %2825 = vmatprep.subr.mxu0 0.0
      %2826 = vmatpush1.msra.mxu0 0.0
      %2827 = vmatprep.subr.mxu0 0.0
      %2828 = vmatpush1.msra.mxu0 0.0
      %2829 = vmatprep.subr.mxu0 0.0
      %2830 = vmatpush1.msra.mxu0 0.0
      %2831 = vmatprep.subr.mxu0 0.0
      %2832 = vmatpush1.msra.mxu0 0.0
      %2833 = vmatprep.subr.mxu0 0.0
      %2834 = vmatpush1.msra.mxu0 0.0
      %2835 = vmatprep.subr.mxu0 0.0
      %2836 = vmatpush1.msra.mxu0 0.0
      %2837 = vmatprep.subr.mxu0 0.0
      %2838 = vmatpush1.msra.mxu0 0.0
      %2839 = vmatprep.subr.mxu0 0.0
      %2840 = vmatpush1.msra.mxu0 0.0
      %2841 = vmatprep.subr.mxu0 0.0
      %2842 = vmatpush1.msra.mxu0 0.0
      %2843 = vmatprep.subr.mxu0 0.0
      %2844 = vmatpush1.msra.mxu0 0.0
      %2845 = vmatprep.subr.mxu0 0.0
      %2846 = vmatpush1.msra.mxu0 0.0
      %2847 = vmatprep.subr.mxu0 0.0
      %2848 = vmatpush1.msra.mxu0 0.0
      %2849 = vmatprep.subr.mxu0 0.0
      %2850 = vmatpush1.msra.mxu0 0.0
      %2851 = vmatprep.mubr.f32.mxu0 0.0
      %2852 = vmatmul.mubr.f32.gmra.mrb[0].mxu0 %v2783
      %v2853 = vpop.f32.mrb[0].mxu0
      %v2854 = vadd.f32 0.0, %v2853
      %v2855 = vpop.f32.mrb[0].mxu0
      %2856 = vdwg.mxu0
      %2857 = vrot.lane.b32.xlu0 %v1422, 124
      %v2858 = vpop.permute.xlu0 %2857
      %v2860 = vsel %vm794, %v2701, 0
      %v2862 = vsel %vm1272, %v2858, 0
      %2864 = vmatprep.subr.mxu0 0.0
      %2865 = vmatpush1.msra.mxu0 %v2862
      %2866 = vmatprep.subr.mxu0 0.0
      %2867 = vmatpush1.msra.mxu0 0.0
      %2868 = vmatprep.subr.mxu0 0.0
      %2869 = vmatpush1.msra.mxu0 0.0
      %2870 = vmatprep.subr.mxu0 0.0
      %2871 = vmatpush1.msra.mxu0 0.0
      %2872 = vmatprep.subr.mxu0 0.0
      %2873 = vmatpush1.msra.mxu0 0.0
      %2874 = vmatprep.subr.mxu0 0.0
      %2875 = vmatpush1.msra.mxu0 0.0
      %2876 = vmatprep.subr.mxu0 0.0
      %2877 = vmatpush1.msra.mxu0 0.0
      %2878 = vmatprep.subr.mxu0 0.0
      %2879 = vmatpush1.msra.mxu0 0.0
      %2880 = vmatprep.subr.mxu0 0.0
      %2881 = vmatpush1.msra.mxu0 0.0
      %2882 = vmatprep.subr.mxu0 0.0
      %2883 = vmatpush1.msra.mxu0 0.0
      %2884 = vmatprep.subr.mxu0 0.0
      %2885 = vmatpush1.msra.mxu0 0.0
      %2886 = vmatprep.subr.mxu0 0.0
      %2887 = vmatpush1.msra.mxu0 0.0
      %2888 = vmatprep.subr.mxu0 0.0
      %2889 = vmatpush1.msra.mxu0 0.0
      %2890 = vmatprep.subr.mxu0 0.0
      %2891 = vmatpush1.msra.mxu0 0.0
      %2892 = vmatprep.subr.mxu0 0.0
      %2893 = vmatpush1.msra.mxu0 0.0
      %2894 = vmatprep.subr.mxu0 0.0
      %2895 = vmatpush1.msra.mxu0 0.0
      %2896 = vmatprep.subr.mxu0 0.0
      %2897 = vmatpush1.msra.mxu0 0.0
      %2898 = vmatprep.subr.mxu0 0.0
      %2899 = vmatpush1.msra.mxu0 0.0
      %2900 = vmatprep.subr.mxu0 0.0
      %2901 = vmatpush1.msra.mxu0 0.0
      %2902 = vmatprep.subr.mxu0 0.0
      %2903 = vmatpush1.msra.mxu0 0.0
      %2904 = vmatprep.subr.mxu0 0.0
      %2905 = vmatpush1.msra.mxu0 0.0
      %2906 = vmatprep.subr.mxu0 0.0
      %2907 = vmatpush1.msra.mxu0 0.0
      %2908 = vmatprep.subr.mxu0 0.0
      %2909 = vmatpush1.msra.mxu0 0.0
      %2910 = vmatprep.subr.mxu0 0.0
      %2911 = vmatpush1.msra.mxu0 0.0
      %2912 = vmatprep.subr.mxu0 0.0
      %2913 = vmatpush1.msra.mxu0 0.0
      %2914 = vmatprep.subr.mxu0 0.0
      %2915 = vmatpush1.msra.mxu0 0.0
      %2916 = vmatprep.subr.mxu0 0.0
      %2917 = vmatpush1.msra.mxu0 0.0
      %2918 = vmatprep.subr.mxu0 0.0
      %2919 = vmatpush1.msra.mxu0 0.0
      %2920 = vmatprep.subr.mxu0 0.0
      %2921 = vmatpush1.msra.mxu0 0.0
      %2922 = vmatprep.subr.mxu0 0.0
      %2923 = vmatpush1.msra.mxu0 0.0
      %2924 = vmatprep.subr.mxu0 0.0
      %2925 = vmatpush1.msra.mxu0 0.0
      %2926 = vmatprep.subr.mxu0 0.0
      %2927 = vmatpush1.msra.mxu0 0.0
      %2928 = vmatprep.mubr.f32.mxu0 0.0
      %2929 = vmatmul.mubr.f32.gmra.mrb[0].mxu0 %v2860
      %v2930 = vpop.f32.mrb[0].mxu0
      %v2931 = vadd.f32 0.0, %v2930
      %v2932 = vpop.f32.mrb[0].mxu0
      %2933 = vdwg.mxu0
      %2934 = vrot.lane.b32.xlu0 %v1498, 124
      %v2935 = vpop.permute.xlu0 %2934
      %v2937 = vsel %vm794, %v2702, 0
      %v2939 = vsel %vm1272, %v2935, 0
      %2941 = vmatprep.subr.mxu0 0.0
      %2942 = vmatpush1.msra.mxu0 %v2939
      %2943 = vmatprep.subr.mxu0 0.0
      %2944 = vmatpush1.msra.mxu0 0.0
      %2945 = vmatprep.subr.mxu0 0.0
      %2946 = vmatpush1.msra.mxu0 0.0
      %2947 = vmatprep.subr.mxu0 0.0
      %2948 = vmatpush1.msra.mxu0 0.0
      %2949 = vmatprep.subr.mxu0 0.0
      %2950 = vmatpush1.msra.mxu0 0.0
      %2951 = vmatprep.subr.mxu0 0.0
      %2952 = vmatpush1.msra.mxu0 0.0
      %2953 = vmatprep.subr.mxu0 0.0
      %2954 = vmatpush1.msra.mxu0 0.0
      %2955 = vmatprep.subr.mxu0 0.0
      %2956 = vmatpush1.msra.mxu0 0.0
      %2957 = vmatprep.subr.mxu0 0.0
      %2958 = vmatpush1.msra.mxu0 0.0
      %2959 = vmatprep.subr.mxu0 0.0
      %2960 = vmatpush1.msra.mxu0 0.0
      %2961 = vmatprep.subr.mxu0 0.0
      %2962 = vmatpush1.msra.mxu0 0.0
      %2963 = vmatprep.subr.mxu0 0.0
      %2964 = vmatpush1.msra.mxu0 0.0
      %2965 = vmatprep.subr.mxu0 0.0
      %2966 = vmatpush1.msra.mxu0 0.0
      %2967 = vmatprep.subr.mxu0 0.0
      %2968 = vmatpush1.msra.mxu0 0.0
      %2969 = vmatprep.subr.mxu0 0.0
      %2970 = vmatpush1.msra.mxu0 0.0
      %2971 = vmatprep.subr.mxu0 0.0
      %2972 = vmatpush1.msra.mxu0 0.0
      %2973 = vmatprep.subr.mxu0 0.0
      %2974 = vmatpush1.msra.mxu0 0.0
      %2975 = vmatprep.subr.mxu0 0.0
      %2976 = vmatpush1.msra.mxu0 0.0
      %2977 = vmatprep.subr.mxu0 0.0
      %2978 = vmatpush1.msra.mxu0 0.0
      %2979 = vmatprep.subr.mxu0 0.0
      %2980 = vmatpush1.msra.mxu0 0.0
      %2981 = vmatprep.subr.mxu0 0.0
      %2982 = vmatpush1.msra.mxu0 0.0
      %2983 = vmatprep.subr.mxu0 0.0
      %2984 = vmatpush1.msra.mxu0 0.0
      %2985 = vmatprep.subr.mxu0 0.0
      %2986 = vmatpush1.msra.mxu0 0.0
      %2987 = vmatprep.subr.mxu0 0.0
      %2988 = vmatpush1.msra.mxu0 0.0
      %2989 = vmatprep.subr.mxu0 0.0
      %2990 = vmatpush1.msra.mxu0 0.0
      %2991 = vmatprep.subr.mxu0 0.0
      %2992 = vmatpush1.msra.mxu0 0.0
      %2993 = vmatprep.subr.mxu0 0.0
      %2994 = vmatpush1.msra.mxu0 0.0
      %2995 = vmatprep.subr.mxu0 0.0
      %2996 = vmatpush1.msra.mxu0 0.0
      %2997 = vmatprep.subr.mxu0 0.0
      %2998 = vmatpush1.msra.mxu0 0.0
      %2999 = vmatprep.subr.mxu0 0.0
      %3000 = vmatpush1.msra.mxu0 0.0
      %3001 = vmatprep.subr.mxu0 0.0
      %3002 = vmatpush1.msra.mxu0 0.0
      %3003 = vmatprep.subr.mxu0 0.0
      %3004 = vmatpush1.msra.mxu0 0.0
      %3005 = vmatprep.mubr.f32.mxu0 0.0
      %3006 = vmatmul.mubr.f32.gmra.mrb[0].mxu0 %v2937
      %v3007 = vpop.f32.mrb[0].mxu0
      %v3008 = vadd.f32 0.0, %v3007
      %v3009 = vpop.f32.mrb[0].mxu0
      %3010 = vdwg.mxu0
      %v3011 = vadd.f32 %v2695, %v2701
      %v3012 = vadd.f32 %v2696, %v2702
      %3013 = vrot.lane.b32.xlu0 %v1578, 124
      %v3014 = vpop.permute.xlu0 %3013
      %v3016 = vsel %vm794, %v3011, 0
      %v3018 = vsel %vm1272, %v3014, 0
      %3020 = vmatprep.subr.mxu0 0.0
      %3021 = vmatpush1.msra.mxu0 %v3018
      %3022 = vmatprep.subr.mxu0 0.0
      %3023 = vmatpush1.msra.mxu0 0.0
      %3024 = vmatprep.subr.mxu0 0.0
      %3025 = vmatpush1.msra.mxu0 0.0
      %3026 = vmatprep.subr.mxu0 0.0
      %3027 = vmatpush1.msra.mxu0 0.0
      %3028 = vmatprep.subr.mxu0 0.0
      %3029 = vmatpush1.msra.mxu0 0.0
      %3030 = vmatprep.subr.mxu0 0.0
      %3031 = vmatpush1.msra.mxu0 0.0
      %3032 = vmatprep.subr.mxu0 0.0
      %3033 = vmatpush1.msra.mxu0 0.0
      %3034 = vmatprep.subr.mxu0 0.0
      %3035 = vmatpush1.msra.mxu0 0.0
      %3036 = vmatprep.subr.mxu0 0.0
      %3037 = vmatpush1.msra.mxu0 0.0
      %3038 = vmatprep.subr.mxu0 0.0
      %3039 = vmatpush1.msra.mxu0 0.0
      %3040 = vmatprep.subr.mxu0 0.0
      %3041 = vmatpush1.msra.mxu0 0.0
      %3042 = vmatprep.subr.mxu0 0.0
      %3043 = vmatpush1.msra.mxu0 0.0
      %3044 = vmatprep.subr.mxu0 0.0
      %3045 = vmatpush1.msra.mxu0 0.0
      %3046 = vmatprep.subr.mxu0 0.0
      %3047 = vmatpush1.msra.mxu0 0.0
      %3048 = vmatprep.subr.mxu0 0.0
      %3049 = vmatpush1.msra.mxu0 0.0
      %3050 = vmatprep.subr.mxu0 0.0
      %3051 = vmatpush1.msra.mxu0 0.0
      %3052 = vmatprep.subr.mxu0 0.0
      %3053 = vmatpush1.msra.mxu0 0.0
      %3054 = vmatprep.subr.mxu0 0.0
      %3055 = vmatpush1.msra.mxu0 0.0
      %3056 = vmatprep.subr.mxu0 0.0
      %3057 = vmatpush1.msra.mxu0 0.0
      %3058 = vmatprep.subr.mxu0 0.0
      %3059 = vmatpush1.msra.mxu0 0.0
      %3060 = vmatprep.subr.mxu0 0.0
      %3061 = vmatpush1.msra.mxu0 0.0
      %3062 = vmatprep.subr.mxu0 0.0
      %3063 = vmatpush1.msra.mxu0 0.0
      %3064 = vmatprep.subr.mxu0 0.0
      %3065 = vmatpush1.msra.mxu0 0.0
      %3066 = vmatprep.subr.mxu0 0.0
      %3067 = vmatpush1.msra.mxu0 0.0
      %3068 = vmatprep.subr.mxu0 0.0
      %3069 = vmatpush1.msra.mxu0 0.0
      %3070 = vmatprep.subr.mxu0 0.0
      %3071 = vmatpush1.msra.mxu0 0.0
      %3072 = vmatprep.subr.mxu0 0.0
      %3073 = vmatpush1.msra.mxu0 0.0
      %3074 = vmatprep.subr.mxu0 0.0
      %3075 = vmatpush1.msra.mxu0 0.0
      %3076 = vmatprep.subr.mxu0 0.0
      %3077 = vmatpush1.msra.mxu0 0.0
      %3078 = vmatprep.subr.mxu0 0.0
      %3079 = vmatpush1.msra.mxu0 0.0
      %3080 = vmatprep.subr.mxu0 0.0
      %3081 = vmatpush1.msra.mxu0 0.0
      %3082 = vmatprep.subr.mxu0 0.0
      %3083 = vmatpush1.msra.mxu0 0.0
      %3084 = vmatprep.mubr.f32.mxu0 0.0
      %3085 = vmatmul.mubr.f32.gmra.mrb[0].mxu0 %v3016
      %v3086 = vpop.f32.mrb[0].mxu0
      %v3087 = vadd.f32 0.0, %v3086
      %v3088 = vpop.f32.mrb[0].mxu0
      %3089 = vdwg.mxu0
      %3090 = vrot.lane.b32.xlu0 %v1579, 124
      %v3091 = vpop.permute.xlu0 %3090
      %v3093 = vsel %vm794, %v3012, 0
      %v3095 = vsel %vm1272, %v3091, 0
      %3097 = vmatprep.subr.mxu0 0.0
      %3098 = vmatpush1.msra.mxu0 %v3095
      %3099 = vmatprep.subr.mxu0 0.0
      %3100 = vmatpush1.msra.mxu0 0.0
      %3101 = vmatprep.subr.mxu0 0.0
      %3102 = vmatpush1.msra.mxu0 0.0
      %3103 = vmatprep.subr.mxu0 0.0
      %3104 = vmatpush1.msra.mxu0 0.0
      %3105 = vmatprep.subr.mxu0 0.0
      %3106 = vmatpush1.msra.mxu0 0.0
      %3107 = vmatprep.subr.mxu0 0.0
      %3108 = vmatpush1.msra.mxu0 0.0
      %3109 = vmatprep.subr.mxu0 0.0
      %3110 = vmatpush1.msra.mxu0 0.0
      %3111 = vmatprep.subr.mxu0 0.0
      %3112 = vmatpush1.msra.mxu0 0.0
      %3113 = vmatprep.subr.mxu0 0.0
      %3114 = vmatpush1.msra.mxu0 0.0
      %3115 = vmatprep.subr.mxu0 0.0
      %3116 = vmatpush1.msra.mxu0 0.0
      %3117 = vmatprep.subr.mxu0 0.0
      %3118 = vmatpush1.msra.mxu0 0.0
      %3119 = vmatprep.subr.mxu0 0.0
      %3120 = vmatpush1.msra.mxu0 0.0
      %3121 = vmatprep.subr.mxu0 0.0
      %3122 = vmatpush1.msra.mxu0 0.0
      %3123 = vmatprep.subr.mxu0 0.0
      %3124 = vmatpush1.msra.mxu0 0.0
      %3125 = vmatprep.subr.mxu0 0.0
      %3126 = vmatpush1.msra.mxu0 0.0
      %3127 = vmatprep.subr.mxu0 0.0
      %3128 = vmatpush1.msra.mxu0 0.0
      %3129 = vmatprep.subr.mxu0 0.0
      %3130 = vmatpush1.msra.mxu0 0.0
      %3131 = vmatprep.subr.mxu0 0.0
      %3132 = vmatpush1.msra.mxu0 0.0
      %3133 = vmatprep.subr.mxu0 0.0
      %3134 = vmatpush1.msra.mxu0 0.0
      %3135 = vmatprep.subr.mxu0 0.0
      %3136 = vmatpush1.msra.mxu0 0.0
      %3137 = vmatprep.subr.mxu0 0.0
      %3138 = vmatpush1.msra.mxu0 0.0
      %3139 = vmatprep.subr.mxu0 0.0
      %3140 = vmatpush1.msra.mxu0 0.0
      %3141 = vmatprep.subr.mxu0 0.0
      %3142 = vmatpush1.msra.mxu0 0.0
      %3143 = vmatprep.subr.mxu0 0.0
      %3144 = vmatpush1.msra.mxu0 0.0
      %3145 = vmatprep.subr.mxu0 0.0
      %3146 = vmatpush1.msra.mxu0 0.0
      %3147 = vmatprep.subr.mxu0 0.0
      %3148 = vmatpush1.msra.mxu0 0.0
      %3149 = vmatprep.subr.mxu0 0.0
      %3150 = vmatpush1.msra.mxu0 0.0
      %3151 = vmatprep.subr.mxu0 0.0
      %3152 = vmatpush1.msra.mxu0 0.0
      %3153 = vmatprep.subr.mxu0 0.0
      %3154 = vmatpush1.msra.mxu0 0.0
      %3155 = vmatprep.subr.mxu0 0.0
      %3156 = vmatpush1.msra.mxu0 0.0
      %3157 = vmatprep.subr.mxu0 0.0
      %3158 = vmatpush1.msra.mxu0 0.0
      %3159 = vmatprep.subr.mxu0 0.0
      %3160 = vmatpush1.msra.mxu0 0.0
      %3161 = vmatprep.mubr.f32.mxu0 0.0
      %3162 = vmatmul.mubr.f32.gmra.mrb[0].mxu0 %v3093
      %v3163 = vpop.f32.mrb[0].mxu0
      %v3164 = vadd.f32 0.0, %v3163
      %v3165 = vpop.f32.mrb[0].mxu0
      %3166 = vdwg.mxu0
      %v3167 = vsub.f32 %v2777, %v2931
      %v3168 = vsub.f32 %v2854, %v3008
      %v3169 = vsub.f32 %v3087, %v2777
      %v3170 = vsub.f32 %v3164, %v2854
      %v3171 = vsub.f32 %v3169, %v2931
      %v3172 = vsub.f32 %v3170, %v3008
      %v3175 = vunpack.c.l.s4 1966171168
      %v3176 = vunpack.c.0.s8 %v3175
      %v3177 = vlaneseq
      %v3178 = vshrl.u32 %v3177, 7
      %v3179 = vsub.s32 %v3176, %v3178
      %v3180 = vrot.slane %v3167, %v3179
      %v3181 = vcombine.high %v3180, %v3180
      %v3183 = vunpack.c.l.s4 1966171168
      %v3184 = vunpack.c.0.s8 %v3183
      %v3185 = vlaneseq
      %v3186 = vshrl.u32 %v3185, 7
      %v3187 = vsub.s32 %v3184, %v3186
      %v3188 = vrot.slane %v3180, %v3187
      %v3190 = vunpack.c.l.s4 1966171168
      %v3191 = vunpack.c.0.s8 %v3190
      %v3192 = vlaneseq
      %v3193 = vshrl.u32 %v3192, 7
      %v3194 = vsub.s32 %v3191, %v3193
      %v3195 = vrot.slane %v3181, %v3194
      %v3196 = vcombine.high %v3188, %v3188
      %v3197 = vcombine.high %v3195, %v3195
      %v3204 = vunpack.c.l.s4 1966171168
      %v3205 = vunpack.c.0.s8 %v3204
      %v3206 = vlaneseq
      %v3207 = vshrl.u32 %v3206, 7
      %v3208 = vsub.s32 %v3205, %v3207
      %v3209 = vrot.slane %v3168, %v3208
      %v3210 = vcombine.high %v3209, %v3209
      %v3212 = vunpack.c.l.s4 1966171168
      %v3213 = vunpack.c.0.s8 %v3212
      %v3214 = vlaneseq
      %v3215 = vshrl.u32 %v3214, 7
      %v3216 = vsub.s32 %v3213, %v3215
      %v3217 = vrot.slane %v3209, %v3216
      %v3219 = vunpack.c.l.s4 1966171168
      %v3220 = vunpack.c.0.s8 %v3219
      %v3221 = vlaneseq
      %v3222 = vshrl.u32 %v3221, 7
      %v3223 = vsub.s32 %v3220, %v3222
      %v3224 = vrot.slane %v3210, %v3223
      %v3225 = vcombine.high %v3217, %v3217
      %v3226 = vcombine.high %v3224, %v3224
      %v3229 = vunpack.c.l.s4 1966171168
      %v3230 = vunpack.c.0.s8 %v3229
      %v3231 = vlaneseq
      %v3232 = vshrl.u32 %v3231, 7
      %v3233 = vsub.s32 %v3230, %v3232
      %v3234 = vrot.slane %v3171, %v3233
      %v3235 = vcombine.high %v3234, %v3234
      %v3237 = vunpack.c.l.s4 1966171168
      %v3238 = vunpack.c.0.s8 %v3237
      %v3239 = vlaneseq
      %v3240 = vshrl.u32 %v3239, 7
      %v3241 = vsub.s32 %v3238, %v3240
      %v3242 = vrot.slane %v3234, %v3241
      %v3244 = vunpack.c.l.s4 1966171168
      %v3245 = vunpack.c.0.s8 %v3244
      %v3246 = vlaneseq
      %v3247 = vshrl.u32 %v3246, 7
      %v3248 = vsub.s32 %v3245, %v3247
      %v3249 = vrot.slane %v3235, %v3248
      %v3250 = vcombine.high %v3242, %v3242
      %v3251 = vcombine.high %v3249, %v3249
      %v3254 = vunpack.c.l.s4 1966171168
      %v3255 = vunpack.c.0.s8 %v3254
      %v3256 = vlaneseq
      %v3257 = vshrl.u32 %v3256, 7
      %v3258 = vsub.s32 %v3255, %v3257
      %v3259 = vrot.slane %v3172, %v3258
      %v3260 = vcombine.high %v3259, %v3259
      %v3262 = vunpack.c.l.s4 1966171168
      %v3263 = vunpack.c.0.s8 %v3262
      %v3264 = vlaneseq
      %v3265 = vshrl.u32 %v3264, 7
      %v3266 = vsub.s32 %v3263, %v3265
      %v3267 = vrot.slane %v3259, %v3266
      %v3269 = vunpack.c.l.s4 1966171168
      %v3270 = vunpack.c.0.s8 %v3269
      %v3271 = vlaneseq
      %v3272 = vshrl.u32 %v3271, 7
      %v3273 = vsub.s32 %v3270, %v3272
      %v3274 = vrot.slane %v3260, %v3273
      %v3275 = vcombine.high %v3267, %v3267
      %v3276 = vcombine.high %v3274, %v3274
      %v3277 = vlaneseq
      %v3278 = vshrl.u32 %v3277, 7
      %v3279 = vsub.s32 0, %v3278
      %v3280 = vrot.slane %v3217, %v3279
      %v3281 = vlaneseq
      %v3282 = vshrl.u32 %v3281, 7
      %v3283 = vsub.s32 0, %v3282
      %v3284 = vrot.slane %v3224, %v3283
      %v3285 = vlaneseq
      %v3286 = vshrl.u32 %v3285, 7
      %v3287 = vsub.s32 0, %v3286
      %v3288 = vrot.slane %v3225, %v3287
      %v3289 = vlaneseq
      %v3290 = vshrl.u32 %v3289, 7
      %v3291 = vsub.s32 0, %v3290
      %v3292 = vrot.slane %v3226, %v3291
      %v3297 = vlaneseq
      %v3298 = vshrl.u32 %v3297, 7
      %v3299 = vsub.s32 0, %v3298
      %v3300 = vrot.slane %v3242, %v3299
      %v3301 = vlaneseq
      %v3302 = vshrl.u32 %v3301, 7
      %v3303 = vsub.s32 0, %v3302
      %v3304 = vrot.slane %v3249, %v3303
      %v3305 = vlaneseq
      %v3306 = vshrl.u32 %v3305, 7
      %v3307 = vsub.s32 0, %v3306
      %v3308 = vrot.slane %v3250, %v3307
      %v3309 = vlaneseq
      %v3310 = vshrl.u32 %v3309, 7
      %v3311 = vsub.s32 0, %v3310
      %v3312 = vrot.slane %v3251, %v3311
      %v3317 = vlaneseq
      %v3318 = vshrl.u32 %v3317, 7
      %v3319 = vsub.s32 0, %v3318
      %v3320 = vrot.slane %v3267, %v3319
      %v3321 = vlaneseq
      %v3322 = vshrl.u32 %v3321, 7
      %v3323 = vsub.s32 0, %v3322
      %v3324 = vrot.slane %v3274, %v3323
      %v3325 = vlaneseq
      %v3326 = vshrl.u32 %v3325, 7
      %v3327 = vsub.s32 0, %v3326
      %v3328 = vrot.slane %v3275, %v3327
      %v3329 = vlaneseq
      %v3330 = vshrl.u32 %v3329, 7
      %v3331 = vsub.s32 0, %v3330
      %v3332 = vrot.slane %v3276, %v3331
      %v3337 = vsel %vm1902, %v3188, %v3280
      %v3338 = vsel %vm1902, %v3195, %v3284
      %v3339 = vsel %vm1902, %v3196, %v3288
      %v3340 = vsel %vm1902, %v3197, %v3292
      %v3341 = vsel %vm1907, %v3337, %v3300
      %v3342 = vsel %vm1907, %v3338, %v3304
      %v3343 = vsel %vm1907, %v3339, %v3308
      %v3344 = vsel %vm1907, %v3340, %v3312
      %v3345 = vsel %vm1912, %v3341, %v3320
      %v3346 = vsel %vm1912, %v3342, %v3324
      %v3347 = vsel %vm1912, %v3343, %v3328
      %v3348 = vsel %vm1912, %v3344, %v3332
      %s3349 = scalar_lea.vmem %s5, 32
      %v3350 = vld [vmem:[%s3349] sm:$0xff]
      %v3351 = vld [vmem:[%s3349 + $0x8] sm:$0xff]
      %v3352 = vld [vmem:[%s3349 + $0x10] sm:$0xff]
      %v3353 = vld [vmem:[%s3349 + $0x18] sm:$0xff]
      %v3355 = vsel %vm794, %v3345, 0
      %v3358 = vsel %vm794, %v3350, 0
      %3360 = vmatprep.subr.mxu0 0.0
      %3361 = vmatpush1.xpose.msra.mxu0 %v3358
      %3362 = vmatprep.subr.mxu0 0.0
      %3363 = vmatpush1.xpose.msra.mxu0 0.0
      %3364 = vmatprep.subr.mxu0 0.0
      %3365 = vmatpush1.xpose.msra.mxu0 0.0
      %3366 = vmatprep.subr.mxu0 0.0
      %3367 = vmatpush1.xpose.msra.mxu0 0.0
      %3368 = vmatprep.subr.mxu0 0.0
      %3369 = vmatpush1.xpose.msra.mxu0 0.0
      %3370 = vmatprep.subr.mxu0 0.0
      %3371 = vmatpush1.xpose.msra.mxu0 0.0
      %3372 = vmatprep.subr.mxu0 0.0
      %3373 = vmatpush1.xpose.msra.mxu0 0.0
      %3374 = vmatprep.subr.mxu0 0.0
      %3375 = vmatpush1.xpose.msra.mxu0 0.0
      %3376 = vmatprep.subr.mxu0 0.0
      %3377 = vmatpush1.xpose.msra.mxu0 0.0
      %3378 = vmatprep.subr.mxu0 0.0
      %3379 = vmatpush1.xpose.msra.mxu0 0.0
      %3380 = vmatprep.subr.mxu0 0.0
      %3381 = vmatpush1.xpose.msra.mxu0 0.0
      %3382 = vmatprep.subr.mxu0 0.0
      %3383 = vmatpush1.xpose.msra.mxu0 0.0
      %3384 = vmatprep.subr.mxu0 0.0
      %3385 = vmatpush1.xpose.msra.mxu0 0.0
      %3386 = vmatprep.subr.mxu0 0.0
      %3387 = vmatpush1.xpose.msra.mxu0 0.0
      %3388 = vmatprep.subr.mxu0 0.0
      %3389 = vmatpush1.xpose.msra.mxu0 0.0
      %3390 = vmatprep.subr.mxu0 0.0
      %3391 = vmatpush1.xpose.msra.mxu0 0.0
      %3392 = vmatprep.subr.mxu0 0.0
      %3393 = vmatpush1.xpose.msra.mxu0 0.0
      %3394 = vmatprep.subr.mxu0 0.0
      %3395 = vmatpush1.xpose.msra.mxu0 0.0
      %3396 = vmatprep.subr.mxu0 0.0
      %3397 = vmatpush1.xpose.msra.mxu0 0.0
      %3398 = vmatprep.subr.mxu0 0.0
      %3399 = vmatpush1.xpose.msra.mxu0 0.0
      %3400 = vmatprep.subr.mxu0 0.0
      %3401 = vmatpush1.xpose.msra.mxu0 0.0
      %3402 = vmatprep.subr.mxu0 0.0
      %3403 = vmatpush1.xpose.msra.mxu0 0.0
      %3404 = vmatprep.subr.mxu0 0.0
      %3405 = vmatpush1.xpose.msra.mxu0 0.0
      %3406 = vmatprep.subr.mxu0 0.0
      %3407 = vmatpush1.xpose.msra.mxu0 0.0
      %3408 = vmatprep.subr.mxu0 0.0
      %3409 = vmatpush1.xpose.msra.mxu0 0.0
      %3410 = vmatprep.subr.mxu0 0.0
      %3411 = vmatpush1.xpose.msra.mxu0 0.0
      %3412 = vmatprep.subr.mxu0 0.0
      %3413 = vmatpush1.xpose.msra.mxu0 0.0
      %3414 = vmatprep.subr.mxu0 0.0
      %3415 = vmatpush1.xpose.msra.mxu0 0.0
      %3416 = vmatprep.subr.mxu0 0.0
      %3417 = vmatpush1.xpose.msra.mxu0 0.0
      %3418 = vmatprep.subr.mxu0 0.0
      %3419 = vmatpush1.xpose.msra.mxu0 0.0
      %3420 = vmatprep.subr.mxu0 0.0
      %3421 = vmatpush1.xpose.msra.mxu0 0.0
      %3422 = vmatprep.subr.mxu0 0.0
      %3423 = vmatpush1.xpose.msra.mxu0 0.0
      %3424 = vmatprep.mubr.f32.mxu0 0.0
      %3425 = vmatmul.mubr.f32.gmra.mrb[0].mxu0 %v3355
      %v3426 = vpop.f32.mrb[0].mxu0
      %v3427 = vadd.f32 0.0, %v3426
      %v3428 = vpop.f32.mrb[0].mxu0
      %3429 = vdwg.mxu0
      %v3431 = vsel %vm794, %v3346, 0
      %v3434 = vsel %vm794, %v3351, 0
      %3436 = vmatprep.subr.mxu0 0.0
      %3437 = vmatpush1.xpose.msra.mxu0 %v3434
      %3438 = vmatprep.subr.mxu0 0.0
      %3439 = vmatpush1.xpose.msra.mxu0 0.0
      %3440 = vmatprep.subr.mxu0 0.0
      %3441 = vmatpush1.xpose.msra.mxu0 0.0
      %3442 = vmatprep.subr.mxu0 0.0
      %3443 = vmatpush1.xpose.msra.mxu0 0.0
      %3444 = vmatprep.subr.mxu0 0.0
      %3445 = vmatpush1.xpose.msra.mxu0 0.0
      %3446 = vmatprep.subr.mxu0 0.0
      %3447 = vmatpush1.xpose.msra.mxu0 0.0
      %3448 = vmatprep.subr.mxu0 0.0
      %3449 = vmatpush1.xpose.msra.mxu0 0.0
      %3450 = vmatprep.subr.mxu0 0.0
      %3451 = vmatpush1.xpose.msra.mxu0 0.0
      %3452 = vmatprep.subr.mxu0 0.0
      %3453 = vmatpush1.xpose.msra.mxu0 0.0
      %3454 = vmatprep.subr.mxu0 0.0
      %3455 = vmatpush1.xpose.msra.mxu0 0.0
      %3456 = vmatprep.subr.mxu0 0.0
      %3457 = vmatpush1.xpose.msra.mxu0 0.0
      %3458 = vmatprep.subr.mxu0 0.0
      %3459 = vmatpush1.xpose.msra.mxu0 0.0
      %3460 = vmatprep.subr.mxu0 0.0
      %3461 = vmatpush1.xpose.msra.mxu0 0.0
      %3462 = vmatprep.subr.mxu0 0.0
      %3463 = vmatpush1.xpose.msra.mxu0 0.0
      %3464 = vmatprep.subr.mxu0 0.0
      %3465 = vmatpush1.xpose.msra.mxu0 0.0
      %3466 = vmatprep.subr.mxu0 0.0
      %3467 = vmatpush1.xpose.msra.mxu0 0.0
      %3468 = vmatprep.subr.mxu0 0.0
      %3469 = vmatpush1.xpose.msra.mxu0 0.0
      %3470 = vmatprep.subr.mxu0 0.0
      %3471 = vmatpush1.xpose.msra.mxu0 0.0
      %3472 = vmatprep.subr.mxu0 0.0
      %3473 = vmatpush1.xpose.msra.mxu0 0.0
      %3474 = vmatprep.subr.mxu0 0.0
      %3475 = vmatpush1.xpose.msra.mxu0 0.0
      %3476 = vmatprep.subr.mxu0 0.0
      %3477 = vmatpush1.xpose.msra.mxu0 0.0
      %3478 = vmatprep.subr.mxu0 0.0
      %3479 = vmatpush1.xpose.msra.mxu0 0.0
      %3480 = vmatprep.subr.mxu0 0.0
      %3481 = vmatpush1.xpose.msra.mxu0 0.0
      %3482 = vmatprep.subr.mxu0 0.0
      %3483 = vmatpush1.xpose.msra.mxu0 0.0
      %3484 = vmatprep.subr.mxu0 0.0
      %3485 = vmatpush1.xpose.msra.mxu0 0.0
      %3486 = vmatprep.subr.mxu0 0.0
      %3487 = vmatpush1.xpose.msra.mxu0 0.0
      %3488 = vmatprep.subr.mxu0 0.0
      %3489 = vmatpush1.xpose.msra.mxu0 0.0
      %3490 = vmatprep.subr.mxu0 0.0
      %3491 = vmatpush1.xpose.msra.mxu0 0.0
      %3492 = vmatprep.subr.mxu0 0.0
      %3493 = vmatpush1.xpose.msra.mxu0 0.0
      %3494 = vmatprep.subr.mxu0 0.0
      %3495 = vmatpush1.xpose.msra.mxu0 0.0
      %3496 = vmatprep.subr.mxu0 0.0
      %3497 = vmatpush1.xpose.msra.mxu0 0.0
      %3498 = vmatprep.subr.mxu0 0.0
      %3499 = vmatpush1.xpose.msra.mxu0 0.0
      %3500 = vmatprep.mubr.f32.mxu0 0.0
      %3501 = vmatmul.mubr.f32.gmra.mrb[0].mxu0 %v3431
      %v3502 = vpop.f32.mrb[0].mxu0
      %v3503 = vadd.f32 0.0, %v3502
      %v3504 = vpop.f32.mrb[0].mxu0
      %3505 = vdwg.mxu0
      %v3507 = vsel %vm794, %v3347, 0
      %v3510 = vsel %vm794, %v3352, 0
      %3512 = vmatprep.subr.mxu0 0.0
      %3513 = vmatpush1.xpose.msra.mxu0 %v3510
      %3514 = vmatprep.subr.mxu0 0.0
      %3515 = vmatpush1.xpose.msra.mxu0 0.0
      %3516 = vmatprep.subr.mxu0 0.0
      %3517 = vmatpush1.xpose.msra.mxu0 0.0
      %3518 = vmatprep.subr.mxu0 0.0
      %3519 = vmatpush1.xpose.msra.mxu0 0.0
      %3520 = vmatprep.subr.mxu0 0.0
      %3521 = vmatpush1.xpose.msra.mxu0 0.0
      %3522 = vmatprep.subr.mxu0 0.0
      %3523 = vmatpush1.xpose.msra.mxu0 0.0
      %3524 = vmatprep.subr.mxu0 0.0
      %3525 = vmatpush1.xpose.msra.mxu0 0.0
      %3526 = vmatprep.subr.mxu0 0.0
      %3527 = vmatpush1.xpose.msra.mxu0 0.0
      %3528 = vmatprep.subr.mxu0 0.0
      %3529 = vmatpush1.xpose.msra.mxu0 0.0
      %3530 = vmatprep.subr.mxu0 0.0
      %3531 = vmatpush1.xpose.msra.mxu0 0.0
      %3532 = vmatprep.subr.mxu0 0.0
      %3533 = vmatpush1.xpose.msra.mxu0 0.0
      %3534 = vmatprep.subr.mxu0 0.0
      %3535 = vmatpush1.xpose.msra.mxu0 0.0
      %3536 = vmatprep.subr.mxu0 0.0
      %3537 = vmatpush1.xpose.msra.mxu0 0.0
      %3538 = vmatprep.subr.mxu0 0.0
      %3539 = vmatpush1.xpose.msra.mxu0 0.0
      %3540 = vmatprep.subr.mxu0 0.0
      %3541 = vmatpush1.xpose.msra.mxu0 0.0
      %3542 = vmatprep.subr.mxu0 0.0
      %3543 = vmatpush1.xpose.msra.mxu0 0.0
      %3544 = vmatprep.subr.mxu0 0.0
      %3545 = vmatpush1.xpose.msra.mxu0 0.0
      %3546 = vmatprep.subr.mxu0 0.0
      %3547 = vmatpush1.xpose.msra.mxu0 0.0
      %3548 = vmatprep.subr.mxu0 0.0
      %3549 = vmatpush1.xpose.msra.mxu0 0.0
      %3550 = vmatprep.subr.mxu0 0.0
      %3551 = vmatpush1.xpose.msra.mxu0 0.0
      %3552 = vmatprep.subr.mxu0 0.0
      %3553 = vmatpush1.xpose.msra.mxu0 0.0
      %3554 = vmatprep.subr.mxu0 0.0
      %3555 = vmatpush1.xpose.msra.mxu0 0.0
      %3556 = vmatprep.subr.mxu0 0.0
      %3557 = vmatpush1.xpose.msra.mxu0 0.0
      %3558 = vmatprep.subr.mxu0 0.0
      %3559 = vmatpush1.xpose.msra.mxu0 0.0
      %3560 = vmatprep.subr.mxu0 0.0
      %3561 = vmatpush1.xpose.msra.mxu0 0.0
      %3562 = vmatprep.subr.mxu0 0.0
      %3563 = vmatpush1.xpose.msra.mxu0 0.0
      %3564 = vmatprep.subr.mxu0 0.0
      %3565 = vmatpush1.xpose.msra.mxu0 0.0
      %3566 = vmatprep.subr.mxu0 0.0
      %3567 = vmatpush1.xpose.msra.mxu0 0.0
      %3568 = vmatprep.subr.mxu0 0.0
      %3569 = vmatpush1.xpose.msra.mxu0 0.0
      %3570 = vmatprep.subr.mxu0 0.0
      %3571 = vmatpush1.xpose.msra.mxu0 0.0
      %3572 = vmatprep.subr.mxu0 0.0
      %3573 = vmatpush1.xpose.msra.mxu0 0.0
      %3574 = vmatprep.subr.mxu0 0.0
      %3575 = vmatpush1.xpose.msra.mxu0 0.0
      %3576 = vmatprep.mubr.f32.mxu0 0.0
      %3577 = vmatmul.mubr.f32.gmra.mrb[0].mxu0 %v3507
      %v3578 = vpop.f32.mrb[0].mxu0
      %v3579 = vadd.f32 0.0, %v3578
      %v3580 = vpop.f32.mrb[0].mxu0
      %3581 = vdwg.mxu0
      %v3583 = vsel %vm794, %v3348, 0
      %v3586 = vsel %vm794, %v3353, 0
      %3588 = vmatprep.subr.mxu0 0.0
      %3589 = vmatpush1.xpose.msra.mxu0 %v3586
      %3590 = vmatprep.subr.mxu0 0.0
      %3591 = vmatpush1.xpose.msra.mxu0 0.0
      %3592 = vmatprep.subr.mxu0 0.0
      %3593 = vmatpush1.xpose.msra.mxu0 0.0
      %3594 = vmatprep.subr.mxu0 0.0
      %3595 = vmatpush1.xpose.msra.mxu0 0.0
      %3596 = vmatprep.subr.mxu0 0.0
      %3597 = vmatpush1.xpose.msra.mxu0 0.0
      %3598 = vmatprep.subr.mxu0 0.0
      %3599 = vmatpush1.xpose.msra.mxu0 0.0
      %3600 = vmatprep.subr.mxu0 0.0
      %3601 = vmatpush1.xpose.msra.mxu0 0.0
      %3602 = vmatprep.subr.mxu0 0.0
      %3603 = vmatpush1.xpose.msra.mxu0 0.0
      %3604 = vmatprep.subr.mxu0 0.0
      %3605 = vmatpush1.xpose.msra.mxu0 0.0
      %3606 = vmatprep.subr.mxu0 0.0
      %3607 = vmatpush1.xpose.msra.mxu0 0.0
      %3608 = vmatprep.subr.mxu0 0.0
      %3609 = vmatpush1.xpose.msra.mxu0 0.0
      %3610 = vmatprep.subr.mxu0 0.0
      %3611 = vmatpush1.xpose.msra.mxu0 0.0
      %3612 = vmatprep.subr.mxu0 0.0
      %3613 = vmatpush1.xpose.msra.mxu0 0.0
      %3614 = vmatprep.subr.mxu0 0.0
      %3615 = vmatpush1.xpose.msra.mxu0 0.0
      %3616 = vmatprep.subr.mxu0 0.0
      %3617 = vmatpush1.xpose.msra.mxu0 0.0
      %3618 = vmatprep.subr.mxu0 0.0
      %3619 = vmatpush1.xpose.msra.mxu0 0.0
      %3620 = vmatprep.subr.mxu0 0.0
      %3621 = vmatpush1.xpose.msra.mxu0 0.0
      %3622 = vmatprep.subr.mxu0 0.0
      %3623 = vmatpush1.xpose.msra.mxu0 0.0
      %3624 = vmatprep.subr.mxu0 0.0
      %3625 = vmatpush1.xpose.msra.mxu0 0.0
      %3626 = vmatprep.subr.mxu0 0.0
      %3627 = vmatpush1.xpose.msra.mxu0 0.0
      %3628 = vmatprep.subr.mxu0 0.0
      %3629 = vmatpush1.xpose.msra.mxu0 0.0
      %3630 = vmatprep.subr.mxu0 0.0
      %3631 = vmatpush1.xpose.msra.mxu0 0.0
      %3632 = vmatprep.subr.mxu0 0.0
      %3633 = vmatpush1.xpose.msra.mxu0 0.0
      %3634 = vmatprep.subr.mxu0 0.0
      %3635 = vmatpush1.xpose.msra.mxu0 0.0
      %3636 = vmatprep.subr.mxu0 0.0
      %3637 = vmatpush1.xpose.msra.mxu0 0.0
      %3638 = vmatprep.subr.mxu0 0.0
      %3639 = vmatpush1.xpose.msra.mxu0 0.0
      %3640 = vmatprep.subr.mxu0 0.0
      %3641 = vmatpush1.xpose.msra.mxu0 0.0
      %3642 = vmatprep.subr.mxu0 0.0
      %3643 = vmatpush1.xpose.msra.mxu0 0.0
      %3644 = vmatprep.subr.mxu0 0.0
      %3645 = vmatpush1.xpose.msra.mxu0 0.0
      %3646 = vmatprep.subr.mxu0 0.0
      %3647 = vmatpush1.xpose.msra.mxu0 0.0
      %3648 = vmatprep.subr.mxu0 0.0
      %3649 = vmatpush1.xpose.msra.mxu0 0.0
      %3650 = vmatprep.subr.mxu0 0.0
      %3651 = vmatpush1.xpose.msra.mxu0 0.0
      %3652 = vmatprep.mubr.f32.mxu0 0.0
      %3653 = vmatmul.mubr.f32.gmra.mrb[0].mxu0 %v3583
      %v3654 = vpop.f32.mrb[0].mxu0
      %v3655 = vadd.f32 0.0, %v3654
      %v3656 = vpop.f32.mrb[0].mxu0
      %3657 = vdwg.mxu0
      %v3658 = vld [vmem:[%s6] sm:$0xff]
      %v3659 = vld [vmem:[%s6 + $0x8] sm:$0xff]
      %v3664 = vrot.slane %v1994, 2
      %v3665 = vrot.slane %v2070, 2
      %v3666 = vrot.slane %v2146, 2
      %v3667 = vrot.slane %v2222, 2
      %3668 = vrot.lane.b32.xlu0 %v3664, 124
      %v3669 = vpop.permute.xlu0 %3668
      %3670 = vrot.lane.b32.xlu0 %v3665, 124
      %v3671 = vpop.permute.xlu0 %3670
      %3672 = vrot.lane.b32.xlu0 %v3666, 124
      %v3673 = vpop.permute.xlu0 %3672
      %3674 = vrot.lane.b32.xlu0 %v3667, 124
      %v3675 = vpop.permute.xlu0 %3674
      %v3680 = vsub.f32 %v1994, %v3669
      %v3681 = vsub.f32 %v2070, %v3671
      %v3682 = vsub.f32 %v2146, %v3673
      %v3683 = vsub.f32 %v2222, %v3675
      %3684 = vrot.lane.b32.xlu0 %v3664, 4
      %v3685 = vpop.permute.xlu0 %3684
      %3686 = vrot.lane.b32.xlu0 %v3665, 4
      %v3687 = vpop.permute.xlu0 %3686
      %3688 = vrot.lane.b32.xlu0 %v3666, 4
      %v3689 = vpop.permute.xlu0 %3688
      %3690 = vrot.lane.b32.xlu0 %v3667, 4
      %v3691 = vpop.permute.xlu0 %3690
      %v3696 = vadd.f32 %v1994, %v3685
      %v3697 = vadd.f32 %v2070, %v3687
      %v3698 = vadd.f32 %v2146, %v3689
      %v3699 = vadd.f32 %v2222, %v3691
      %v3704 = vrot.slane %v3681, 7
      %vm3705 = vcmask 1041409
      %v3706 = vsel %vm3705, %v3704, %v3680
      %v3707 = vrot.slane %v3682, 6
      %vm3708 = vcmask 1042434
      %v3709 = vsel %vm3708, %v3707, %v3706
      %v3710 = vrot.slane %v3683, 5
      %vm3711 = vcmask 1043459
      %v3712 = vsel %vm3711, %v3710, %v3709
      %v3718 = vrot.slane %v3696, 4
      %v3719 = vrot.slane %v3697, 3
      %vm3720 = vcmask 1045509
      %v3721 = vsel %vm3720, %v3719, %v3718
      %v3722 = vrot.slane %v3698, 2
      %vm3723 = vcmask 1046534
      %v3724 = vsel %vm3723, %v3722, %v3721
      %v3725 = vrot.slane %v3699, 1
      %vm3726 = vcmask 1047559
      %v3727 = vsel %vm3726, %v3725, %v3724
      %3728 = vrot.lane.b32.xlu0 %v3727, 124
      %v3729 = vpop.permute.xlu0 %3728
      %v3731 = vsel %vm1272, %v3712, %v3729
      %v3736 = vrot.slane %v3427, 2
      %v3737 = vrot.slane %v3503, 2
      %v3738 = vrot.slane %v3579, 2
      %v3739 = vrot.slane %v3655, 2
      %3740 = vrot.lane.b32.xlu0 %v3736, 124
      %v3741 = vpop.permute.xlu0 %3740
      %3742 = vrot.lane.b32.xlu0 %v3737, 124
      %v3743 = vpop.permute.xlu0 %3742
      %3744 = vrot.lane.b32.xlu0 %v3738, 124
      %v3745 = vpop.permute.xlu0 %3744
      %3746 = vrot.lane.b32.xlu0 %v3739, 124
      %v3747 = vpop.permute.xlu0 %3746
      %v3752 = vsub.f32 %v3427, %v3741
      %v3753 = vsub.f32 %v3503, %v3743
      %v3754 = vsub.f32 %v3579, %v3745
      %v3755 = vsub.f32 %v3655, %v3747
      %3756 = vrot.lane.b32.xlu0 %v3736, 4
      %v3757 = vpop.permute.xlu0 %3756
      %3758 = vrot.lane.b32.xlu0 %v3737, 4
      %v3759 = vpop.permute.xlu0 %3758
      %3760 = vrot.lane.b32.xlu0 %v3738, 4
      %v3761 = vpop.permute.xlu0 %3760
      %3762 = vrot.lane.b32.xlu0 %v3739, 4
      %v3763 = vpop.permute.xlu0 %3762
      %v3768 = vadd.f32 %v3427, %v3757
      %v3769 = vadd.f32 %v3503, %v3759
      %v3770 = vadd.f32 %v3579, %v3761
      %v3771 = vadd.f32 %v3655, %v3763
      %v3776 = vrot.slane %v3753, 7
      %v3777 = vsel %vm3705, %v3776, %v3752
      %v3778 = vrot.slane %v3754, 6
      %v3779 = vsel %vm3708, %v3778, %v3777
      %v3780 = vrot.slane %v3755, 5
      %v3781 = vsel %vm3711, %v3780, %v3779
      %v3787 = vrot.slane %v3768, 4
      %v3788 = vrot.slane %v3769, 3
      %v3789 = vsel %vm3720, %v3788, %v3787
      %v3790 = vrot.slane %v3770, 2
      %v3791 = vsel %vm3723, %v3790, %v3789
      %v3792 = vrot.slane %v3771, 1
      %v3793 = vsel %vm3726, %v3792, %v3791
      %3794 = vrot.lane.b32.xlu0 %v3793, 124
      %v3795 = vpop.permute.xlu0 %3794
      %v3797 = vsel %vm1272, %v3781, %v3795
      %3799 = vrot.lane.b32.xlu0 %v3797, 4
      %v3800 = vpop.permute.xlu0 %3799
      %v3802 = vsel %vm794, %v3731, %v3800
      %vm3803 = vcmask 64512
      %v3805 = vsel %vm3803, %v3658, 0
      %v3808 = vsel %vm3803, %v3659, 0
      %3810 = vmatprep.subr.mxu0 0.0
      %3811 = vmatpush1.msra.mxu0 %v3802
      %3812 = vmatprep.subr.mxu0 0.0
      %3813 = vmatpush1.msra.mxu0 0.0
      %3814 = vmatprep.subr.mxu0 0.0
      %3815 = vmatpush1.msra.mxu0 0.0
      %3816 = vmatprep.subr.mxu0 0.0
      %3817 = vmatpush1.msra.mxu0 0.0
      %3818 = vmatprep.subr.mxu0 0.0
      %3819 = vmatpush1.msra.mxu0 0.0
      %3820 = vmatprep.subr.mxu0 0.0
      %3821 = vmatpush1.msra.mxu0 0.0
      %3822 = vmatprep.subr.mxu0 0.0
      %3823 = vmatpush1.msra.mxu0 0.0
      %3824 = vmatprep.subr.mxu0 0.0
      %3825 = vmatpush1.msra.mxu0 0.0
      %3826 = vmatprep.subr.mxu0 0.0
      %3827 = vmatpush1.msra.mxu0 0.0
      %3828 = vmatprep.subr.mxu0 0.0
      %3829 = vmatpush1.msra.mxu0 0.0
      %3830 = vmatprep.subr.mxu0 0.0
      %3831 = vmatpush1.msra.mxu0 0.0
      %3832 = vmatprep.subr.mxu0 0.0
      %3833 = vmatpush1.msra.mxu0 0.0
      %3834 = vmatprep.subr.mxu0 0.0
      %3835 = vmatpush1.msra.mxu0 0.0
      %3836 = vmatprep.subr.mxu0 0.0
      %3837 = vmatpush1.msra.mxu0 0.0
      %3838 = vmatprep.subr.mxu0 0.0
      %3839 = vmatpush1.msra.mxu0 0.0
      %3840 = vmatprep.subr.mxu0 0.0
      %3841 = vmatpush1.msra.mxu0 0.0
      %3842 = vmatprep.subr.mxu0 0.0
      %3843 = vmatpush1.msra.mxu0 0.0
      %3844 = vmatprep.subr.mxu0 0.0
      %3845 = vmatpush1.msra.mxu0 0.0
      %3846 = vmatprep.subr.mxu0 0.0
      %3847 = vmatpush1.msra.mxu0 0.0
      %3848 = vmatprep.subr.mxu0 0.0
      %3849 = vmatpush1.msra.mxu0 0.0
      %3850 = vmatprep.subr.mxu0 0.0
      %3851 = vmatpush1.msra.mxu0 0.0
      %3852 = vmatprep.subr.mxu0 0.0
      %3853 = vmatpush1.msra.mxu0 0.0
      %3854 = vmatprep.subr.mxu0 0.0
      %3855 = vmatpush1.msra.mxu0 0.0
      %3856 = vmatprep.subr.mxu0 0.0
      %3857 = vmatpush1.msra.mxu0 0.0
      %3858 = vmatprep.subr.mxu0 0.0
      %3859 = vmatpush1.msra.mxu0 0.0
      %3860 = vmatprep.subr.mxu0 0.0
      %3861 = vmatpush1.msra.mxu0 0.0
      %3862 = vmatprep.subr.mxu0 0.0
      %3863 = vmatpush1.msra.mxu0 0.0
      %3864 = vmatprep.subr.mxu0 0.0
      %3865 = vmatpush1.msra.mxu0 0.0
      %3866 = vmatprep.subr.mxu0 0.0
      %3867 = vmatpush1.msra.mxu0 0.0
      %3868 = vmatprep.subr.mxu0 0.0
      %3869 = vmatpush1.msra.mxu0 0.0
      %3870 = vmatprep.subr.mxu0 0.0
      %3871 = vmatpush1.msra.mxu0 0.0
      %3872 = vmatprep.subr.mxu0 0.0
      %3873 = vmatpush1.msra.mxu0 0.0
      %3874 = vmatprep.mubr.f32.mxu0 0.0
      %3875 = vmatmul.mubr.f32.gmra.mrb[0].mxu0 %v3805
      %v3876 = vpop.f32.mrb[0].mxu0
      %v3877 = vadd.f32 0.0, %v3876
      %v3878 = vpop.f32.mrb[0].mxu0
      %3879 = vmatprep.mubr.f32.mxu0 0.0
      %3880 = vmatmul.mubr.f32.gmra.mrb[0].mxu0 %v3808
      %v3881 = vpop.f32.mrb[0].mxu0
      %v3882 = vadd.f32 0.0, %v3881
      %v3883 = vpop.f32.mrb[0].mxu0
      %3884 = vdwg.mxu0
      %3885 = vst.msk [vmem:[%s335] sm:$0xff] %vm3803, %v3877
      %3886 = vst.msk [vmem:[%s335 + $0x8] sm:$0xff] %vm3803, %v3882
      %v3887 = vrot.slane %v3680, 1
      %v3888 = vsel %vm3705, %v3681, %v3887
      %v3889 = vrot.slane %v3682, 7
      %v3890 = vsel %vm3708, %v3889, %v3888
      %v3891 = vrot.slane %v3683, 6
      %v3892 = vsel %vm3711, %v3891, %v3890
      %v3894 = vrot.slane %v3696, 5
      %v3895 = vrot.slane %v3697, 4
      %v3896 = vsel %vm3720, %v3895, %v3894
      %v3897 = vrot.slane %v3698, 3
      %v3898 = vsel %vm3723, %v3897, %v3896
      %v3899 = vrot.slane %v3699, 2
      %v3900 = vsel %vm3726, %v3899, %v3898
      %3901 = vrot.lane.b32.xlu0 %v3900, 124
      %v3902 = vpop.permute.xlu0 %3901
      %v3904 = vsel %vm1272, %v3892, %v3902
      %v3905 = vrot.slane %v3752, 1
      %v3906 = vsel %vm3705, %v3753, %v3905
      %v3907 = vrot.slane %v3754, 7
      %v3908 = vsel %vm3708, %v3907, %v3906
      %v3909 = vrot.slane %v3755, 6
      %v3910 = vsel %vm3711, %v3909, %v3908
      %v3912 = vrot.slane %v3768, 5
      %v3913 = vrot.slane %v3769, 4
      %v3914 = vsel %vm3720, %v3913, %v3912
      %v3915 = vrot.slane %v3770, 3
      %v3916 = vsel %vm3723, %v3915, %v3914
      %v3917 = vrot.slane %v3771, 2
      %v3918 = vsel %vm3726, %v3917, %v3916
      %3919 = vrot.lane.b32.xlu0 %v3918, 124
      %v3920 = vpop.permute.xlu0 %3919
      %v3922 = vsel %vm1272, %v3910, %v3920
      %3924 = vrot.lane.b32.xlu0 %v3922, 4
      %v3925 = vpop.permute.xlu0 %3924
      %v3927 = vsel %vm794, %v3904, %v3925
      %3928 = vmatprep.subr.mxu0 0.0
      %3929 = vmatpush1.msra.mxu0 %v3927
      %3930 = vmatprep.subr.mxu0 0.0
      %3931 = vmatpush1.msra.mxu0 0.0
      %3932 = vmatprep.subr.mxu0 0.0
      %3933 = vmatpush1.msra.mxu0 0.0
      %3934 = vmatprep.subr.mxu0 0.0
      %3935 = vmatpush1.msra.mxu0 0.0
      %3936 = vmatprep.subr.mxu0 0.0
      %3937 = vmatpush1.msra.mxu0 0.0
      %3938 = vmatprep.subr.mxu0 0.0
      %3939 = vmatpush1.msra.mxu0 0.0
      %3940 = vmatprep.subr.mxu0 0.0
      %3941 = vmatpush1.msra.mxu0 0.0
      %3942 = vmatprep.subr.mxu0 0.0
      %3943 = vmatpush1.msra.mxu0 0.0
      %3944 = vmatprep.subr.mxu0 0.0
      %3945 = vmatpush1.msra.mxu0 0.0
      %3946 = vmatprep.subr.mxu0 0.0
      %3947 = vmatpush1.msra.mxu0 0.0
      %3948 = vmatprep.subr.mxu0 0.0
      %3949 = vmatpush1.msra.mxu0 0.0
      %3950 = vmatprep.subr.mxu0 0.0
      %3951 = vmatpush1.msra.mxu0 0.0
      %3952 = vmatprep.subr.mxu0 0.0
      %3953 = vmatpush1.msra.mxu0 0.0
      %3954 = vmatprep.subr.mxu0 0.0
      %3955 = vmatpush1.msra.mxu0 0.0
      %3956 = vmatprep.subr.mxu0 0.0
      %3957 = vmatpush1.msra.mxu0 0.0
      %3958 = vmatprep.subr.mxu0 0.0
      %3959 = vmatpush1.msra.mxu0 0.0
      %3960 = vmatprep.subr.mxu0 0.0
      %3961 = vmatpush1.msra.mxu0 0.0
      %3962 = vmatprep.subr.mxu0 0.0
      %3963 = vmatpush1.msra.mxu0 0.0
      %3964 = vmatprep.subr.mxu0 0.0
      %3965 = vmatpush1.msra.mxu0 0.0
      %3966 = vmatprep.subr.mxu0 0.0
      %3967 = vmatpush1.msra.mxu0 0.0
      %3968 = vmatprep.subr.mxu0 0.0
      %3969 = vmatpush1.msra.mxu0 0.0
      %3970 = vmatprep.subr.mxu0 0.0
      %3971 = vmatpush1.msra.mxu0 0.0
      %3972 = vmatprep.subr.mxu0 0.0
      %3973 = vmatpush1.msra.mxu0 0.0
      %3974 = vmatprep.subr.mxu0 0.0
      %3975 = vmatpush1.msra.mxu0 0.0
      %3976 = vmatprep.subr.mxu0 0.0
      %3977 = vmatpush1.msra.mxu0 0.0
      %3978 = vmatprep.subr.mxu0 0.0
      %3979 = vmatpush1.msra.mxu0 0.0
      %3980 = vmatprep.subr.mxu0 0.0
      %3981 = vmatpush1.msra.mxu0 0.0
      %3982 = vmatprep.subr.mxu0 0.0
      %3983 = vmatpush1.msra.mxu0 0.0
      %3984 = vmatprep.subr.mxu0 0.0
      %3985 = vmatpush1.msra.mxu0 0.0
      %3986 = vmatprep.subr.mxu0 0.0
      %3987 = vmatpush1.msra.mxu0 0.0
      %3988 = vmatprep.subr.mxu0 0.0
      %3989 = vmatpush1.msra.mxu0 0.0
      %3990 = vmatprep.subr.mxu0 0.0
      %3991 = vmatpush1.msra.mxu0 0.0
      %3992 = vmatprep.mubr.f32.mxu0 0.0
      %3993 = vmatmul.mubr.f32.gmra.mrb[0].mxu0 %v3805
      %v3994 = vpop.f32.mrb[0].mxu0
      %v3995 = vadd.f32 0.0, %v3994
      %v3996 = vpop.f32.mrb[0].mxu0
      %3997 = vmatprep.mubr.f32.mxu0 0.0
      %3998 = vmatmul.mubr.f32.gmra.mrb[0].mxu0 %v3808
      %v3999 = vpop.f32.mrb[0].mxu0
      %v4000 = vadd.f32 0.0, %v3999
      %v4001 = vpop.f32.mrb[0].mxu0
      %4002 = vdwg.mxu0
      %s4003 = scalar_lea.vmem %s335, 16
      %4004 = vst.msk [vmem:[%s4003] sm:$0xff] %vm3803, %v3995
      %4005 = vst.msk [vmem:[%s4003 + $0x8] sm:$0xff] %vm3803, %v4000
      %s4006 = smul.u32 2, %s18
      %p4007 = scmp.lt.s32.totalorder %s4006, 3
      %s4008 = scalar_select %p4007, %s4006, 3
      %s4009 = smul.addr %s4008, 2
      %s4010 = smul.addr %s4009, 8
      %s4011 = scalar_lea.vmem %s7, %s4010
      // Predicated region
      $region49: #{tpu_custom_call.1} parent=47 // pred_check
        %p4012 = pneg %p198
      $region50: #{tpu_custom_call.1} parent=47 // pred_check_branch
        %4014 = sbr.rel (%p4012) target = $region52
      $region51: #{tpu_custom_call.1} parent=47 // pred_region
        %s4015 = smul.u32 2, %s18
      $region52: #{tpu_custom_call.1} parent=47 // pred_fallthru
        _
    $region48: #{tpu_custom_call.1} parent=5 // pred_fallthru
      _
    %p4016 = scmp.le.s32.totalorder 2, %s13
    // Predicated region
    $region53: #{tpu_custom_call.1} parent=5 // pred_check
      %p4017 = pneg %p4016
    $region54: #{tpu_custom_call.1} parent=5 // pred_check_branch
      %4019 = sbr.rel (%p4017) target = $region56
    $region55: #{tpu_custom_call.1} parent=5 // pred_region
      %s4020 = ssub.s32 %s13, 2
      // Predicated region
      $region57: #{tpu_custom_call.1} parent=55 // pred_check
        %p4021 = pneg %p204
      $region58: #{tpu_custom_call.1} parent=55 // pred_check_branch
        %4023 = sbr.rel (%p4021) target = $region60
      $region59: #{tpu_custom_call.1} parent=55 // pred_region
        %s4024 = smul.u32 2, %s19
        %p4025 = scmp.lt.s32.totalorder %s4024, 3
        %s4026 = scalar_select %p4025, %s4024, 3
        %s4027 = smul.addr %s4026, 2
        %s4028 = smul.addr %s4027, 8
        %s4029 = scalar_lea.vmem %s7, %s4028
      $region60: #{tpu_custom_call.1} parent=55 // pred_fallthru
        _
    $region56: #{tpu_custom_call.1} parent=5 // pred_fallthru
      _
  $region6: #{tpu_custom_call.1} parent=0 // loop_footer
    %s17 = sadd.s32 1, %s13
  $region7: #{tpu_custom_call.1} parent=0 // loop_footer_branch
    %12 = sbr.rel target = $region3
  $region8: #{tpu_custom_call.1} parent=0 // loop_exit
    _

</llo_original>
